<compile_context>
chip_gen: v6e
topology: v6e:2x2x1
jax: 0.10.0
libtpu: 0.0.40
codegen_flags: <defaults>
</compile_context>

<pallas_src>
import functools

import jax
import jax.numpy as jnp
from jax import lax
from jax.experimental import pallas as pl
from jax.experimental.pallas import tpu as pltpu

LEAKY = 0.2
BN_EPS = 1e-5
HP = 128                      # padded per-gate hidden width (one full lane tile)
VMEM_LIMIT = 32 * 1024 * 1024


def _round_up(x, m):
    return ((x + m - 1) // m) * m


# ----------------------------------------------------------------------------
# Fused matmul + bias + LeakyReLU kernel (lane-dense along N)
# ----------------------------------------------------------------------------
def _mm_kernel(a_ref, w_ref, b_ref, o_ref, *, leaky):
    acc = jnp.dot(a_ref[...], w_ref[...], preferred_element_type=jnp.float32)
    acc = acc + b_ref[...].astype(jnp.float32)
    if leaky is not None:
        acc = jnp.where(acc >= 0, acc, leaky * acc)
    o_ref[...] = acc.astype(o_ref.dtype)


def matmul_bias_act(a, w, bias, *, leaky=None, bias_per_row=False,
                    out_dtype=jnp.bfloat16):
    """out (M, N) = a (M, K) @ w (K, N) + bias, optional LeakyReLU epilogue.

    bias is 2-D: (M, 1) when bias_per_row (per output row, e.g. conv out-channel)
    or (1, N) (per output column).  The LARGE dimension must be N (lane axis):
    N is padded to a multiple of 128 and tiled so every store is lane-dense.
    Operands are cast to bf16; accumulation and epilogue are f32.
    """
    M, K = a.shape
    K2, N = w.shape
    assert K == K2

    Mp = _round_up(M, 8)
    Kp = _round_up(K, 8)
    Np = _round_up(N, 128)
    tn = min(512, Np)
    Np = _round_up(Np, tn)

    if Kp != K:
        a = jnp.pad(a, ((0, 0), (0, Kp - K)))
        w = jnp.pad(w, ((0, Kp - K), (0, 0)))
    if Mp != M:
        a = jnp.pad(a, ((0, Mp - M), (0, 0)))
        if bias_per_row:
            bias = jnp.pad(bias, ((0, Mp - M), (0, 0)))
    if Np != N:
        w = jnp.pad(w, ((0, 0), (0, Np - N)))
        if not bias_per_row:
            bias = jnp.pad(bias, ((0, 0), (0, Np - N)))

    a = a.astype(jnp.bfloat16)
    w = w.astype(jnp.bfloat16)
    bias = bias.astype(jnp.float32)

    if bias_per_row:
        b_spec = pl.BlockSpec((Mp, 1), lambda j: (0, 0))
    else:
        b_spec = pl.BlockSpec((1, tn), lambda j: (0, j))

    out = pl.pallas_call(
        functools.partial(_mm_kernel, leaky=leaky),
        grid=(Np // tn,),
        in_specs=[
            pl.BlockSpec((Mp, Kp), lambda j: (0, 0)),
            pl.BlockSpec((Kp, tn), lambda j: (0, j)),
            b_spec,
        ],
        out_specs=pl.BlockSpec((Mp, tn), lambda j: (0, j)),
        out_shape=jax.ShapeDtypeStruct((Mp, Np), out_dtype),
        compiler_params=pltpu.CompilerParams(
            dimension_semantics=("parallel",),
            vmem_limit_bytes=VMEM_LIMIT),
    )(a, w, bias)

    if (Mp, Np) != (M, N):
        out = out[:M, :N]
    return out


# ----------------------------------------------------------------------------
# LSTM recurrence: one grid step, fori_loop over time, VMEM-resident state
# ----------------------------------------------------------------------------
def _lstm_kernel(xproj_ref, whh_ref, out_ref, h_scr, c_scr, *, T):
    h_scr[...] = jnp.zeros_like(h_scr)
    c_scr[...] = jnp.zeros_like(c_scr)

    def step(t, carry):
        gates = xproj_ref[t] + jnp.dot(
            h_scr[...].astype(jnp.bfloat16), whh_ref[...],
            preferred_element_type=jnp.float32)
        # each gate occupies a full 128-lane tile -> aligned slices, no shuffles
        i_g = jax.nn.sigmoid(gates[:, 0 * HP:1 * HP])
        f_g = jax.nn.sigmoid(gates[:, 1 * HP:2 * HP])
        g_g = jnp.tanh(gates[:, 2 * HP:3 * HP])
        o_g = jax.nn.sigmoid(gates[:, 3 * HP:4 * HP])
        c_new = f_g * c_scr[...] + i_g * g_g
        h_new = o_g * jnp.tanh(c_new)
        c_scr[...] = c_new
        h_scr[...] = h_new
        out_ref[t] = h_new.astype(out_ref.dtype)
        return carry

    lax.fori_loop(0, T, step, 0)


def lstm_sequence(xproj, whh_pad):
    """xproj: (T, B, 4*HP) f32 (x_t @ W_ih^T + b_ih + b_hh, gate-padded),
    whh_pad: (HP, 4*HP).  Returns (T, B, HP) hidden states (lanes >= H are 0)."""
    T, B, G = xproj.shape
    return pl.pallas_call(
        functools.partial(_lstm_kernel, T=T),
        grid=(1,),
        in_specs=[
            pl.BlockSpec((T, B, G), lambda i: (0, 0, 0)),
            pl.BlockSpec((HP, G), lambda i: (0, 0)),
        ],
        out_specs=pl.BlockSpec((T, B, HP), lambda i: (0, 0, 0)),
        out_shape=jax.ShapeDtypeStruct((T, B, HP), jnp.bfloat16),
        scratch_shapes=[pltpu.VMEM((B, HP), jnp.float32),
                        pltpu.VMEM((B, HP), jnp.float32)],
        compiler_params=pltpu.CompilerParams(
            dimension_semantics=("arbitrary",),
            vmem_limit_bytes=VMEM_LIMIT),
    )(xproj.astype(jnp.float32), whh_pad.astype(jnp.bfloat16))


# ----------------------------------------------------------------------------
# Conv / ConvTranspose (channel-first layout) via im2col + fused Pallas matmul
# ----------------------------------------------------------------------------
def conv2d_cbhw(x, w, b, stride, pad_h, pad_w, leaky=None, out_dtype=jnp.bfloat16):
    """x: (Cin, B, H, W) channel-first; w: (Cout, Cin, kh, kw); b: (Cout,)."""
    Cin, B, H, W = x.shape
    Cout, Cin2, kh, kw = w.shape
    assert Cin == Cin2
    sh, sw = stride
    xp = jnp.pad(x, ((0, 0), (0, 0), pad_h, pad_w)).astype(jnp.bfloat16)
    Hout = (H + pad_h[0] + pad_h[1] - kh) // sh + 1
    Wout = (W + pad_w[0] + pad_w[1] - kw) // sw + 1
    taps = []
    for i in range(kh):
        for j in range(kw):
            taps.append(xp[:, :, i:i + sh * Hout:sh, j:j + sw * Wout:sw])
    # (Cin, kh*kw, B, Hout, Wout) -> (Cin*kh*kw, B*Hout*Wout); K-ordering matches
    # PyTorch's weight.reshape(Cout, Cin*kh*kw), and the big spatial dim lands on N.
    colT = jnp.stack(taps, axis=1).reshape(Cin * kh * kw, B * Hout * Wout)
    wmat = w.reshape(Cout, Cin * kh * kw)
    out = matmul_bias_act(wmat, colT, b.reshape(Cout, 1), leaky=leaky,
                          bias_per_row=True, out_dtype=out_dtype)
    return out.reshape(Cout, B, Hout, Wout)


def conv_transpose2d_cbhw(x, w, b, stride, padding, leaky=None,
                          out_dtype=jnp.bfloat16):
    """x: (Cin, B, H, W); w: (Cin, Cout, kh, kw) (PyTorch ConvTranspose layout)."""
    Cin, B, H, W = x.shape
    _, Cout, kh, kw = w.shape
    sh, sw = stride
    ph, pw = padding
    assert sh == 1
    wflip = w[:, :, ::-1, ::-1].transpose(1, 0, 2, 3)          # (Cout, Cin, kh, kw)
    if sw == 1:
        return conv2d_cbhw(x, wflip, b, (1, 1),
                           (kh - 1 - ph, kh - 1 - ph), (kw - 1 - pw, kw - 1 - pw),
                           leaky, out_dtype)
    # Polyphase decomposition for W-stride 2 (no zero-insertion / wasted MACs):
    #   y[2m]   = wf0*x[m-1] + wf2*x[m]      (even taps of the flipped kernel)
    #   y[2m+1] = wf1*x[m]   + wf3*x[m+1]    (odd taps)
    assert sw == 2 and kw == 4 and pw == 1
    w_even = wflip[:, :, :, 0::2]
    w_odd = wflip[:, :, :, 1::2]
    y_even = conv2d_cbhw(x, w_even, b, (1, 1), (kh - 1 - ph, kh - 1 - ph), (1, 0),
                         leaky, out_dtype)
    y_odd = conv2d_cbhw(x, w_odd, b, (1, 1), (kh - 1 - ph, kh - 1 - ph), (0, 1),
                        leaky, out_dtype)
    return jnp.stack([y_even, y_odd], axis=-1).reshape(Cout, B, H, 2 * W)


# ----------------------------------------------------------------------------
# BatchNorm folding (eval mode) and layer blocks
# ----------------------------------------------------------------------------
def _fold_bn(out_axis, w, b, bn):
    scale = bn["gamma"] / jnp.sqrt(bn["var"] + BN_EPS)
    shape = [1] * w.ndim
    shape[out_axis] = -1
    return w * scale.reshape(shape), (b - bn["mean"]) * scale + bn["beta"]


def conv_block(x, p, stride):
    w, b = _fold_bn(0, p["w"], p["b"], p["bn"])
    return conv2d_cbhw(x, w, b, stride, (1, 1), (1, 1), leaky=LEAKY)


def convt_block(x, p, stride, final=False):
    if final:
        return conv_transpose2d_cbhw(x, p["w"], p["b"], stride, (1, 1),
                                     leaky=None, out_dtype=jnp.float32)
    w, b = _fold_bn(1, p["w"], p["b"], p["bn"])
    return conv_transpose2d_cbhw(x, w, b, stride, (1, 1), leaky=LEAKY)


# ----------------------------------------------------------------------------
# Parameters (deterministic synthetic init, PyTorch-shaped)
# ----------------------------------------------------------------------------
def make_params(key, ngf, hidden):
    keys = iter(jax.random.split(key, 256))

    def rnd(shape, s=0.05):
        return s * jax.random.normal(next(keys), shape, jnp.float32)

    def bn(c):
        return dict(
            gamma=1.0 + 0.05 * jax.random.normal(next(keys), (c,), jnp.float32),
            beta=0.05 * jax.random.normal(next(keys), (c,), jnp.float32),
            mean=0.05 * jax.random.normal(next(keys), (c,), jnp.float32),
            var=1.0 + 0.05 * jnp.abs(jax.random.normal(next(keys), (c,), jnp.float32)),
        )

    def conv(cout, cin, kh, kw):
        return dict(w=rnd((cout, cin, kh, kw)), b=rnd((cout,)), bn=bn(cout))

    def convt(cin, cout, kh, kw, with_bn=True):
        d = dict(w=rnd((cin, cout, kh, kw)), b=rnd((cout,)))
        if with_bn:
            d["bn"] = bn(cout)
        return d

    P = {}
    P["c1a"] = conv(ngf, 1, 3, 4)
    P["c1b"] = conv(ngf, ngf, 3, 3)
    P["c1c"] = conv(ngf, ngf, 3, 3)
    P["c2a"] = conv(2 * ngf, ngf, 3, 4)
    P["c2b"] = conv(2 * ngf, 2 * ngf, 3, 3)
    P["c2c"] = conv(2 * ngf, 2 * ngf, 3, 3)
    P["c3a"] = conv(4 * ngf, 2 * ngf, 3, 4)
    P["c3b"] = conv(4 * ngf, 4 * ngf, 3, 3)
    lstm_in = 4 * ngf * 5
    P["lstm"] = dict(w_ih=rnd((4 * hidden, lstm_in)), w_hh=rnd((4 * hidden, hidden)),
                     b_ih=rnd((4 * hidden,)), b_hh=rnd((4 * hidden,)))
    P["fc"] = dict(w=rnd((lstm_in, hidden)), b=rnd((lstm_in,)), bn=bn(lstm_in))
    P["d1a"] = convt(8 * ngf, 4 * ngf, 3, 3)
    P["d1b"] = convt(4 * ngf, 2 * ngf, 3, 4)
    P["d2a"] = convt(4 * ngf, 2 * ngf, 3, 3)
    P["d2b"] = convt(2 * ngf, 2 * ngf, 3, 3)
    P["d2c"] = convt(2 * ngf, ngf, 3, 4)
    P["d3a"] = convt(2 * ngf, ngf, 3, 3)
    P["d3b"] = convt(ngf, ngf, 3, 3)
    P["d3c"] = convt(ngf, 1, 3, 4, with_bn=False)
    return P


# ----------------------------------------------------------------------------
# Full forward pass
# ----------------------------------------------------------------------------
def mel_clcnn_forward(x, P, ngf, hidden):
    assert hidden <= HP
    B, T, D = x.shape
    xc = x.astype(jnp.float32)[None]                       # (1, B, T, D) channel-first

    h1 = conv_block(xc, P["c1a"], (1, 2))
    h1 = conv_block(h1, P["c1b"], (1, 1))
    h1 = conv_block(h1, P["c1c"], (1, 1))                  # (ngf,  B, T, 20)

    h2 = conv_block(h1, P["c2a"], (1, 2))
    h2 = conv_block(h2, P["c2b"], (1, 1))
    h2 = conv_block(h2, P["c2c"], (1, 1))                  # (2ngf, B, T, 10)

    h3 = conv_block(h2, P["c3a"], (1, 2))
    h3 = conv_block(h3, P["c3b"], (1, 1))                  # (4ngf, B, T, 5)

    C3, _, _, D3 = h3.shape
    F = C3 * D3
    # (C, B, T, D) -> (T*B, C*D); feature order (c, d) matches PyTorch's view.
    lstm_in = jnp.transpose(h3, (2, 1, 0, 3)).reshape(T * B, F)

    L = P["lstm"]
    H = hidden
    # gate-padded LSTM weights: each gate block occupies a full 128-lane tile,
    # padded lanes carry exact zeros through the whole recurrence.
    wih_pad = jnp.zeros((F, 4 * HP), jnp.float32)
    whh_pad = jnp.zeros((HP, 4 * HP), jnp.float32)
    b_pad = jnp.zeros((1, 4 * HP), jnp.float32)
    bsum = L["b_ih"] + L["b_hh"]
    for g in range(4):
        wih_pad = wih_pad.at[:, g * HP:g * HP + H].set(L["w_ih"][g * H:(g + 1) * H, :].T)
        whh_pad = whh_pad.at[:H, g * HP:g * HP + H].set(L["w_hh"][g * H:(g + 1) * H, :].T)
        b_pad = b_pad.at[0, g * HP:g * HP + H].set(bsum[g * H:(g + 1) * H])

    xproj = matmul_bias_act(lstm_in, wih_pad, b_pad, leaky=None,
                            bias_per_row=False, out_dtype=jnp.float32)
    xproj = xproj.reshape(T, B, 4 * HP)
    hs = lstm_sequence(xproj, whh_pad)                     # (T, B, HP)

    # fc = Linear(H, 4ngf*5) + BatchNorm1d + LeakyReLU; BN folded, consuming the
    # gate-padded hidden directly via zero rows in the weight.
    scale = P["fc"]["bn"]["gamma"] / jnp.sqrt(P["fc"]["bn"]["var"] + BN_EPS)
    wf = P["fc"]["w"] * scale[:, None]                     # (F, H)
    bf = (P["fc"]["b"] - P["fc"]["bn"]["mean"]) * scale + P["fc"]["bn"]["beta"]
    wf_pad = jnp.zeros((HP, F), jnp.float32).at[:H, :].set(wf.T)
    fc_out = matmul_bias_act(hs.reshape(T * B, HP), wf_pad, bf.reshape(1, F),
                             leaky=LEAKY, bias_per_row=False)       # (T*B, F)
    fc_out = fc_out.reshape(T, B, C3, D3).transpose(2, 1, 0, 3)      # (4ngf, B, T, 5)

    d1 = convt_block(jnp.concatenate([h3, fc_out], axis=0), P["d1a"], (1, 1))
    d1 = convt_block(d1, P["d1b"], (1, 2))                           # (2ngf, B, T, 10)

    d2 = convt_block(jnp.concatenate([d1, h2], axis=0), P["d2a"], (1, 1))
    d2 = convt_block(d2, P["d2b"], (1, 1))
    d2 = convt_block(d2, P["d2c"], (1, 2))                           # (ngf, B, T, 20)

    d3 = convt_block(jnp.concatenate([d2, h1], axis=0), P["d3a"], (1, 1))
    d3 = convt_block(d3, P["d3b"], (1, 1))
    d3 = convt_block(d3, P["d3c"], (1, 2), final=True)               # (1, B, T, 40)

    return d3[0]                                                     # (B, T, 40)


if __name__ == "__main__":
    ngf = 4
    hidden_units = 32
    layer_number = 1          # fixed: single-layer, unidirectional LSTM
    bidirectional = False
    B, T, D = 2, 8, 40        # D must be 40 so the bottleneck width is 5 (4ngf*5 LSTM input)

    key = jax.random.PRNGKey(0)
    kx, kp = jax.random.split(key)
    x = jax.random.normal(kx, (B, T, D), jnp.float32)
    params = make_params(kp, ngf, hidden_units)

    fwd = jax.jit(functools.partial(mel_clcnn_forward, ngf=ngf, hidden=hidden_units))
    out = fwd(x, params)
    out = jax.block_until_ready(out)
    assert out.shape == (B, T, D), out.shape
    assert bool(jnp.all(jnp.isfinite(out)))
    print("KERNEL_OK")
</pallas_src>

<mosaic_0001>
module attributes {stable_mosaic.version = 11 : i64} {
  func.func @_mm_kernel(%arg0: i32, %arg1: memref<8x16xbf16, #tpu.memory_space<vmem>>, %arg2: memref<16x384xbf16, #tpu.memory_space<vmem>>, %arg3: memref<8x1xf32, #tpu.memory_space<vmem>>, %arg4: memref<8x384xbf16, #tpu.memory_space<vmem>>) attributes {dimension_semantics = [#tpu.dimension_semantics<parallel>], iteration_bounds = array<i64: 1>, scalar_prefetch = 0 : i64, scratch_operands = 0 : i64, tpu.core_type = #tpu.core_type<tc>, window_params = [{pipeline_mode = #tpu.pipeline_mode<synchronous>, transform_indices = @transform_0, window_bounds = array<i64: 8, 16>}, {transform_indices = @transform_1, window_bounds = array<i64: 16, 384>}, {pipeline_mode = #tpu.pipeline_mode<synchronous>, transform_indices = @transform_2, window_bounds = array<i64: 8, 1>}, {transform_indices = @transform_3, window_bounds = array<i64: 8, 384>}]} {
    %c0 = arith.constant 0 : index
    %c0_0 = arith.constant 0 : index
    %0 = vector.load %arg1[%c0, %c0_0] : memref<8x16xbf16, #tpu.memory_space<vmem>>, vector<8x16xbf16>
    %c0_1 = arith.constant 0 : index
    %c0_2 = arith.constant 0 : index
    %1 = vector.load %arg2[%c0_1, %c0_2] : memref<16x384xbf16, #tpu.memory_space<vmem>>, vector<16x384xbf16>
    %cst = arith.constant dense<0.000000e+00> : vector<8x384xf32>
    %2 = tpu.matmul %0, %1, %cst {dimension_numbers = #tpu.dot_dimension_numbers<[1], [0], [0], [1], [0, 0, 1, 1], [], []>} : vector<8x16xbf16>, vector<16x384xbf16>, vector<8x384xf32> -> vector<8x384xf32>
    %c0_3 = arith.constant 0 : index
    %c0_4 = arith.constant 0 : index
    %3 = vector.load %arg3[%c0_3, %c0_4] : memref<8x1xf32, #tpu.memory_space<vmem>>, vector<8x1xf32>
    %4 = vector.broadcast %3 : vector<8x1xf32> to vector<8x384xf32>
    %5 = arith.addf %2, %4 : vector<8x384xf32>
    %cst_5 = arith.constant 0.000000e+00 : f32
    %6 = vector.broadcast %cst_5 : f32 to vector<8x384xf32>
    %7 = arith.cmpf oge, %5, %6 : vector<8x384xf32>
    %cst_6 = arith.constant 2.000000e-01 : f32
    %8 = vector.broadcast %cst_6 : f32 to vector<8x384xf32>
    %9 = arith.mulf %8, %5 : vector<8x384xf32>
    %10 = arith.select %7, %5, %9 : vector<8x384xi1>, vector<8x384xf32>
    %11 = arith.truncf %10 : vector<8x384xf32> to vector<8x384xbf16>
    %c0_7 = arith.constant 0 : index
    %c0_8 = arith.constant 0 : index
    %12 = vector.load %arg4[%c0_7, %c0_8] : memref<8x384xbf16, #tpu.memory_space<vmem>>, vector<8x384xbf16>
    tpu.vector_store %arg4[%c0_7, %c0_8], %11 {strides = array<i32>} : memref<8x384xbf16, #tpu.memory_space<vmem>>, vector<8x384xbf16>,
    return
  }
  func.func @transform_0(%arg0: i32) -> (i32, i32) {
    %c0_i32 = arith.constant 0 : i32
    %c0_i32_0 = arith.constant 0 : i32
    %c0_i32_1 = arith.constant 0 : i32
    return %c0_i32, %c0_i32_0 : i32, i32
  }
  func.func @transform_1(%arg0: i32) -> (i32, i32) {
    %c0_i32 = arith.constant 0 : i32
    %c0_i32_0 = arith.constant 0 : i32
    return %c0_i32, %arg0 : i32, i32
  }
  func.func @transform_2(%arg0: i32) -> (i32, i32) {
    %c0_i32 = arith.constant 0 : i32
    %c0_i32_0 = arith.constant 0 : i32
    %c0_i32_1 = arith.constant 0 : i32
    return %c0_i32, %c0_i32_0 : i32, i32
  }
  func.func @transform_3(%arg0: i32) -> (i32, i32) {
    %c0_i32 = arith.constant 0 : i32
    %c0_i32_0 = arith.constant 0 : i32
    return %c0_i32, %arg0 : i32, i32
  }
}

module attributes {stable_mosaic.version = 11 : i64} {
  func.func @_mm_kernel(%arg0: i32, %arg1: memref<8x40xbf16, #tpu.memory_space<vmem>>, %arg2: memref<40x384xbf16, #tpu.memory_space<vmem>>, %arg3: memref<8x1xf32, #tpu.memory_space<vmem>>, %arg4: memref<8x384xbf16, #tpu.memory_space<vmem>>) attributes {dimension_semantics = [#tpu.dimension_semantics<parallel>], iteration_bounds = array<i64: 1>, scalar_prefetch = 0 : i64, scratch_operands = 0 : i64, tpu.core_type = #tpu.core_type<tc>, window_params = [{pipeline_mode = #tpu.pipeline_mode<synchronous>, transform_indices = @transform_0, window_bounds = array<i64: 8, 40>}, {transform_indices = @transform_1, window_bounds = array<i64: 40, 384>}, {pipeline_mode = #tpu.pipeline_mode<synchronous>, transform_indices = @transform_2, window_bounds = array<i64: 8, 1>}, {transform_indices = @transform_3, window_bounds = array<i64: 8, 384>}]} {
    %c0 = arith.constant 0 : index
    %c0_0 = arith.constant 0 : index
    %0 = vector.load %arg1[%c0, %c0_0] : memref<8x40xbf16, #tpu.memory_space<vmem>>, vector<8x40xbf16>
    %c0_1 = arith.constant 0 : index
    %c0_2 = arith.constant 0 : index
    %1 = vector.load %arg2[%c0_1, %c0_2] : memref<40x384xbf16, #tpu.memory_space<vmem>>, vector<40x384xbf16>
    %cst = arith.constant dense<0.000000e+00> : vector<8x384xf32>
    %2 = tpu.matmul %0, %1, %cst {dimension_numbers = #tpu.dot_dimension_numbers<[1], [0], [0], [1], [0, 0, 1, 1], [], []>} : vector<8x40xbf16>, vector<40x384xbf16>, vector<8x384xf32> -> vector<8x384xf32>
    %c0_3 = arith.constant 0 : index
    %c0_4 = arith.constant 0 : index
    %3 = vector.load %arg3[%c0_3, %c0_4] : memref<8x1xf32, #tpu.memory_space<vmem>>, vector<8x1xf32>
    %4 = vector.broadcast %3 : vector<8x1xf32> to vector<8x384xf32>
    %5 = arith.addf %2, %4 : vector<8x384xf32>
    %cst_5 = arith.constant 0.000000e+00 : f32
    %6 = vector.broadcast %cst_5 : f32 to vector<8x384xf32>
    %7 = arith.cmpf oge, %5, %6 : vector<8x384xf32>
    %cst_6 = arith.constant 2.000000e-01 : f32
    %8 = vector.broadcast %cst_6 : f32 to vector<8x384xf32>
    %9 = arith.mulf %8, %5 : vector<8x384xf32>
    %10 = arith.select %7, %5, %9 : vector<8x384xi1>, vector<8x384xf32>
    %11 = arith.truncf %10 : vector<8x384xf32> to vector<8x384xbf16>
    %c0_7 = arith.constant 0 : index
    %c0_8 = arith.constant 0 : index
    %12 = vector.load %arg4[%c0_7, %c0_8] : memref<8x384xbf16, #tpu.memory_space<vmem>>, vector<8x384xbf16>
    tpu.vector_store %arg4[%c0_7, %c0_8], %11 {strides = array<i32>} : memref<8x384xbf16, #tpu.memory_space<vmem>>, vector<8x384xbf16>,
    return
  }
  func.func @transform_0(%arg0: i32) -> (i32, i32) {
    %c0_i32 = arith.constant 0 : i32
    %c0_i32_0 = arith.constant 0 : i32
    %c0_i32_1 = arith.constant 0 : i32
    return %c0_i32, %c0_i32_0 : i32, i32
  }
  func.func @transform_1(%arg0: i32) -> (i32, i32) {
    %c0_i32 = arith.constant 0 : i32
    %c0_i32_0 = arith.constant 0 : i32
    return %c0_i32, %arg0 : i32, i32
  }
  func.func @transform_2(%arg0: i32) -> (i32, i32) {
    %c0_i32 = arith.constant 0 : i32
    %c0_i32_0 = arith.constant 0 : i32
    %c0_i32_1 = arith.constant 0 : i32
    return %c0_i32, %c0_i32_0 : i32, i32
  }
  func.func @transform_3(%arg0: i32) -> (i32, i32) {
    %c0_i32 = arith.constant 0 : i32
    %c0_i32_0 = arith.constant 0 : i32
    return %c0_i32, %arg0 : i32, i32
  }
}

module attributes {stable_mosaic.version = 11 : i64} {
  func.func @_mm_kernel(%arg0: i32, %arg1: memref<8x48xbf16, #tpu.memory_space<vmem>>, %arg2: memref<48x256xbf16, #tpu.memory_space<vmem>>, %arg3: memref<8x1xf32, #tpu.memory_space<vmem>>, %arg4: memref<8x256xbf16, #tpu.memory_space<vmem>>) attributes {dimension_semantics = [#tpu.dimension_semantics<parallel>], iteration_bounds = array<i64: 1>, scalar_prefetch = 0 : i64, scratch_operands = 0 : i64, tpu.core_type = #tpu.core_type<tc>, window_params = [{pipeline_mode = #tpu.pipeline_mode<synchronous>, transform_indices = @transform_0, window_bounds = array<i64: 8, 48>}, {transform_indices = @transform_1, window_bounds = array<i64: 48, 256>}, {pipeline_mode = #tpu.pipeline_mode<synchronous>, transform_indices = @transform_2, window_bounds = array<i64: 8, 1>}, {transform_indices = @transform_3, window_bounds = array<i64: 8, 256>}]} {
    %c0 = arith.constant 0 : index
    %c0_0 = arith.constant 0 : index
    %0 = vector.load %arg1[%c0, %c0_0] : memref<8x48xbf16, #tpu.memory_space<vmem>>, vector<8x48xbf16>
    %c0_1 = arith.constant 0 : index
    %c0_2 = arith.constant 0 : index
    %1 = vector.load %arg2[%c0_1, %c0_2] : memref<48x256xbf16, #tpu.memory_space<vmem>>, vector<48x256xbf16>
    %cst = arith.constant dense<0.000000e+00> : vector<8x256xf32>
    %2 = tpu.matmul %0, %1, %cst {dimension_numbers = #tpu.dot_dimension_numbers<[1], [0], [0], [1], [0, 0, 1, 1], [], []>} : vector<8x48xbf16>, vector<48x256xbf16>, vector<8x256xf32> -> vector<8x256xf32>
    %c0_3 = arith.constant 0 : index
    %c0_4 = arith.constant 0 : index
    %3 = vector.load %arg3[%c0_3, %c0_4] : memref<8x1xf32, #tpu.memory_space<vmem>>, vector<8x1xf32>
    %4 = vector.broadcast %3 : vector<8x1xf32> to vector<8x256xf32>
    %5 = arith.addf %2, %4 : vector<8x256xf32>
    %cst_5 = arith.constant 0.000000e+00 : f32
    %6 = vector.broadcast %cst_5 : f32 to vector<8x256xf32>
    %7 = arith.cmpf oge, %5, %6 : vector<8x256xf32>
    %cst_6 = arith.constant 2.000000e-01 : f32
    %8 = vector.broadcast %cst_6 : f32 to vector<8x256xf32>
    %9 = arith.mulf %8, %5 : vector<8x256xf32>
    %10 = arith.select %7, %5, %9 : vector<8x256xi1>, vector<8x256xf32>
    %11 = arith.truncf %10 : vector<8x256xf32> to vector<8x256xbf16>
    %c0_7 = arith.constant 0 : index
    %c0_8 = arith.constant 0 : index
    %12 = vector.load %arg4[%c0_7, %c0_8] : memref<8x256xbf16, #tpu.memory_space<vmem>>, vector<8x256xbf16>
    tpu.vector_store %arg4[%c0_7, %c0_8], %11 {strides = array<i32>} : memref<8x256xbf16, #tpu.memory_space<vmem>>, vector<8x256xbf16>,
    return
  }
  func.func @transform_0(%arg0: i32) -> (i32, i32) {
    %c0_i32 = arith.constant 0 : i32
    %c0_i32_0 = arith.constant 0 : i32
    %c0_i32_1 = arith.constant 0 : i32
    return %c0_i32, %c0_i32_0 : i32, i32
  }
  func.func @transform_1(%arg0: i32) -> (i32, i32) {
    %c0_i32 = arith.constant 0 : i32
    %c0_i32_0 = arith.constant 0 : i32
    return %c0_i32, %arg0 : i32, i32
  }
  func.func @transform_2(%arg0: i32) -> (i32, i32) {
    %c0_i32 = arith.constant 0 : i32
    %c0_i32_0 = arith.constant 0 : i32
    %c0_i32_1 = arith.constant 0 : i32
    return %c0_i32, %c0_i32_0 : i32, i32
  }
  func.func @transform_3(%arg0: i32) -> (i32, i32) {
    %c0_i32 = arith.constant 0 : i32
    %c0_i32_0 = arith.constant 0 : i32
    return %c0_i32, %arg0 : i32, i32
  }
}

module attributes {stable_mosaic.version = 11 : i64} {
  func.func @_mm_kernel(%arg0: i32, %arg1: memref<8x72xbf16, #tpu.memory_space<vmem>>, %arg2: memref<72x256xbf16, #tpu.memory_space<vmem>>, %arg3: memref<8x1xf32, #tpu.memory_space<vmem>>, %arg4: memref<8x256xbf16, #tpu.memory_space<vmem>>) attributes {dimension_semantics = [#tpu.dimension_semantics<parallel>], iteration_bounds = array<i64: 1>, scalar_prefetch = 0 : i64, scratch_operands = 0 : i64, tpu.core_type = #tpu.core_type<tc>, window_params = [{pipeline_mode = #tpu.pipeline_mode<synchronous>, transform_indices = @transform_0, window_bounds = array<i64: 8, 72>}, {transform_indices = @transform_1, window_bounds = array<i64: 72, 256>}, {pipeline_mode = #tpu.pipeline_mode<synchronous>, transform_indices = @transform_2, window_bounds = array<i64: 8, 1>}, {transform_indices = @transform_3, window_bounds = array<i64: 8, 256>}]} {
    %c0 = arith.constant 0 : index
    %c0_0 = arith.constant 0 : index
    %0 = vector.load %arg1[%c0, %c0_0] : memref<8x72xbf16, #tpu.memory_space<vmem>>, vector<8x72xbf16>
    %c0_1 = arith.constant 0 : index
    %c0_2 = arith.constant 0 : index
    %1 = vector.load %arg2[%c0_1, %c0_2] : memref<72x256xbf16, #tpu.memory_space<vmem>>, vector<72x256xbf16>
    %cst = arith.constant dense<0.000000e+00> : vector<8x256xf32>
    %2 = tpu.matmul %0, %1, %cst {dimension_numbers = #tpu.dot_dimension_numbers<[1], [0], [0], [1], [0, 0, 1, 1], [], []>} : vector<8x72xbf16>, vector<72x256xbf16>, vector<8x256xf32> -> vector<8x256xf32>
    %c0_3 = arith.constant 0 : index
    %c0_4 = arith.constant 0 : index
    %3 = vector.load %arg3[%c0_3, %c0_4] : memref<8x1xf32, #tpu.memory_space<vmem>>, vector<8x1xf32>
    %4 = vector.broadcast %3 : vector<8x1xf32> to vector<8x256xf32>
    %5 = arith.addf %2, %4 : vector<8x256xf32>
    %cst_5 = arith.constant 0.000000e+00 : f32
    %6 = vector.broadcast %cst_5 : f32 to vector<8x256xf32>
    %7 = arith.cmpf oge, %5, %6 : vector<8x256xf32>
    %cst_6 = arith.constant 2.000000e-01 : f32
    %8 = vector.broadcast %cst_6 : f32 to vector<8x256xf32>
    %9 = arith.mulf %8, %5 : vector<8x256xf32>
    %10 = arith.select %7, %5, %9 : vector<8x256xi1>, vector<8x256xf32>
    %11 = arith.truncf %10 : vector<8x256xf32> to vector<8x256xbf16>
    %c0_7 = arith.constant 0 : index
    %c0_8 = arith.constant 0 : index
    %12 = vector.load %arg4[%c0_7, %c0_8] : memref<8x256xbf16, #tpu.memory_space<vmem>>, vector<8x256xbf16>
    tpu.vector_store %arg4[%c0_7, %c0_8], %11 {strides = array<i32>} : memref<8x256xbf16, #tpu.memory_space<vmem>>, vector<8x256xbf16>,
    return
  }
  func.func @transform_0(%arg0: i32) -> (i32, i32) {
    %c0_i32 = arith.constant 0 : i32
    %c0_i32_0 = arith.constant 0 : i32
    %c0_i32_1 = arith.constant 0 : i32
    return %c0_i32, %c0_i32_0 : i32, i32
  }
  func.func @transform_1(%arg0: i32) -> (i32, i32) {
    %c0_i32 = arith.constant 0 : i32
    %c0_i32_0 = arith.constant 0 : i32
    return %c0_i32, %arg0 : i32, i32
  }
  func.func @transform_2(%arg0: i32) -> (i32, i32) {
    %c0_i32 = arith.constant 0 : i32
    %c0_i32_0 = arith.constant 0 : i32
    %c0_i32_1 = arith.constant 0 : i32
    return %c0_i32, %c0_i32_0 : i32, i32
  }
  func.func @transform_3(%arg0: i32) -> (i32, i32) {
    %c0_i32 = arith.constant 0 : i32
    %c0_i32_0 = arith.constant 0 : i32
    return %c0_i32, %arg0 : i32, i32
  }
}

module attributes {stable_mosaic.version = 11 : i64} {
  func.func @_mm_kernel(%arg0: i32, %arg1: memref<16x96xbf16, #tpu.memory_space<vmem>>, %arg2: memref<96x128xbf16, #tpu.memory_space<vmem>>, %arg3: memref<16x1xf32, #tpu.memory_space<vmem>>, %arg4: memref<16x128xbf16, #tpu.memory_space<vmem>>) attributes {dimension_semantics = [#tpu.dimension_semantics<parallel>], iteration_bounds = array<i64: 1>, scalar_prefetch = 0 : i64, scratch_operands = 0 : i64, tpu.core_type = #tpu.core_type<tc>, window_params = [{pipeline_mode = #tpu.pipeline_mode<synchronous>, transform_indices = @transform_0, window_bounds = array<i64: 16, 96>}, {transform_indices = @transform_1, window_bounds = array<i64: 96, 128>}, {pipeline_mode = #tpu.pipeline_mode<synchronous>, transform_indices = @transform_2, window_bounds = array<i64: 16, 1>}, {transform_indices = @transform_3, window_bounds = array<i64: 16, 128>}]} {
    %c0 = arith.constant 0 : index
    %c0_0 = arith.constant 0 : index
    %0 = vector.load %arg1[%c0, %c0_0] : memref<16x96xbf16, #tpu.memory_space<vmem>>, vector<16x96xbf16>
    %c0_1 = arith.constant 0 : index
    %c0_2 = arith.constant 0 : index
    %1 = vector.load %arg2[%c0_1, %c0_2] : memref<96x128xbf16, #tpu.memory_space<vmem>>, vector<96x128xbf16>
    %cst = arith.constant dense<0.000000e+00> : vector<16x128xf32>
    %2 = tpu.matmul %0, %1, %cst {dimension_numbers = #tpu.dot_dimension_numbers<[1], [0], [0], [1], [0, 0, 1, 1], [], []>} : vector<16x96xbf16>, vector<96x128xbf16>, vector<16x128xf32> -> vector<16x128xf32>
    %c0_3 = arith.constant 0 : index
    %c0_4 = arith.constant 0 : index
    %3 = vector.load %arg3[%c0_3, %c0_4] : memref<16x1xf32, #tpu.memory_space<vmem>>, vector<16x1xf32>
    %4 = vector.broadcast %3 : vector<16x1xf32> to vector<16x128xf32>
    %5 = arith.addf %2, %4 : vector<16x128xf32>
    %cst_5 = arith.constant 0.000000e+00 : f32
    %6 = vector.broadcast %cst_5 : f32 to vector<16x128xf32>
    %7 = arith.cmpf oge, %5, %6 : vector<16x128xf32>
    %cst_6 = arith.constant 2.000000e-01 : f32
    %8 = vector.broadcast %cst_6 : f32 to vector<16x128xf32>
    %9 = arith.mulf %8, %5 : vector<16x128xf32>
    %10 = arith.select %7, %5, %9 : vector<16x128xi1>, vector<16x128xf32>
    %11 = arith.truncf %10 : vector<16x128xf32> to vector<16x128xbf16>
    %c0_7 = arith.constant 0 : index
    %c0_8 = arith.constant 0 : index
    %12 = vector.load %arg4[%c0_7, %c0_8] : memref<16x128xbf16, #tpu.memory_space<vmem>>, vector<16x128xbf16>
    tpu.vector_store %arg4[%c0_7, %c0_8], %11 {strides = array<i32>} : memref<16x128xbf16, #tpu.memory_space<vmem>>, vector<16x128xbf16>,
    return
  }
  func.func @transform_0(%arg0: i32) -> (i32, i32) {
    %c0_i32 = arith.constant 0 : i32
    %c0_i32_0 = arith.constant 0 : i32
    %c0_i32_1 = arith.constant 0 : i32
    return %c0_i32, %c0_i32_0 : i32, i32
  }
  func.func @transform_1(%arg0: i32) -> (i32, i32) {
    %c0_i32 = arith.constant 0 : i32
    %c0_i32_0 = arith.constant 0 : i32
    return %c0_i32, %arg0 : i32, i32
  }
  func.func @transform_2(%arg0: i32) -> (i32, i32) {
    %c0_i32 = arith.constant 0 : i32
    %c0_i32_0 = arith.constant 0 : i32
    %c0_i32_1 = arith.constant 0 : i32
    return %c0_i32, %c0_i32_0 : i32, i32
  }
  func.func @transform_3(%arg0: i32) -> (i32, i32) {
    %c0_i32 = arith.constant 0 : i32
    %c0_i32_0 = arith.constant 0 : i32
    return %c0_i32, %arg0 : i32, i32
  }
}

module attributes {stable_mosaic.version = 11 : i64} {
  func.func @_mm_kernel(%arg0: i32, %arg1: memref<16x144xbf16, #tpu.memory_space<vmem>>, %arg2: memref<144x128xbf16, #tpu.memory_space<vmem>>, %arg3: memref<16x1xf32, #tpu.memory_space<vmem>>, %arg4: memref<16x128xbf16, #tpu.memory_space<vmem>>) attributes {dimension_semantics = [#tpu.dimension_semantics<parallel>], iteration_bounds = array<i64: 1>, scalar_prefetch = 0 : i64, scratch_operands = 0 : i64, tpu.core_type = #tpu.core_type<tc>, window_params = [{pipeline_mode = #tpu.pipeline_mode<synchronous>, transform_indices = @transform_0, window_bounds = array<i64: 16, 144>}, {transform_indices = @transform_1, window_bounds = array<i64: 144, 128>}, {pipeline_mode = #tpu.pipeline_mode<synchronous>, transform_indices = @transform_2, window_bounds = array<i64: 16, 1>}, {transform_indices = @transform_3, window_bounds = array<i64: 16, 128>}]} {
    %c0 = arith.constant 0 : index
    %c0_0 = arith.constant 0 : index
    %0 = vector.load %arg1[%c0, %c0_0] : memref<16x144xbf16, #tpu.memory_space<vmem>>, vector<16x144xbf16>
    %c0_1 = arith.constant 0 : index
    %c0_2 = arith.constant 0 : index
    %1 = vector.load %arg2[%c0_1, %c0_2] : memref<144x128xbf16, #tpu.memory_space<vmem>>, vector<144x128xbf16>
    %cst = arith.constant dense<0.000000e+00> : vector<16x128xf32>
    %2 = tpu.matmul %0, %1, %cst {dimension_numbers = #tpu.dot_dimension_numbers<[1], [0], [0], [1], [0, 0, 1, 1], [], []>} : vector<16x144xbf16>, vector<144x128xbf16>, vector<16x128xf32> -> vector<16x128xf32>
    %c0_3 = arith.constant 0 : index
    %c0_4 = arith.constant 0 : index
    %3 = vector.load %arg3[%c0_3, %c0_4] : memref<16x1xf32, #tpu.memory_space<vmem>>, vector<16x1xf32>
    %4 = vector.broadcast %3 : vector<16x1xf32> to vector<16x128xf32>
    %5 = arith.addf %2, %4 : vector<16x128xf32>
    %cst_5 = arith.constant 0.000000e+00 : f32
    %6 = vector.broadcast %cst_5 : f32 to vector<16x128xf32>
    %7 = arith.cmpf oge, %5, %6 : vector<16x128xf32>
    %cst_6 = arith.constant 2.000000e-01 : f32
    %8 = vector.broadcast %cst_6 : f32 to vector<16x128xf32>
    %9 = arith.mulf %8, %5 : vector<16x128xf32>
    %10 = arith.select %7, %5, %9 : vector<16x128xi1>, vector<16x128xf32>
    %11 = arith.truncf %10 : vector<16x128xf32> to vector<16x128xbf16>
    %c0_7 = arith.constant 0 : index
    %c0_8 = arith.constant 0 : index
    %12 = vector.load %arg4[%c0_7, %c0_8] : memref<16x128xbf16, #tpu.memory_space<vmem>>, vector<16x128xbf16>
    tpu.vector_store %arg4[%c0_7, %c0_8], %11 {strides = array<i32>} : memref<16x128xbf16, #tpu.memory_space<vmem>>, vector<16x128xbf16>,
    return
  }
  func.func @transform_0(%arg0: i32) -> (i32, i32) {
    %c0_i32 = arith.constant 0 : i32
    %c0_i32_0 = arith.constant 0 : i32
    %c0_i32_1 = arith.constant 0 : i32
    return %c0_i32, %c0_i32_0 : i32, i32
  }
  func.func @transform_1(%arg0: i32) -> (i32, i32) {
    %c0_i32 = arith.constant 0 : i32
    %c0_i32_0 = arith.constant 0 : i32
    return %c0_i32, %arg0 : i32, i32
  }
  func.func @transform_2(%arg0: i32) -> (i32, i32) {
    %c0_i32 = arith.constant 0 : i32
    %c0_i32_0 = arith.constant 0 : i32
    %c0_i32_1 = arith.constant 0 : i32
    return %c0_i32, %c0_i32_0 : i32, i32
  }
  func.func @transform_3(%arg0: i32) -> (i32, i32) {
    %c0_i32 = arith.constant 0 : i32
    %c0_i32_0 = arith.constant 0 : i32
    return %c0_i32, %arg0 : i32, i32
  }
}

module attributes {stable_mosaic.version = 11 : i64} {
  func.func @_mm_kernel(%arg0: i32, %arg1: memref<16x80xbf16, #tpu.memory_space<vmem>>, %arg2: memref<80x512xbf16, #tpu.memory_space<vmem>>, %arg3: memref<1x512xf32, #tpu.memory_space<vmem>>, %arg4: memref<16x512xf32, #tpu.memory_space<vmem>>) attributes {dimension_semantics = [#tpu.dimension_semantics<parallel>], iteration_bounds = array<i64: 1>, scalar_prefetch = 0 : i64, scratch_operands = 0 : i64, tpu.core_type = #tpu.core_type<tc>, window_params = [{pipeline_mode = #tpu.pipeline_mode<synchronous>, transform_indices = @transform_0, window_bounds = array<i64: 16, 80>}, {transform_indices = @transform_1, window_bounds = array<i64: 80, 512>}, {transform_indices = @transform_2, window_bounds = array<i64: 1, 512>}, {transform_indices = @transform_3, window_bounds = array<i64: 16, 512>}]} {
    %c0 = arith.constant 0 : index
    %c0_0 = arith.constant 0 : index
    %0 = vector.load %arg1[%c0, %c0_0] : memref<16x80xbf16, #tpu.memory_space<vmem>>, vector<16x80xbf16>
    %c0_1 = arith.constant 0 : index
    %c0_2 = arith.constant 0 : index
    %1 = vector.load %arg2[%c0_1, %c0_2] : memref<80x512xbf16, #tpu.memory_space<vmem>>, vector<80x512xbf16>
    %cst = arith.constant dense<0.000000e+00> : vector<16x512xf32>
    %2 = tpu.matmul %0, %1, %cst {dimension_numbers = #tpu.dot_dimension_numbers<[1], [0], [0], [1], [0, 0, 1, 1], [], []>} : vector<16x80xbf16>, vector<80x512xbf16>, vector<16x512xf32> -> vector<16x512xf32>
    %c0_3 = arith.constant 0 : index
    %c0_4 = arith.constant 0 : index
    %3 = vector.load %arg3[%c0_3, %c0_4] : memref<1x512xf32, #tpu.memory_space<vmem>>, vector<1x512xf32>
    %4 = vector.broadcast %3 : vector<1x512xf32> to vector<16x512xf32>
    %5 = arith.addf %2, %4 : vector<16x512xf32>
    %c0_5 = arith.constant 0 : index
    %c0_6 = arith.constant 0 : index
    %6 = vector.load %arg4[%c0_5, %c0_6] : memref<16x512xf32, #tpu.memory_space<vmem>>, vector<16x512xf32>
    tpu.vector_store %arg4[%c0_5, %c0_6], %5 {strides = array<i32>} : memref<16x512xf32, #tpu.memory_space<vmem>>, vector<16x512xf32>,
    return
  }
  func.func @transform_0(%arg0: i32) -> (i32, i32) {
    %c0_i32 = arith.constant 0 : i32
    %c0_i32_0 = arith.constant 0 : i32
    %c0_i32_1 = arith.constant 0 : i32
    return %c0_i32, %c0_i32_0 : i32, i32
  }
  func.func @transform_1(%arg0: i32) -> (i32, i32) {
    %c0_i32 = arith.constant 0 : i32
    %c0_i32_0 = arith.constant 0 : i32
    return %c0_i32, %arg0 : i32, i32
  }
  func.func @transform_2(%arg0: i32) -> (i32, i32) {
    %c0_i32 = arith.constant 0 : i32
    %c0_i32_0 = arith.constant 0 : i32
    return %c0_i32, %arg0 : i32, i32
  }
  func.func @transform_3(%arg0: i32) -> (i32, i32) {
    %c0_i32 = arith.constant 0 : i32
    %c0_i32_0 = arith.constant 0 : i32
    return %c0_i32, %arg0 : i32, i32
  }
}

module attributes {stable_mosaic.version = 11 : i64} {
  func.func @_lstm_kernel(%arg0: i32, %arg1: memref<8x2x512xf32, #tpu.memory_space<vmem>>, %arg2: memref<128x512xbf16, #tpu.memory_space<vmem>>, %arg3: memref<8x2x128xbf16, #tpu.memory_space<vmem>>, %arg4: memref<2x128xf32, #tpu.memory_space<vmem>>, %arg5: memref<2x128xf32, #tpu.memory_space<vmem>>) attributes {dimension_semantics = [#tpu.dimension_semantics<arbitrary>], iteration_bounds = array<i64: 1>, scalar_prefetch = 0 : i64, scratch_operands = 2 : i64, tpu.core_type = #tpu.core_type<tc>, window_params = [{pipeline_mode = #tpu.pipeline_mode<synchronous>, transform_indices = @transform_0, window_bounds = array<i64: 8, 2, 512>}, {pipeline_mode = #tpu.pipeline_mode<synchronous>, transform_indices = @transform_1, window_bounds = array<i64: 128, 512>}, {pipeline_mode = #tpu.pipeline_mode<synchronous>, transform_indices = @transform_2, window_bounds = array<i64: 8, 2, 128>}]} {
    %cst = arith.constant 0.000000e+00 : f32
    %0 = vector.broadcast %cst : f32 to vector<2x128xf32>
    %c0 = arith.constant 0 : index
    %c0_0 = arith.constant 0 : index
    %1 = vector.load %arg4[%c0, %c0_0] : memref<2x128xf32, #tpu.memory_space<vmem>>, vector<2x128xf32>
    tpu.vector_store %arg4[%c0, %c0_0], %0 {strides = array<i32>} : memref<2x128xf32, #tpu.memory_space<vmem>>, vector<2x128xf32>,
    %cst_1 = arith.constant 0.000000e+00 : f32
    %2 = vector.broadcast %cst_1 : f32 to vector<2x128xf32>
    %c0_2 = arith.constant 0 : index
    %c0_3 = arith.constant 0 : index
    %3 = vector.load %arg5[%c0_2, %c0_3] : memref<2x128xf32, #tpu.memory_space<vmem>>, vector<2x128xf32>
    tpu.vector_store %arg5[%c0_2, %c0_3], %2 {strides = array<i32>} : memref<2x128xf32, #tpu.memory_space<vmem>>, vector<2x128xf32>,
    %c0_i32 = arith.constant 0 : i32
    %c8_i32 = arith.constant 8 : i32
    %4 = arith.addi %c0_i32, %c8_i32 : i32
    %c1_i32 = arith.constant 1 : i32
    scf.for %arg6 = %c0_i32 to %4 step %c1_i32  : i32 {
      %5 = arith.index_cast %arg6 : i32 to index
      %c0_5 = arith.constant 0 : index
      %c0_6 = arith.constant 0 : index
      %6 = vector.load %arg1[%5, %c0_5, %c0_6] : memref<8x2x512xf32, #tpu.memory_space<vmem>>, vector<1x2x512xf32>
      %7 = vector.shape_cast %6 : vector<1x2x512xf32> to vector<2x512xf32>
      %c0_7 = arith.constant 0 : index
      %c0_8 = arith.constant 0 : index
      %8 = vector.load %arg4[%c0_7, %c0_8] : memref<2x128xf32, #tpu.memory_space<vmem>>, vector<2x128xf32>
      %9 = arith.truncf %8 : vector<2x128xf32> to vector<2x128xbf16>
      %c0_9 = arith.constant 0 : index
      %c0_10 = arith.constant 0 : index
      %10 = vector.load %arg2[%c0_9, %c0_10] : memref<128x512xbf16, #tpu.memory_space<vmem>>, vector<128x512xbf16>
      %cst_11 = arith.constant dense<0.000000e+00> : vector<2x512xf32>
      %11 = tpu.matmul %9, %10, %cst_11 {dimension_numbers = #tpu.dot_dimension_numbers<[1], [0], [0], [1], [0, 0, 1, 1], [], []>} : vector<2x128xbf16>, vector<128x512xbf16>, vector<2x512xf32> -> vector<2x512xf32>
      %12 = arith.addf %7, %11 : vector<2x512xf32>
      %13 = vector.extract_strided_slice %12 {offsets = [0, 0], sizes = [2, 128], strides = [1, 1]} : vector<2x512xf32> to vector<2x128xf32>
      %14 = arith.negf %13 : vector<2x128xf32>
      %15 = math.exp %14 : vector<2x128xf32>
      %cst_12 = arith.constant 1.000000e+00 : f32
      %16 = vector.broadcast %cst_12 : f32 to vector<2x128xf32>
      %17 = arith.addf %16, %15 : vector<2x128xf32>
      %18 = arith.divf %16, %17 : vector<2x128xf32>
      %19 = vector.extract_strided_slice %12 {offsets = [0, 128], sizes = [2, 128], strides = [1, 1]} : vector<2x512xf32> to vector<2x128xf32>
      %20 = arith.negf %19 : vector<2x128xf32>
      %21 = math.exp %20 : vector<2x128xf32>
      %cst_13 = arith.constant 1.000000e+00 : f32
      %22 = vector.broadcast %cst_13 : f32 to vector<2x128xf32>
      %23 = arith.addf %22, %21 : vector<2x128xf32>
      %24 = arith.divf %22, %23 : vector<2x128xf32>
      %25 = vector.extract_strided_slice %12 {offsets = [0, 256], sizes = [2, 128], strides = [1, 1]} : vector<2x512xf32> to vector<2x128xf32>
      %26 = math.tanh %25 : vector<2x128xf32>
      %27 = vector.extract_strided_slice %12 {offsets = [0, 384], sizes = [2, 128], strides = [1, 1]} : vector<2x512xf32> to vector<2x128xf32>
      %28 = arith.negf %27 : vector<2x128xf32>
      %29 = math.exp %28 : vector<2x128xf32>
      %cst_14 = arith.constant 1.000000e+00 : f32
      %30 = vector.broadcast %cst_14 : f32 to vector<2x128xf32>
      %31 = arith.addf %30, %29 : vector<2x128xf32>
      %32 = arith.divf %30, %31 : vector<2x128xf32>
      %c0_15 = arith.constant 0 : index
      %c0_16 = arith.constant 0 : index
      %33 = vector.load %arg5[%c0_15, %c0_16] : memref<2x128xf32, #tpu.memory_space<vmem>>, vector<2x128xf32>
      %34 = arith.mulf %24, %33 : vector<2x128xf32>
      %35 = arith.mulf %18, %26 : vector<2x128xf32>
      %36 = arith.addf %34, %35 : vector<2x128xf32>
      %37 = math.tanh %36 : vector<2x128xf32>
      %38 = arith.mulf %32, %37 : vector<2x128xf32>
      %c0_17 = arith.constant 0 : index
      %c0_18 = arith.constant 0 : index
      %39 = vector.load %arg5[%c0_17, %c0_18] : memref<2x128xf32, #tpu.memory_space<vmem>>, vector<2x128xf32>
      tpu.vector_store %arg5[%c0_17, %c0_18], %36 {strides = array<i32>} : memref<2x128xf32, #tpu.memory_space<vmem>>, vector<2x128xf32>,
      %c0_19 = arith.constant 0 : index
      %c0_20 = arith.constant 0 : index
      %40 = vector.load %arg4[%c0_19, %c0_20] : memref<2x128xf32, #tpu.memory_space<vmem>>, vector<2x128xf32>
      tpu.vector_store %arg4[%c0_19, %c0_20], %38 {strides = array<i32>} : memref<2x128xf32, #tpu.memory_space<vmem>>, vector<2x128xf32>,
      %41 = arith.truncf %38 : vector<2x128xf32> to vector<2x128xbf16>
      %42 = arith.index_cast %arg6 : i32 to index
      %c0_21 = arith.constant 0 : index
      %c0_22 = arith.constant 0 : index
      %43 = vector.load %arg3[%42, %c0_21, %c0_22] : memref<8x2x128xbf16, #tpu.memory_space<vmem>>, vector<1x2x128xbf16>
      %44 = vector.shape_cast %43 : vector<1x2x128xbf16> to vector<2x128xbf16>
      %45 = vector.shape_cast %41 : vector<2x128xbf16> to vector<1x2x128xbf16>
      tpu.vector_store %arg3[%42, %c0_21, %c0_22], %45 {strides = array<i32>} : memref<8x2x128xbf16, #tpu.memory_space<vmem>>, vector<1x2x128xbf16>,
    }
    %c8_i32_4 = arith.constant 8 : i32
    return
  }
  func.func @transform_0(%arg0: i32) -> (i32, i32, i32) {
    %c0_i32 = arith.constant 0 : i32
    %c0_i32_0 = arith.constant 0 : i32
    %c0_i32_1 = arith.constant 0 : i32
    %c0_i32_2 = arith.constant 0 : i32
    return %c0_i32, %c0_i32_0, %c0_i32_1 : i32, i32, i32
  }
  func.func @transform_1(%arg0: i32) -> (i32, i32) {
    %c0_i32 = arith.constant 0 : i32
    %c0_i32_0 = arith.constant 0 : i32
    %c0_i32_1 = arith.constant 0 : i32
    return %c0_i32, %c0_i32_0 : i32, i32
  }
  func.func @transform_2(%arg0: i32) -> (i32, i32, i32) {
    %c0_i32 = arith.constant 0 : i32
    %c0_i32_0 = arith.constant 0 : i32
    %c0_i32_1 = arith.constant 0 : i32
    %c0_i32_2 = arith.constant 0 : i32
    return %c0_i32, %c0_i32_0, %c0_i32_1 : i32, i32, i32
  }
}

module attributes {stable_mosaic.version = 11 : i64} {
  func.func @_mm_kernel(%arg0: i32, %arg1: memref<16x128xbf16, #tpu.memory_space<vmem>>, %arg2: memref<128x128xbf16, #tpu.memory_space<vmem>>, %arg3: memref<1x128xf32, #tpu.memory_space<vmem>>, %arg4: memref<16x128xbf16, #tpu.memory_space<vmem>>) attributes {dimension_semantics = [#tpu.dimension_semantics<parallel>], iteration_bounds = array<i64: 1>, scalar_prefetch = 0 : i64, scratch_operands = 0 : i64, tpu.core_type = #tpu.core_type<tc>, window_params = [{pipeline_mode = #tpu.pipeline_mode<synchronous>, transform_indices = @transform_0, window_bounds = array<i64: 16, 128>}, {transform_indices = @transform_1, window_bounds = array<i64: 128, 128>}, {transform_indices = @transform_2, window_bounds = array<i64: 1, 128>}, {transform_indices = @transform_3, window_bounds = array<i64: 16, 128>}]} {
    %c0 = arith.constant 0 : index
    %c0_0 = arith.constant 0 : index
    %0 = vector.load %arg1[%c0, %c0_0] : memref<16x128xbf16, #tpu.memory_space<vmem>>, vector<16x128xbf16>
    %c0_1 = arith.constant 0 : index
    %c0_2 = arith.constant 0 : index
    %1 = vector.load %arg2[%c0_1, %c0_2] : memref<128x128xbf16, #tpu.memory_space<vmem>>, vector<128x128xbf16>
    %cst = arith.constant dense<0.000000e+00> : vector<16x128xf32>
    %2 = tpu.matmul %0, %1, %cst {dimension_numbers = #tpu.dot_dimension_numbers<[1], [0], [0], [1], [0, 0, 1, 1], [], []>} : vector<16x128xbf16>, vector<128x128xbf16>, vector<16x128xf32> -> vector<16x128xf32>
    %c0_3 = arith.constant 0 : index
    %c0_4 = arith.constant 0 : index
    %3 = vector.load %arg3[%c0_3, %c0_4] : memref<1x128xf32, #tpu.memory_space<vmem>>, vector<1x128xf32>
    %4 = vector.broadcast %3 : vector<1x128xf32> to vector<16x128xf32>
    %5 = arith.addf %2, %4 : vector<16x128xf32>
    %cst_5 = arith.constant 0.000000e+00 : f32
    %6 = vector.broadcast %cst_5 : f32 to vector<16x128xf32>
    %7 = arith.cmpf oge, %5, %6 : vector<16x128xf32>
    %cst_6 = arith.constant 2.000000e-01 : f32
    %8 = vector.broadcast %cst_6 : f32 to vector<16x128xf32>
    %9 = arith.mulf %8, %5 : vector<16x128xf32>
    %10 = arith.select %7, %5, %9 : vector<16x128xi1>, vector<16x128xf32>
    %11 = arith.truncf %10 : vector<16x128xf32> to vector<16x128xbf16>
    %c0_7 = arith.constant 0 : index
    %c0_8 = arith.constant 0 : index
    %12 = vector.load %arg4[%c0_7, %c0_8] : memref<16x128xbf16, #tpu.memory_space<vmem>>, vector<16x128xbf16>
    tpu.vector_store %arg4[%c0_7, %c0_8], %11 {strides = array<i32>} : memref<16x128xbf16, #tpu.memory_space<vmem>>, vector<16x128xbf16>,
    return
  }
  func.func @transform_0(%arg0: i32) -> (i32, i32) {
    %c0_i32 = arith.constant 0 : i32
    %c0_i32_0 = arith.constant 0 : i32
    %c0_i32_1 = arith.constant 0 : i32
    return %c0_i32, %c0_i32_0 : i32, i32
  }
  func.func @transform_1(%arg0: i32) -> (i32, i32) {
    %c0_i32 = arith.constant 0 : i32
    %c0_i32_0 = arith.constant 0 : i32
    return %c0_i32, %arg0 : i32, i32
  }
  func.func @transform_2(%arg0: i32) -> (i32, i32) {
    %c0_i32 = arith.constant 0 : i32
    %c0_i32_0 = arith.constant 0 : i32
    return %c0_i32, %arg0 : i32, i32
  }
  func.func @transform_3(%arg0: i32) -> (i32, i32) {
    %c0_i32 = arith.constant 0 : i32
    %c0_i32_0 = arith.constant 0 : i32
    return %c0_i32, %arg0 : i32, i32
  }
}

module attributes {stable_mosaic.version = 11 : i64} {
  func.func @_mm_kernel(%arg0: i32, %arg1: memref<16x288xbf16, #tpu.memory_space<vmem>>, %arg2: memref<288x128xbf16, #tpu.memory_space<vmem>>, %arg3: memref<16x1xf32, #tpu.memory_space<vmem>>, %arg4: memref<16x128xbf16, #tpu.memory_space<vmem>>) attributes {dimension_semantics = [#tpu.dimension_semantics<parallel>], iteration_bounds = array<i64: 1>, scalar_prefetch = 0 : i64, scratch_operands = 0 : i64, tpu.core_type = #tpu.core_type<tc>, window_params = [{pipeline_mode = #tpu.pipeline_mode<synchronous>, transform_indices = @transform_0, window_bounds = array<i64: 16, 288>}, {transform_indices = @transform_1, window_bounds = array<i64: 288, 128>}, {pipeline_mode = #tpu.pipeline_mode<synchronous>, transform_indices = @transform_2, window_bounds = array<i64: 16, 1>}, {transform_indices = @transform_3, window_bounds = array<i64: 16, 128>}]} {
    %c0 = arith.constant 0 : index
    %c0_0 = arith.constant 0 : index
    %0 = vector.load %arg1[%c0, %c0_0] : memref<16x288xbf16, #tpu.memory_space<vmem>>, vector<16x288xbf16>
    %c0_1 = arith.constant 0 : index
    %c0_2 = arith.constant 0 : index
    %1 = vector.load %arg2[%c0_1, %c0_2] : memref<288x128xbf16, #tpu.memory_space<vmem>>, vector<288x128xbf16>
    %cst = arith.constant dense<0.000000e+00> : vector<16x128xf32>
    %2 = tpu.matmul %0, %1, %cst {dimension_numbers = #tpu.dot_dimension_numbers<[1], [0], [0], [1], [0, 0, 1, 1], [], []>} : vector<16x288xbf16>, vector<288x128xbf16>, vector<16x128xf32> -> vector<16x128xf32>
    %c0_3 = arith.constant 0 : index
    %c0_4 = arith.constant 0 : index
    %3 = vector.load %arg3[%c0_3, %c0_4] : memref<16x1xf32, #tpu.memory_space<vmem>>, vector<16x1xf32>
    %4 = vector.broadcast %3 : vector<16x1xf32> to vector<16x128xf32>
    %5 = arith.addf %2, %4 : vector<16x128xf32>
    %cst_5 = arith.constant 0.000000e+00 : f32
    %6 = vector.broadcast %cst_5 : f32 to vector<16x128xf32>
    %7 = arith.cmpf oge, %5, %6 : vector<16x128xf32>
    %cst_6 = arith.constant 2.000000e-01 : f32
    %8 = vector.broadcast %cst_6 : f32 to vector<16x128xf32>
    %9 = arith.mulf %8, %5 : vector<16x128xf32>
    %10 = arith.select %7, %5, %9 : vector<16x128xi1>, vector<16x128xf32>
    %11 = arith.truncf %10 : vector<16x128xf32> to vector<16x128xbf16>
    %c0_7 = arith.constant 0 : index
    %c0_8 = arith.constant 0 : index
    %12 = vector.load %arg4[%c0_7, %c0_8] : memref<16x128xbf16, #tpu.memory_space<vmem>>, vector<16x128xbf16>
    tpu.vector_store %arg4[%c0_7, %c0_8], %11 {strides = array<i32>} : memref<16x128xbf16, #tpu.memory_space<vmem>>, vector<16x128xbf16>,
    return
  }
  func.func @transform_0(%arg0: i32) -> (i32, i32) {
    %c0_i32 = arith.constant 0 : i32
    %c0_i32_0 = arith.constant 0 : i32
    %c0_i32_1 = arith.constant 0 : i32
    return %c0_i32, %c0_i32_0 : i32, i32
  }
  func.func @transform_1(%arg0: i32) -> (i32, i32) {
    %c0_i32 = arith.constant 0 : i32
    %c0_i32_0 = arith.constant 0 : i32
    return %c0_i32, %arg0 : i32, i32
  }
  func.func @transform_2(%arg0: i32) -> (i32, i32) {
    %c0_i32 = arith.constant 0 : i32
    %c0_i32_0 = arith.constant 0 : i32
    %c0_i32_1 = arith.constant 0 : i32
    return %c0_i32, %c0_i32_0 : i32, i32
  }
  func.func @transform_3(%arg0: i32) -> (i32, i32) {
    %c0_i32 = arith.constant 0 : i32
    %c0_i32_0 = arith.constant 0 : i32
    return %c0_i32, %arg0 : i32, i32
  }
}

module attributes {stable_mosaic.version = 11 : i64} {
  func.func @_mm_kernel(%arg0: i32, %arg1: memref<8x96xbf16, #tpu.memory_space<vmem>>, %arg2: memref<96x128xbf16, #tpu.memory_space<vmem>>, %arg3: memref<8x1xf32, #tpu.memory_space<vmem>>, %arg4: memref<8x128xbf16, #tpu.memory_space<vmem>>) attributes {dimension_semantics = [#tpu.dimension_semantics<parallel>], iteration_bounds = array<i64: 1>, scalar_prefetch = 0 : i64, scratch_operands = 0 : i64, tpu.core_type = #tpu.core_type<tc>, window_params = [{pipeline_mode = #tpu.pipeline_mode<synchronous>, transform_indices = @transform_0, window_bounds = array<i64: 8, 96>}, {transform_indices = @transform_1, window_bounds = array<i64: 96, 128>}, {pipeline_mode = #tpu.pipeline_mode<synchronous>, transform_indices = @transform_2, window_bounds = array<i64: 8, 1>}, {transform_indices = @transform_3, window_bounds = array<i64: 8, 128>}]} {
    %c0 = arith.constant 0 : index
    %c0_0 = arith.constant 0 : index
    %0 = vector.load %arg1[%c0, %c0_0] : memref<8x96xbf16, #tpu.memory_space<vmem>>, vector<8x96xbf16>
    %c0_1 = arith.constant 0 : index
    %c0_2 = arith.constant 0 : index
    %1 = vector.load %arg2[%c0_1, %c0_2] : memref<96x128xbf16, #tpu.memory_space<vmem>>, vector<96x128xbf16>
    %cst = arith.constant dense<0.000000e+00> : vector<8x128xf32>
    %2 = tpu.matmul %0, %1, %cst {dimension_numbers = #tpu.dot_dimension_numbers<[1], [0], [0], [1], [0, 0, 1, 1], [], []>} : vector<8x96xbf16>, vector<96x128xbf16>, vector<8x128xf32> -> vector<8x128xf32>
    %c0_3 = arith.constant 0 : index
    %c0_4 = arith.constant 0 : index
    %3 = vector.load %arg3[%c0_3, %c0_4] : memref<8x1xf32, #tpu.memory_space<vmem>>, vector<8x1xf32>
    %4 = vector.broadcast %3 : vector<8x1xf32> to vector<8x128xf32>
    %5 = arith.addf %2, %4 : vector<8x128xf32>
    %cst_5 = arith.constant 0.000000e+00 : f32
    %6 = vector.broadcast %cst_5 : f32 to vector<8x128xf32>
    %7 = arith.cmpf oge, %5, %6 : vector<8x128xf32>
    %cst_6 = arith.constant 2.000000e-01 : f32
    %8 = vector.broadcast %cst_6 : f32 to vector<8x128xf32>
    %9 = arith.mulf %8, %5 : vector<8x128xf32>
    %10 = arith.select %7, %5, %9 : vector<8x128xi1>, vector<8x128xf32>
    %11 = arith.truncf %10 : vector<8x128xf32> to vector<8x128xbf16>
    %c0_7 = arith.constant 0 : index
    %c0_8 = arith.constant 0 : index
    %12 = vector.load %arg4[%c0_7, %c0_8] : memref<8x128xbf16, #tpu.memory_space<vmem>>, vector<8x128xbf16>
    tpu.vector_store %arg4[%c0_7, %c0_8], %11 {strides = array<i32>} : memref<8x128xbf16, #tpu.memory_space<vmem>>, vector<8x128xbf16>,
    return
  }
  func.func @transform_0(%arg0: i32) -> (i32, i32) {
    %c0_i32 = arith.constant 0 : i32
    %c0_i32_0 = arith.constant 0 : i32
    %c0_i32_1 = arith.constant 0 : i32
    return %c0_i32, %c0_i32_0 : i32, i32
  }
  func.func @transform_1(%arg0: i32) -> (i32, i32) {
    %c0_i32 = arith.constant 0 : i32
    %c0_i32_0 = arith.constant 0 : i32
    return %c0_i32, %arg0 : i32, i32
  }
  func.func @transform_2(%arg0: i32) -> (i32, i32) {
    %c0_i32 = arith.constant 0 : i32
    %c0_i32_0 = arith.constant 0 : i32
    %c0_i32_1 = arith.constant 0 : i32
    return %c0_i32, %c0_i32_0 : i32, i32
  }
  func.func @transform_3(%arg0: i32) -> (i32, i32) {
    %c0_i32 = arith.constant 0 : i32
    %c0_i32_0 = arith.constant 0 : i32
    return %c0_i32, %arg0 : i32, i32
  }
}

module attributes {stable_mosaic.version = 11 : i64} {
  func.func @_mm_kernel(%arg0: i32, %arg1: memref<8x144xbf16, #tpu.memory_space<vmem>>, %arg2: memref<144x256xbf16, #tpu.memory_space<vmem>>, %arg3: memref<8x1xf32, #tpu.memory_space<vmem>>, %arg4: memref<8x256xbf16, #tpu.memory_space<vmem>>) attributes {dimension_semantics = [#tpu.dimension_semantics<parallel>], iteration_bounds = array<i64: 1>, scalar_prefetch = 0 : i64, scratch_operands = 0 : i64, tpu.core_type = #tpu.core_type<tc>, window_params = [{pipeline_mode = #tpu.pipeline_mode<synchronous>, transform_indices = @transform_0, window_bounds = array<i64: 8, 144>}, {transform_indices = @transform_1, window_bounds = array<i64: 144, 256>}, {pipeline_mode = #tpu.pipeline_mode<synchronous>, transform_indices = @transform_2, window_bounds = array<i64: 8, 1>}, {transform_indices = @transform_3, window_bounds = array<i64: 8, 256>}]} {
    %c0 = arith.constant 0 : index
    %c0_0 = arith.constant 0 : index
    %0 = vector.load %arg1[%c0, %c0_0] : memref<8x144xbf16, #tpu.memory_space<vmem>>, vector<8x144xbf16>
    %c0_1 = arith.constant 0 : index
    %c0_2 = arith.constant 0 : index
    %1 = vector.load %arg2[%c0_1, %c0_2] : memref<144x256xbf16, #tpu.memory_space<vmem>>, vector<144x256xbf16>
    %cst = arith.constant dense<0.000000e+00> : vector<8x256xf32>
    %2 = tpu.matmul %0, %1, %cst {dimension_numbers = #tpu.dot_dimension_numbers<[1], [0], [0], [1], [0, 0, 1, 1], [], []>} : vector<8x144xbf16>, vector<144x256xbf16>, vector<8x256xf32> -> vector<8x256xf32>
    %c0_3 = arith.constant 0 : index
    %c0_4 = arith.constant 0 : index
    %3 = vector.load %arg3[%c0_3, %c0_4] : memref<8x1xf32, #tpu.memory_space<vmem>>, vector<8x1xf32>
    %4 = vector.broadcast %3 : vector<8x1xf32> to vector<8x256xf32>
    %5 = arith.addf %2, %4 : vector<8x256xf32>
    %cst_5 = arith.constant 0.000000e+00 : f32
    %6 = vector.broadcast %cst_5 : f32 to vector<8x256xf32>
    %7 = arith.cmpf oge, %5, %6 : vector<8x256xf32>
    %cst_6 = arith.constant 2.000000e-01 : f32
    %8 = vector.broadcast %cst_6 : f32 to vector<8x256xf32>
    %9 = arith.mulf %8, %5 : vector<8x256xf32>
    %10 = arith.select %7, %5, %9 : vector<8x256xi1>, vector<8x256xf32>
    %11 = arith.truncf %10 : vector<8x256xf32> to vector<8x256xbf16>
    %c0_7 = arith.constant 0 : index
    %c0_8 = arith.constant 0 : index
    %12 = vector.load %arg4[%c0_7, %c0_8] : memref<8x256xbf16, #tpu.memory_space<vmem>>, vector<8x256xbf16>
    tpu.vector_store %arg4[%c0_7, %c0_8], %11 {strides = array<i32>} : memref<8x256xbf16, #tpu.memory_space<vmem>>, vector<8x256xbf16>,
    return
  }
  func.func @transform_0(%arg0: i32) -> (i32, i32) {
    %c0_i32 = arith.constant 0 : i32
    %c0_i32_0 = arith.constant 0 : i32
    %c0_i32_1 = arith.constant 0 : i32
    return %c0_i32, %c0_i32_0 : i32, i32
  }
  func.func @transform_1(%arg0: i32) -> (i32, i32) {
    %c0_i32 = arith.constant 0 : i32
    %c0_i32_0 = arith.constant 0 : i32
    return %c0_i32, %arg0 : i32, i32
  }
  func.func @transform_2(%arg0: i32) -> (i32, i32) {
    %c0_i32 = arith.constant 0 : i32
    %c0_i32_0 = arith.constant 0 : i32
    %c0_i32_1 = arith.constant 0 : i32
    return %c0_i32, %c0_i32_0 : i32, i32
  }
  func.func @transform_3(%arg0: i32) -> (i32, i32) {
    %c0_i32 = arith.constant 0 : i32
    %c0_i32_0 = arith.constant 0 : i32
    return %c0_i32, %arg0 : i32, i32
  }
}

module attributes {stable_mosaic.version = 11 : i64} {
  func.func @_mm_kernel(%arg0: i32, %arg1: memref<8x72xbf16, #tpu.memory_space<vmem>>, %arg2: memref<72x384xbf16, #tpu.memory_space<vmem>>, %arg3: memref<8x1xf32, #tpu.memory_space<vmem>>, %arg4: memref<8x384xbf16, #tpu.memory_space<vmem>>) attributes {dimension_semantics = [#tpu.dimension_semantics<parallel>], iteration_bounds = array<i64: 1>, scalar_prefetch = 0 : i64, scratch_operands = 0 : i64, tpu.core_type = #tpu.core_type<tc>, window_params = [{pipeline_mode = #tpu.pipeline_mode<synchronous>, transform_indices = @transform_0, window_bounds = array<i64: 8, 72>}, {transform_indices = @transform_1, window_bounds = array<i64: 72, 384>}, {pipeline_mode = #tpu.pipeline_mode<synchronous>, transform_indices = @transform_2, window_bounds = array<i64: 8, 1>}, {transform_indices = @transform_3, window_bounds = array<i64: 8, 384>}]} {
    %c0 = arith.constant 0 : index
    %c0_0 = arith.constant 0 : index
    %0 = vector.load %arg1[%c0, %c0_0] : memref<8x72xbf16, #tpu.memory_space<vmem>>, vector<8x72xbf16>
    %c0_1 = arith.constant 0 : index
    %c0_2 = arith.constant 0 : index
    %1 = vector.load %arg2[%c0_1, %c0_2] : memref<72x384xbf16, #tpu.memory_space<vmem>>, vector<72x384xbf16>
    %cst = arith.constant dense<0.000000e+00> : vector<8x384xf32>
    %2 = tpu.matmul %0, %1, %cst {dimension_numbers = #tpu.dot_dimension_numbers<[1], [0], [0], [1], [0, 0, 1, 1], [], []>} : vector<8x72xbf16>, vector<72x384xbf16>, vector<8x384xf32> -> vector<8x384xf32>
    %c0_3 = arith.constant 0 : index
    %c0_4 = arith.constant 0 : index
    %3 = vector.load %arg3[%c0_3, %c0_4] : memref<8x1xf32, #tpu.memory_space<vmem>>, vector<8x1xf32>
    %4 = vector.broadcast %3 : vector<8x1xf32> to vector<8x384xf32>
    %5 = arith.addf %2, %4 : vector<8x384xf32>
    %cst_5 = arith.constant 0.000000e+00 : f32
    %6 = vector.broadcast %cst_5 : f32 to vector<8x384xf32>
    %7 = arith.cmpf oge, %5, %6 : vector<8x384xf32>
    %cst_6 = arith.constant 2.000000e-01 : f32
    %8 = vector.broadcast %cst_6 : f32 to vector<8x384xf32>
    %9 = arith.mulf %8, %5 : vector<8x384xf32>
    %10 = arith.select %7, %5, %9 : vector<8x384xi1>, vector<8x384xf32>
    %11 = arith.truncf %10 : vector<8x384xf32> to vector<8x384xbf16>
    %c0_7 = arith.constant 0 : index
    %c0_8 = arith.constant 0 : index
    %12 = vector.load %arg4[%c0_7, %c0_8] : memref<8x384xbf16, #tpu.memory_space<vmem>>, vector<8x384xbf16>
    tpu.vector_store %arg4[%c0_7, %c0_8], %11 {strides = array<i32>} : memref<8x384xbf16, #tpu.memory_space<vmem>>, vector<8x384xbf16>,
    return
  }
  func.func @transform_0(%arg0: i32) -> (i32, i32) {
    %c0_i32 = arith.constant 0 : i32
    %c0_i32_0 = arith.constant 0 : i32
    %c0_i32_1 = arith.constant 0 : i32
    return %c0_i32, %c0_i32_0 : i32, i32
  }
  func.func @transform_1(%arg0: i32) -> (i32, i32) {
    %c0_i32 = arith.constant 0 : i32
    %c0_i32_0 = arith.constant 0 : i32
    return %c0_i32, %arg0 : i32, i32
  }
  func.func @transform_2(%arg0: i32) -> (i32, i32) {
    %c0_i32 = arith.constant 0 : i32
    %c0_i32_0 = arith.constant 0 : i32
    %c0_i32_1 = arith.constant 0 : i32
    return %c0_i32, %c0_i32_0 : i32, i32
  }
  func.func @transform_3(%arg0: i32) -> (i32, i32) {
    %c0_i32 = arith.constant 0 : i32
    %c0_i32_0 = arith.constant 0 : i32
    return %c0_i32, %arg0 : i32, i32
  }
}

module attributes {stable_mosaic.version = 11 : i64} {
  func.func @_mm_kernel(%arg0: i32, %arg1: memref<8x24xbf16, #tpu.memory_space<vmem>>, %arg2: memref<24x384xbf16, #tpu.memory_space<vmem>>, %arg3: memref<8x1xf32, #tpu.memory_space<vmem>>, %arg4: memref<8x384xf32, #tpu.memory_space<vmem>>) attributes {dimension_semantics = [#tpu.dimension_semantics<parallel>], iteration_bounds = array<i64: 1>, scalar_prefetch = 0 : i64, scratch_operands = 0 : i64, tpu.core_type = #tpu.core_type<tc>, window_params = [{pipeline_mode = #tpu.pipeline_mode<synchronous>, transform_indices = @transform_0, window_bounds = array<i64: 8, 24>}, {transform_indices = @transform_1, window_bounds = array<i64: 24, 384>}, {pipeline_mode = #tpu.pipeline_mode<synchronous>, transform_indices = @transform_2, window_bounds = array<i64: 8, 1>}, {transform_indices = @transform_3, window_bounds = array<i64: 8, 384>}]} {
    %c0 = arith.constant 0 : index
    %c0_0 = arith.constant 0 : index
    %0 = vector.load %arg1[%c0, %c0_0] : memref<8x24xbf16, #tpu.memory_space<vmem>>, vector<8x24xbf16>
    %c0_1 = arith.constant 0 : index
    %c0_2 = arith.constant 0 : index
    %1 = vector.load %arg2[%c0_1, %c0_2] : memref<24x384xbf16, #tpu.memory_space<vmem>>, vector<24x384xbf16>
    %cst = arith.constant dense<0.000000e+00> : vector<8x384xf32>
    %2 = tpu.matmul %0, %1, %cst {dimension_numbers = #tpu.dot_dimension_numbers<[1], [0], [0], [1], [0, 0, 1, 1], [], []>} : vector<8x24xbf16>, vector<24x384xbf16>, vector<8x384xf32> -> vector<8x384xf32>
    %c0_3 = arith.constant 0 : index
    %c0_4 = arith.constant 0 : index
    %3 = vector.load %arg3[%c0_3, %c0_4] : memref<8x1xf32, #tpu.memory_space<vmem>>, vector<8x1xf32>
    %4 = vector.broadcast %3 : vector<8x1xf32> to vector<8x384xf32>
    %5 = arith.addf %2, %4 : vector<8x384xf32>
    %c0_5 = arith.constant 0 : index
    %c0_6 = arith.constant 0 : index
    %6 = vector.load %arg4[%c0_5, %c0_6] : memref<8x384xf32, #tpu.memory_space<vmem>>, vector<8x384xf32>
    tpu.vector_store %arg4[%c0_5, %c0_6], %5 {strides = array<i32>} : memref<8x384xf32, #tpu.memory_space<vmem>>, vector<8x384xf32>,
    return
  }
  func.func @transform_0(%arg0: i32) -> (i32, i32) {
    %c0_i32 = arith.constant 0 : i32
    %c0_i32_0 = arith.constant 0 : i32
    %c0_i32_1 = arith.constant 0 : i32
    return %c0_i32, %c0_i32_0 : i32, i32
  }
  func.func @transform_1(%arg0: i32) -> (i32, i32) {
    %c0_i32 = arith.constant 0 : i32
    %c0_i32_0 = arith.constant 0 : i32
    return %c0_i32, %arg0 : i32, i32
  }
  func.func @transform_2(%arg0: i32) -> (i32, i32) {
    %c0_i32 = arith.constant 0 : i32
    %c0_i32_0 = arith.constant 0 : i32
    %c0_i32_1 = arith.constant 0 : i32
    return %c0_i32, %c0_i32_0 : i32, i32
  }
  func.func @transform_3(%arg0: i32) -> (i32, i32) {
    %c0_i32 = arith.constant 0 : i32
    %c0_i32_0 = arith.constant 0 : i32
    return %c0_i32, %arg0 : i32, i32
  }
}

</mosaic_0001>

<llo_original>
// kernel: mel_clcnn_forward.22
$region0: #{mel_clcnn_forward.22}
  #allocation0 [shape = 'u32[]', space=smem, size = 0x4, offset = 0x4, fixed_abs, tag = 'smem constant byte address 0x4 - core index']
  #allocation1 [shape = 'u32[144,128]{1,0:T(1,128)}', space=vmem, size = 0x12000, scoped, tag = 'internal scratch']
  %s0 = inlined_call_operand.vmem [shape: bf16[8,16], index: 0, kind: input, shape index: {}]
  %s1 = inlined_call_operand.vmem [shape: bf16[16,384], index: 1, kind: input, shape index: {}]
  %s2 = inlined_call_operand.vmem [shape: f32[8,1], index: 2, kind: input, shape index: {}]
  %s3 = inlined_call_operand.vmem [shape: bf16[8,384], index: 3, kind: output, shape index: {}]
  %s4 = sld [smem:[#allocation0]]
  $region22: #{mel_clcnn_forward.22} parent=0
    _
  %s6 = ssub.s32 1, %s4
  %s7 = scalar_select 0, %s6, %s4
  // Predicated region
  $region2: #{mel_clcnn_forward.22} parent=0 // pred_check
    _
  $region3: #{mel_clcnn_forward.22} parent=0 // pred_check_branch
    %9 = sbr.rel (0) target = $region5
  $region4: #{mel_clcnn_forward.22} parent=0 // pred_region
    _
  $region5: #{mel_clcnn_forward.22} parent=0 // pred_fallthru
    _
  // Predicated region
  $region6: #{mel_clcnn_forward.22} parent=0 // pred_check
    _
  $region7: #{mel_clcnn_forward.22} parent=0 // pred_check_branch
    %11 = sbr.rel (0) target = $region9
  $region8: #{mel_clcnn_forward.22} parent=0 // pred_region
    _
  $region9: #{mel_clcnn_forward.22} parent=0 // pred_fallthru
    _
  // Predicated region
  $region10: #{mel_clcnn_forward.22} parent=0 // pred_check
    _
  $region11: #{mel_clcnn_forward.22} parent=0 // pred_check_branch
    %13 = sbr.rel (0) target = $region13
  $region12: #{mel_clcnn_forward.22} parent=0 // pred_region
    _
  $region13: #{mel_clcnn_forward.22} parent=0 // pred_fallthru
    _
  %v15 = vld [vmem:[%s0] sm:$0xf]
  %v16 = vld [vmem:[%s1] sm:$0xff]
  %v17 = vld [vmem:[%s1 + $0x8] sm:$0xf]
  %v18 = vld [vmem:[%s1 + $0xc] sm:$0xff]
  %v19 = vld [vmem:[%s1 + $0x14] sm:$0xf]
  %v20 = vld [vmem:[%s2] sm:$0xff]
  %22 = vset.pattern.permute.xlu0 0
  %23 = vperm.xlu0 %22, %v20
  %v24 = vpop.permute.xlu0 %23
  %v30 = vunpack.c.l.b16 %v16
  %v31 = vunpack.c.h.b16 %v16
  %v32 = vunpack.c.l.b16 %v17
  %v33 = vunpack.c.l.b16 %v18
  %v34 = vunpack.c.h.b16 %v18
  %v35 = vunpack.c.l.b16 %v19
  %v36 = vpack.c.b16 %v33, %v30
  %v37 = vpack.c.b16 %v34, %v31
  %v38 = vpack.c.b16 %v35, %v32
  %vm42 = vcmask 130048
  %v44 = vsel %vm42, %v15, 0
  %46 = vmatprep.subr.bf16.mxu0 0
  %47 = vmatpush1.bf16.msra.mxu0 0
  %48 = vmatprep.subr.bf16.mxu0 0
  %49 = vmatpush1.bf16.msra.mxu0 0
  %50 = vmatprep.subr.bf16.mxu0 0
  %51 = vmatpush1.bf16.msra.mxu0 0
  %52 = vmatprep.subr.bf16.mxu0 0
  %53 = vmatpush1.bf16.msra.mxu0 0
  %54 = vmatprep.subr.bf16.mxu0 0
  %55 = vmatpush1.bf16.msra.mxu0 0
  %56 = vmatprep.subr.bf16.mxu0 0
  %57 = vmatpush1.bf16.msra.mxu0 0
  %58 = vmatprep.subr.bf16.mxu0 0
  %59 = vmatpush1.bf16.msra.mxu0 0
  %60 = vmatprep.subr.bf16.mxu0 %v37
  %61 = vmatpush1.bf16.msra.mxu0 %v36
  %62 = vmatprep.subr.bf16.mxu0 0
  %63 = vmatpush2.bf16.msra.mxu0 0
  %64 = vmatprep.subr.bf16.mxu0 0
  %65 = vmatpush2.bf16.msra.mxu0 0
  %66 = vmatprep.subr.bf16.mxu0 0
  %67 = vmatpush2.bf16.msra.mxu0 0
  %68 = vmatprep.subr.bf16.mxu0 0
  %69 = vmatpush2.bf16.msra.mxu0 0
  %70 = vmatprep.subr.bf16.mxu0 0
  %71 = vmatpush2.bf16.msra.mxu0 0
  %72 = vmatprep.subr.bf16.mxu0 0
  %73 = vmatpush2.bf16.msra.mxu0 0
  %74 = vmatprep.subr.bf16.mxu0 0
  %75 = vmatpush2.bf16.msra.mxu0 0
  %76 = vmatprep.subr.bf16.mxu0 0
  %77 = vmatpush2.bf16.msra.mxu0 0
  %78 = vmatprep.mubr.bf16.mxu0 0
  %79 = vmatmul.mubr.bf16.gmra.mxu0 %v44
  %v80 = vpop.f32.mrf.mxu0
  %v81 = vadd.f32 %v24, %v80
  %v82 = vpop.f32.mrf.mxu0
  %v83 = vadd.f32 %v24, %v82
  %v84 = vpop.f32.mrf.mxu0
  %v85 = vpop.f32.mrf.mxu0
  %86 = vdwg.mxu0
  %87 = vmatprep.subr.bf16.mxu0 0
  %88 = vmatpush1.bf16.msra.mxu0 0
  %89 = vmatprep.subr.bf16.mxu0 0
  %90 = vmatpush1.bf16.msra.mxu0 0
  %91 = vmatprep.subr.bf16.mxu0 0
  %92 = vmatpush1.bf16.msra.mxu0 0
  %93 = vmatprep.subr.bf16.mxu0 0
  %94 = vmatpush1.bf16.msra.mxu0 0
  %95 = vmatprep.subr.bf16.mxu0 0
  %96 = vmatpush1.bf16.msra.mxu0 0
  %97 = vmatprep.subr.bf16.mxu0 0
  %98 = vmatpush1.bf16.msra.mxu0 0
  %99 = vmatprep.subr.bf16.mxu0 0
  %100 = vmatpush1.bf16.msra.mxu0 0
  %101 = vmatprep.subr.bf16.mxu0 0
  %102 = vmatpush1.bf16.msra.mxu0 %v38
  %103 = vmatprep.subr.bf16.mxu0 0
  %104 = vmatpush2.bf16.msra.mxu0 0
  %105 = vmatprep.subr.bf16.mxu0 0
  %106 = vmatpush2.bf16.msra.mxu0 0
  %107 = vmatprep.subr.bf16.mxu0 0
  %108 = vmatpush2.bf16.msra.mxu0 0
  %109 = vmatprep.subr.bf16.mxu0 0
  %110 = vmatpush2.bf16.msra.mxu0 0
  %111 = vmatprep.subr.bf16.mxu0 0
  %112 = vmatpush2.bf16.msra.mxu0 0
  %113 = vmatprep.subr.bf16.mxu0 0
  %114 = vmatpush2.bf16.msra.mxu0 0
  %115 = vmatprep.subr.bf16.mxu0 0
  %116 = vmatpush2.bf16.msra.mxu0 0
  %117 = vmatprep.subr.bf16.mxu0 0
  %118 = vmatpush2.bf16.msra.mxu0 0
  %119 = vmatprep.mubr.bf16.mxu0 0
  %120 = vmatmul.mubr.bf16.gmra.mxu0 %v44
  %v121 = vpop.f32.mrf.mxu0
  %v122 = vadd.f32 %v24, %v121
  %v123 = vpop.f32.mrf.mxu0
  %v124 = vpop.f32.mrf.mxu0
  %v125 = vpop.f32.mrf.mxu0
  %126 = vdwg.mxu0
  %vm127 = vcmp.ge.f32.partialorder %v81, 0.0
  %vm128 = vcmp.ge.f32.partialorder %v83, 0.0
  %vm129 = vcmp.ge.f32.partialorder %v122, 0.0
  %v130 = vmul.f32 %v81, 0.2
  %v131 = vmul.f32 %v83, 0.2
  %v132 = vmul.f32 %v122, 0.2
  %v133 = vsel %vm127, %v81, %v130
  %v134 = vsel %vm128, %v83, %v131
  %v135 = vsel %vm129, %v122, %v132
  %v136 = vpack.c.bf16 %v133, %v133
  %v137 = vpack.c.bf16 %v134, %v134
  %v138 = vpack.c.bf16 %v135, %v135
  %v142 = vunpack.c.l.b16 %v136
  %v143 = vunpack.c.l.b16 %v137
  %v144 = vunpack.c.l.b16 %v138
  %v145 = vpack.c.b16 %v143, %v142
  %v146 = vpack.c.b16 %v144, %v144
  %149 = vst [vmem:[%s3] sm:$0xff] %v145
  %150 = vst [vmem:[%s3 + $0x8] sm:$0xf] %v146
  // Predicated region
  $region14: #{mel_clcnn_forward.22} parent=0 // pred_check
    _
  $region15: #{mel_clcnn_forward.22} parent=0 // pred_check_branch
    %152 = sbr.rel (0) target = $region17
  $region16: #{mel_clcnn_forward.22} parent=0 // pred_region
    _
  $region17: #{mel_clcnn_forward.22} parent=0 // pred_fallthru
    _
  // Predicated region
  $region18: #{mel_clcnn_forward.22} parent=0 // pred_check
    _
  $region19: #{mel_clcnn_forward.22} parent=0 // pred_check_branch
    %154 = sbr.rel (0) target = $region21
  $region20: #{mel_clcnn_forward.22} parent=0 // pred_region
    _
  $region21: #{mel_clcnn_forward.22} parent=0 // pred_fallthru
    _

// kernel: mel_clcnn_forward.23
$region0: #{mel_clcnn_forward.23}
  #allocation0 [shape = 'u32[]', space=smem, size = 0x4, offset = 0x4, fixed_abs, tag = 'smem constant byte address 0x4 - core index']
  #allocation1 [shape = 'u32[144,128]{1,0:T(1,128)}', space=vmem, size = 0x12000, scoped, tag = 'internal scratch']
  %s0 = inlined_call_operand.vmem [shape: bf16[8,40], index: 0, kind: input, shape index: {}]
  %s1 = inlined_call_operand.vmem [shape: bf16[40,384], index: 1, kind: input, shape index: {}]
  %s2 = inlined_call_operand.vmem [shape: f32[8,1], index: 2, kind: input, shape index: {}]
  %s3 = inlined_call_operand.vmem [shape: bf16[8,384], index: 3, kind: output, shape index: {}]
  %s4 = sld [smem:[#allocation0]]
  $region22: #{mel_clcnn_forward.23} parent=0
    _
  %s6 = ssub.s32 1, %s4
  %s7 = scalar_select 0, %s6, %s4
  // Predicated region
  $region2: #{mel_clcnn_forward.23} parent=0 // pred_check
    _
  $region3: #{mel_clcnn_forward.23} parent=0 // pred_check_branch
    %9 = sbr.rel (0) target = $region5
  $region4: #{mel_clcnn_forward.23} parent=0 // pred_region
    _
  $region5: #{mel_clcnn_forward.23} parent=0 // pred_fallthru
    _
  // Predicated region
  $region6: #{mel_clcnn_forward.23} parent=0 // pred_check
    _
  $region7: #{mel_clcnn_forward.23} parent=0 // pred_check_branch
    %11 = sbr.rel (0) target = $region9
  $region8: #{mel_clcnn_forward.23} parent=0 // pred_region
    _
  $region9: #{mel_clcnn_forward.23} parent=0 // pred_fallthru
    _
  // Predicated region
  $region10: #{mel_clcnn_forward.23} parent=0 // pred_check
    _
  $region11: #{mel_clcnn_forward.23} parent=0 // pred_check_branch
    %13 = sbr.rel (0) target = $region13
  $region12: #{mel_clcnn_forward.23} parent=0 // pred_region
    _
  $region13: #{mel_clcnn_forward.23} parent=0 // pred_fallthru
    _
  %v15 = vld [vmem:[%s0] sm:$0xf]
  %v16 = vld [vmem:[%s1] sm:$0xff]
  %v17 = vld [vmem:[%s1 + $0x8] sm:$0xf]
  %v18 = vld [vmem:[%s1 + $0xc] sm:$0xff]
  %v19 = vld [vmem:[%s1 + $0x14] sm:$0xf]
  %v20 = vld [vmem:[%s1 + $0x18] sm:$0xff]
  %v21 = vld [vmem:[%s1 + $0x20] sm:$0xf]
  %v22 = vld [vmem:[%s1 + $0x24] sm:$0xff]
  %v23 = vld [vmem:[%s1 + $0x2c] sm:$0xf]
  %v24 = vld [vmem:[%s1 + $0x30] sm:$0xff]
  %v25 = vld [vmem:[%s1 + $0x38] sm:$0xf]
  %v26 = vld [vmem:[%s2] sm:$0xff]
  %28 = vset.pattern.permute.xlu0 0
  %29 = vperm.xlu0 %28, %v26
  %v30 = vpop.permute.xlu0 %29
  %v42 = vunpack.c.l.b16 %v16
  %v43 = vunpack.c.h.b16 %v16
  %v44 = vunpack.c.l.b16 %v17
  %v45 = vunpack.c.l.b16 %v18
  %v46 = vunpack.c.h.b16 %v18
  %v47 = vunpack.c.l.b16 %v19
  %v48 = vunpack.c.l.b16 %v20
  %v49 = vunpack.c.h.b16 %v20
  %v50 = vunpack.c.l.b16 %v21
  %v51 = vunpack.c.l.b16 %v22
  %v52 = vunpack.c.h.b16 %v22
  %v53 = vunpack.c.l.b16 %v23
  %v54 = vunpack.c.l.b16 %v24
  %v55 = vunpack.c.h.b16 %v24
  %v56 = vunpack.c.l.b16 %v25
  %v57 = vpack.c.b16 %v45, %v42
  %v58 = vpack.c.b16 %v46, %v43
  %v59 = vpack.c.b16 %v47, %v44
  %v60 = vpack.c.b16 %v51, %v48
  %v61 = vpack.c.b16 %v52, %v49
  %v62 = vpack.c.b16 %v53, %v50
  %v63 = vpack.c.b16 %v54, %v54
  %v64 = vpack.c.b16 %v55, %v55
  %v65 = vpack.c.b16 %v56, %v56
  %vm72 = vcmask 326656
  %v74 = vsel %vm72, %v15, 0
  %vm76 = vcmask 1043456
  %v78 = vsel %vm76, %v63, 0
  %v81 = vsel %vm76, %v64, 0
  %v84 = vsel %vm76, %v65, 0
  %86 = vmatprep.subr.bf16.mxu0 0
  %87 = vmatpush1.bf16.msra.mxu0 0
  %88 = vmatprep.subr.bf16.mxu0 0
  %89 = vmatpush1.bf16.msra.mxu0 0
  %90 = vmatprep.subr.bf16.mxu0 0
  %91 = vmatpush1.bf16.msra.mxu0 0
  %92 = vmatprep.subr.bf16.mxu0 0
  %93 = vmatpush1.bf16.msra.mxu0 0
  %94 = vmatprep.subr.bf16.mxu0 0
  %95 = vmatpush1.bf16.msra.mxu0 0
  %96 = vmatprep.subr.bf16.mxu0 %v81
  %97 = vmatpush1.bf16.msra.mxu0 %v78
  %98 = vmatprep.subr.bf16.mxu0 %v61
  %99 = vmatpush1.bf16.msra.mxu0 %v60
  %100 = vmatprep.subr.bf16.mxu0 %v58
  %101 = vmatpush1.bf16.msra.mxu0 %v57
  %102 = vmatprep.subr.bf16.mxu0 0
  %103 = vmatpush2.bf16.msra.mxu0 0
  %104 = vmatprep.subr.bf16.mxu0 0
  %105 = vmatpush2.bf16.msra.mxu0 0
  %106 = vmatprep.subr.bf16.mxu0 0
  %107 = vmatpush2.bf16.msra.mxu0 0
  %108 = vmatprep.subr.bf16.mxu0 0
  %109 = vmatpush2.bf16.msra.mxu0 0
  %110 = vmatprep.subr.bf16.mxu0 0
  %111 = vmatpush2.bf16.msra.mxu0 0
  %112 = vmatprep.subr.bf16.mxu0 0
  %113 = vmatpush2.bf16.msra.mxu0 0
  %114 = vmatprep.subr.bf16.mxu0 0
  %115 = vmatpush2.bf16.msra.mxu0 0
  %116 = vmatprep.subr.bf16.mxu0 0
  %117 = vmatpush2.bf16.msra.mxu0 0
  %118 = vmatprep.mubr.bf16.mxu0 0
  %119 = vmatmul.mubr.bf16.gmra.mxu0 %v74
  %v120 = vpop.f32.mrf.mxu0
  %v121 = vadd.f32 %v30, %v120
  %v122 = vpop.f32.mrf.mxu0
  %v123 = vadd.f32 %v30, %v122
  %v124 = vpop.f32.mrf.mxu0
  %v125 = vpop.f32.mrf.mxu0
  %126 = vdwg.mxu0
  %127 = vmatprep.subr.bf16.mxu0 0
  %128 = vmatpush1.bf16.msra.mxu0 0
  %129 = vmatprep.subr.bf16.mxu0 0
  %130 = vmatpush1.bf16.msra.mxu0 0
  %131 = vmatprep.subr.bf16.mxu0 0
  %132 = vmatpush1.bf16.msra.mxu0 0
  %133 = vmatprep.subr.bf16.mxu0 0
  %134 = vmatpush1.bf16.msra.mxu0 0
  %135 = vmatprep.subr.bf16.mxu0 0
  %136 = vmatpush1.bf16.msra.mxu0 0
  %137 = vmatprep.subr.bf16.mxu0 0
  %138 = vmatpush1.bf16.msra.mxu0 %v84
  %139 = vmatprep.subr.bf16.mxu0 0
  %140 = vmatpush1.bf16.msra.mxu0 %v62
  %141 = vmatprep.subr.bf16.mxu0 0
  %142 = vmatpush1.bf16.msra.mxu0 %v59
  %143 = vmatprep.subr.bf16.mxu0 0
  %144 = vmatpush2.bf16.msra.mxu0 0
  %145 = vmatprep.subr.bf16.mxu0 0
  %146 = vmatpush2.bf16.msra.mxu0 0
  %147 = vmatprep.subr.bf16.mxu0 0
  %148 = vmatpush2.bf16.msra.mxu0 0
  %149 = vmatprep.subr.bf16.mxu0 0
  %150 = vmatpush2.bf16.msra.mxu0 0
  %151 = vmatprep.subr.bf16.mxu0 0
  %152 = vmatpush2.bf16.msra.mxu0 0
  %153 = vmatprep.subr.bf16.mxu0 0
  %154 = vmatpush2.bf16.msra.mxu0 0
  %155 = vmatprep.subr.bf16.mxu0 0
  %156 = vmatpush2.bf16.msra.mxu0 0
  %157 = vmatprep.subr.bf16.mxu0 0
  %158 = vmatpush2.bf16.msra.mxu0 0
  %159 = vmatprep.mubr.bf16.mxu0 0
  %160 = vmatmul.mubr.bf16.gmra.mxu0 %v74
  %v161 = vpop.f32.mrf.mxu0
  %v162 = vadd.f32 %v30, %v161
  %v163 = vpop.f32.mrf.mxu0
  %v164 = vpop.f32.mrf.mxu0
  %v165 = vpop.f32.mrf.mxu0
  %166 = vdwg.mxu0
  %vm167 = vcmp.ge.f32.partialorder %v121, 0.0
  %vm168 = vcmp.ge.f32.partialorder %v123, 0.0
  %vm169 = vcmp.ge.f32.partialorder %v162, 0.0
  %v170 = vmul.f32 %v121, 0.2
  %v171 = vmul.f32 %v123, 0.2
  %v172 = vmul.f32 %v162, 0.2
  %v173 = vsel %vm167, %v121, %v170
  %v174 = vsel %vm168, %v123, %v171
  %v175 = vsel %vm169, %v162, %v172
  %v176 = vpack.c.bf16 %v173, %v173
  %v177 = vpack.c.bf16 %v174, %v174
  %v178 = vpack.c.bf16 %v175, %v175
  %v182 = vunpack.c.l.b16 %v176
  %v183 = vunpack.c.l.b16 %v177
  %v184 = vunpack.c.l.b16 %v178
  %v185 = vpack.c.b16 %v183, %v182
  %v186 = vpack.c.b16 %v184, %v184
  %189 = vst [vmem:[%s3] sm:$0xff] %v185
  %190 = vst [vmem:[%s3 + $0x8] sm:$0xf] %v186
  // Predicated region
  $region14: #{mel_clcnn_forward.23} parent=0 // pred_check
    _
  $region15: #{mel_clcnn_forward.23} parent=0 // pred_check_branch
    %192 = sbr.rel (0) target = $region17
  $region16: #{mel_clcnn_forward.23} parent=0 // pred_region
    _
  $region17: #{mel_clcnn_forward.23} parent=0 // pred_fallthru
    _
  // Predicated region
  $region18: #{mel_clcnn_forward.23} parent=0 // pred_check
    _
  $region19: #{mel_clcnn_forward.23} parent=0 // pred_check_branch
    %194 = sbr.rel (0) target = $region21
  $region20: #{mel_clcnn_forward.23} parent=0 // pred_region
    _
  $region21: #{mel_clcnn_forward.23} parent=0 // pred_fallthru
    _

// kernel: mel_clcnn_forward.25
$region0: #{mel_clcnn_forward.25}
  #allocation0 [shape = 'u32[]', space=smem, size = 0x4, offset = 0x4, fixed_abs, tag = 'smem constant byte address 0x4 - core index']
  #allocation1 [shape = 'u32[144,128]{1,0:T(1,128)}', space=vmem, size = 0x12000, scoped, tag = 'internal scratch']
  %s0 = inlined_call_operand.vmem [shape: bf16[8,48], index: 0, kind: input, shape index: {}]
  %s1 = inlined_call_operand.vmem [shape: bf16[48,256], index: 1, kind: input, shape index: {}]
  %s2 = inlined_call_operand.vmem [shape: f32[8,1], index: 2, kind: input, shape index: {}]
  %s3 = inlined_call_operand.vmem [shape: bf16[8,256], index: 3, kind: output, shape index: {}]
  %s4 = sld [smem:[#allocation0]]
  $region22: #{mel_clcnn_forward.25} parent=0
    _
  %s6 = ssub.s32 1, %s4
  %s7 = scalar_select 0, %s6, %s4
  // Predicated region
  $region2: #{mel_clcnn_forward.25} parent=0 // pred_check
    _
  $region3: #{mel_clcnn_forward.25} parent=0 // pred_check_branch
    %9 = sbr.rel (0) target = $region5
  $region4: #{mel_clcnn_forward.25} parent=0 // pred_region
    _
  $region5: #{mel_clcnn_forward.25} parent=0 // pred_fallthru
    _
  // Predicated region
  $region6: #{mel_clcnn_forward.25} parent=0 // pred_check
    _
  $region7: #{mel_clcnn_forward.25} parent=0 // pred_check_branch
    %11 = sbr.rel (0) target = $region9
  $region8: #{mel_clcnn_forward.25} parent=0 // pred_region
    _
  $region9: #{mel_clcnn_forward.25} parent=0 // pred_fallthru
    _
  // Predicated region
  $region10: #{mel_clcnn_forward.25} parent=0 // pred_check
    _
  $region11: #{mel_clcnn_forward.25} parent=0 // pred_check_branch
    %13 = sbr.rel (0) target = $region13
  $region12: #{mel_clcnn_forward.25} parent=0 // pred_region
    _
  $region13: #{mel_clcnn_forward.25} parent=0 // pred_fallthru
    _
  %v15 = vld [vmem:[%s0] sm:$0xf]
  %v16 = vld [vmem:[%s1] sm:$0xff]
  %v17 = vld [vmem:[%s1 + $0x8] sm:$0xff]
  %v18 = vld [vmem:[%s1 + $0x10] sm:$0xff]
  %v19 = vld [vmem:[%s1 + $0x18] sm:$0xff]
  %v20 = vld [vmem:[%s1 + $0x20] sm:$0xff]
  %v21 = vld [vmem:[%s1 + $0x28] sm:$0xff]
  %v22 = vld [vmem:[%s2] sm:$0xff]
  %24 = vset.pattern.permute.xlu0 0
  %25 = vperm.xlu0 %24, %v22
  %v26 = vpop.permute.xlu0 %25
  %v34 = vunpack.c.l.b16 %v16
  %v35 = vunpack.c.h.b16 %v16
  %v36 = vunpack.c.l.b16 %v17
  %v37 = vunpack.c.h.b16 %v17
  %v38 = vunpack.c.l.b16 %v18
  %v39 = vunpack.c.h.b16 %v18
  %v40 = vunpack.c.l.b16 %v19
  %v41 = vunpack.c.h.b16 %v19
  %v42 = vunpack.c.l.b16 %v20
  %v43 = vunpack.c.h.b16 %v20
  %v44 = vunpack.c.l.b16 %v21
  %v45 = vunpack.c.h.b16 %v21
  %v46 = vpack.c.b16 %v36, %v34
  %v47 = vpack.c.b16 %v37, %v35
  %v48 = vpack.c.b16 %v40, %v38
  %v49 = vpack.c.b16 %v41, %v39
  %v50 = vpack.c.b16 %v44, %v42
  %v51 = vpack.c.b16 %v45, %v43
  %vm58 = vcmask 392192
  %v60 = vsel %vm58, %v15, 0
  %62 = vmatprep.subr.bf16.mxu0 0
  %63 = vmatpush1.bf16.msra.mxu0 0
  %64 = vmatprep.subr.bf16.mxu0 0
  %65 = vmatpush1.bf16.msra.mxu0 0
  %66 = vmatprep.subr.bf16.mxu0 0
  %67 = vmatpush1.bf16.msra.mxu0 0
  %68 = vmatprep.subr.bf16.mxu0 0
  %69 = vmatpush1.bf16.msra.mxu0 0
  %70 = vmatprep.subr.bf16.mxu0 0
  %71 = vmatpush1.bf16.msra.mxu0 0
  %72 = vmatprep.subr.bf16.mxu0 %v51
  %73 = vmatpush1.bf16.msra.mxu0 %v50
  %74 = vmatprep.subr.bf16.mxu0 %v49
  %75 = vmatpush1.bf16.msra.mxu0 %v48
  %76 = vmatprep.subr.bf16.mxu0 %v47
  %77 = vmatpush1.bf16.msra.mxu0 %v46
  %78 = vmatprep.subr.bf16.mxu0 0
  %79 = vmatpush2.bf16.msra.mxu0 0
  %80 = vmatprep.subr.bf16.mxu0 0
  %81 = vmatpush2.bf16.msra.mxu0 0
  %82 = vmatprep.subr.bf16.mxu0 0
  %83 = vmatpush2.bf16.msra.mxu0 0
  %84 = vmatprep.subr.bf16.mxu0 0
  %85 = vmatpush2.bf16.msra.mxu0 0
  %86 = vmatprep.subr.bf16.mxu0 0
  %87 = vmatpush2.bf16.msra.mxu0 0
  %88 = vmatprep.subr.bf16.mxu0 0
  %89 = vmatpush2.bf16.msra.mxu0 0
  %90 = vmatprep.subr.bf16.mxu0 0
  %91 = vmatpush2.bf16.msra.mxu0 0
  %92 = vmatprep.subr.bf16.mxu0 0
  %93 = vmatpush2.bf16.msra.mxu0 0
  %94 = vmatprep.mubr.bf16.mxu0 0
  %95 = vmatmul.mubr.bf16.gmra.mxu0 %v60
  %v96 = vpop.f32.mrf.mxu0
  %v97 = vadd.f32 %v26, %v96
  %v98 = vpop.f32.mrf.mxu0
  %v99 = vadd.f32 %v26, %v98
  %v100 = vpop.f32.mrf.mxu0
  %v101 = vpop.f32.mrf.mxu0
  %102 = vdwg.mxu0
  %vm103 = vcmp.ge.f32.partialorder %v97, 0.0
  %vm104 = vcmp.ge.f32.partialorder %v99, 0.0
  %v105 = vmul.f32 %v97, 0.2
  %v106 = vmul.f32 %v99, 0.2
  %v107 = vsel %vm103, %v97, %v105
  %v108 = vsel %vm104, %v99, %v106
  %v109 = vpack.c.bf16 %v107, %v107
  %v110 = vpack.c.bf16 %v108, %v108
  %v113 = vunpack.c.l.b16 %v109
  %v114 = vunpack.c.l.b16 %v110
  %v115 = vpack.c.b16 %v114, %v113
  %117 = vst [vmem:[%s3] sm:$0xff] %v115
  // Predicated region
  $region14: #{mel_clcnn_forward.25} parent=0 // pred_check
    _
  $region15: #{mel_clcnn_forward.25} parent=0 // pred_check_branch
    %119 = sbr.rel (0) target = $region17
  $region16: #{mel_clcnn_forward.25} parent=0 // pred_region
    _
  $region17: #{mel_clcnn_forward.25} parent=0 // pred_fallthru
    _
  // Predicated region
  $region18: #{mel_clcnn_forward.25} parent=0 // pred_check
    _
  $region19: #{mel_clcnn_forward.25} parent=0 // pred_check_branch
    %121 = sbr.rel (0) target = $region21
  $region20: #{mel_clcnn_forward.25} parent=0 // pred_region
    _
  $region21: #{mel_clcnn_forward.25} parent=0 // pred_fallthru
    _

// kernel: mel_clcnn_forward.26
$region0: #{mel_clcnn_forward.26}
  #allocation0 [shape = 'u32[]', space=smem, size = 0x4, offset = 0x4, fixed_abs, tag = 'smem constant byte address 0x4 - core index']
  #allocation1 [shape = 'u32[144,128]{1,0:T(1,128)}', space=vmem, size = 0x12000, scoped, tag = 'internal scratch']
  %s0 = inlined_call_operand.vmem [shape: bf16[8,72], index: 0, kind: input, shape index: {}]
  %s1 = inlined_call_operand.vmem [shape: bf16[72,256], index: 1, kind: input, shape index: {}]
  %s2 = inlined_call_operand.vmem [shape: f32[8,1], index: 2, kind: input, shape index: {}]
  %s3 = inlined_call_operand.vmem [shape: bf16[8,256], index: 3, kind: output, shape index: {}]
  %s4 = sld [smem:[#allocation0]]
  $region22: #{mel_clcnn_forward.26} parent=0
    _
  %s6 = ssub.s32 1, %s4
  %s7 = scalar_select 0, %s6, %s4
  // Predicated region
  $region2: #{mel_clcnn_forward.26} parent=0 // pred_check
    _
  $region3: #{mel_clcnn_forward.26} parent=0 // pred_check_branch
    %9 = sbr.rel (0) target = $region5
  $region4: #{mel_clcnn_forward.26} parent=0 // pred_region
    _
  $region5: #{mel_clcnn_forward.26} parent=0 // pred_fallthru
    _
  // Predicated region
  $region6: #{mel_clcnn_forward.26} parent=0 // pred_check
    _
  $region7: #{mel_clcnn_forward.26} parent=0 // pred_check_branch
    %11 = sbr.rel (0) target = $region9
  $region8: #{mel_clcnn_forward.26} parent=0 // pred_region
    _
  $region9: #{mel_clcnn_forward.26} parent=0 // pred_fallthru
    _
  // Predicated region
  $region10: #{mel_clcnn_forward.26} parent=0 // pred_check
    _
  $region11: #{mel_clcnn_forward.26} parent=0 // pred_check_branch
    %13 = sbr.rel (0) target = $region13
  $region12: #{mel_clcnn_forward.26} parent=0 // pred_region
    _
  $region13: #{mel_clcnn_forward.26} parent=0 // pred_fallthru
    _
  %v15 = vld [vmem:[%s0] sm:$0xf]
  %v16 = vld [vmem:[%s1] sm:$0xff]
  %v17 = vld [vmem:[%s1 + $0x8] sm:$0xff]
  %v18 = vld [vmem:[%s1 + $0x10] sm:$0xff]
  %v19 = vld [vmem:[%s1 + $0x18] sm:$0xff]
  %v20 = vld [vmem:[%s1 + $0x20] sm:$0xff]
  %v21 = vld [vmem:[%s1 + $0x28] sm:$0xff]
  %v22 = vld [vmem:[%s1 + $0x30] sm:$0xff]
  %v23 = vld [vmem:[%s1 + $0x38] sm:$0xff]
  %v24 = vld [vmem:[%s1 + $0x40] sm:$0xff]
  %v25 = vld [vmem:[%s2] sm:$0xff]
  %27 = vset.pattern.permute.xlu0 0
  %28 = vperm.xlu0 %27, %v25
  %v29 = vpop.permute.xlu0 %28
  %v40 = vunpack.c.l.b16 %v16
  %v41 = vunpack.c.h.b16 %v16
  %v42 = vunpack.c.l.b16 %v17
  %v43 = vunpack.c.h.b16 %v17
  %v44 = vunpack.c.l.b16 %v18
  %v45 = vunpack.c.h.b16 %v18
  %v46 = vunpack.c.l.b16 %v19
  %v47 = vunpack.c.h.b16 %v19
  %v48 = vunpack.c.l.b16 %v20
  %v49 = vunpack.c.h.b16 %v20
  %v50 = vunpack.c.l.b16 %v21
  %v51 = vunpack.c.h.b16 %v21
  %v52 = vunpack.c.l.b16 %v22
  %v53 = vunpack.c.h.b16 %v22
  %v54 = vunpack.c.l.b16 %v23
  %v55 = vunpack.c.h.b16 %v23
  %v56 = vunpack.c.l.b16 %v24
  %v57 = vunpack.c.h.b16 %v24
  %v58 = vpack.c.b16 %v42, %v40
  %v59 = vpack.c.b16 %v43, %v41
  %v60 = vpack.c.b16 %v46, %v44
  %v61 = vpack.c.b16 %v47, %v45
  %v62 = vpack.c.b16 %v50, %v48
  %v63 = vpack.c.b16 %v51, %v49
  %v64 = vpack.c.b16 %v54, %v52
  %v65 = vpack.c.b16 %v55, %v53
  %v66 = vpack.c.b16 %v56, %v56
  %v67 = vpack.c.b16 %v57, %v57
  %vm76 = vcmask 588800
  %v78 = vsel %vm76, %v15, 0
  %vm80 = vcmask 1043456
  %v82 = vsel %vm80, %v66, 0
  %v85 = vsel %vm80, %v67, 0
  %87 = vmatprep.subr.bf16.mxu0 0
  %88 = vmatpush1.bf16.msra.mxu0 0
  %89 = vmatprep.subr.bf16.mxu0 0
  %90 = vmatpush1.bf16.msra.mxu0 0
  %91 = vmatprep.subr.bf16.mxu0 0
  %92 = vmatpush1.bf16.msra.mxu0 0
  %93 = vmatprep.subr.bf16.mxu0 %v85
  %94 = vmatpush1.bf16.msra.mxu0 %v82
  %95 = vmatprep.subr.bf16.mxu0 %v65
  %96 = vmatpush1.bf16.msra.mxu0 %v64
  %97 = vmatprep.subr.bf16.mxu0 %v63
  %98 = vmatpush1.bf16.msra.mxu0 %v62
  %99 = vmatprep.subr.bf16.mxu0 %v61
  %100 = vmatpush1.bf16.msra.mxu0 %v60
  %101 = vmatprep.subr.bf16.mxu0 %v59
  %102 = vmatpush1.bf16.msra.mxu0 %v58
  %103 = vmatprep.subr.bf16.mxu0 0
  %104 = vmatpush2.bf16.msra.mxu0 0
  %105 = vmatprep.subr.bf16.mxu0 0
  %106 = vmatpush2.bf16.msra.mxu0 0
  %107 = vmatprep.subr.bf16.mxu0 0
  %108 = vmatpush2.bf16.msra.mxu0 0
  %109 = vmatprep.subr.bf16.mxu0 0
  %110 = vmatpush2.bf16.msra.mxu0 0
  %111 = vmatprep.subr.bf16.mxu0 0
  %112 = vmatpush2.bf16.msra.mxu0 0
  %113 = vmatprep.subr.bf16.mxu0 0
  %114 = vmatpush2.bf16.msra.mxu0 0
  %115 = vmatprep.subr.bf16.mxu0 0
  %116 = vmatpush2.bf16.msra.mxu0 0
  %117 = vmatprep.subr.bf16.mxu0 0
  %118 = vmatpush2.bf16.msra.mxu0 0
  %119 = vmatprep.mubr.bf16.mxu0 0
  %120 = vmatmul.mubr.bf16.gmra.mxu0 %v78
  %v121 = vpop.f32.mrf.mxu0
  %v122 = vadd.f32 %v29, %v121
  %v123 = vpop.f32.mrf.mxu0
  %v124 = vadd.f32 %v29, %v123
  %v125 = vpop.f32.mrf.mxu0
  %v126 = vpop.f32.mrf.mxu0
  %127 = vdwg.mxu0
  %vm128 = vcmp.ge.f32.partialorder %v122, 0.0
  %vm129 = vcmp.ge.f32.partialorder %v124, 0.0
  %v130 = vmul.f32 %v122, 0.2
  %v131 = vmul.f32 %v124, 0.2
  %v132 = vsel %vm128, %v122, %v130
  %v133 = vsel %vm129, %v124, %v131
  %v134 = vpack.c.bf16 %v132, %v132
  %v135 = vpack.c.bf16 %v133, %v133
  %v138 = vunpack.c.l.b16 %v134
  %v139 = vunpack.c.l.b16 %v135
  %v140 = vpack.c.b16 %v139, %v138
  %142 = vst [vmem:[%s3] sm:$0xff] %v140
  // Predicated region
  $region14: #{mel_clcnn_forward.26} parent=0 // pred_check
    _
  $region15: #{mel_clcnn_forward.26} parent=0 // pred_check_branch
    %144 = sbr.rel (0) target = $region17
  $region16: #{mel_clcnn_forward.26} parent=0 // pred_region
    _
  $region17: #{mel_clcnn_forward.26} parent=0 // pred_fallthru
    _
  // Predicated region
  $region18: #{mel_clcnn_forward.26} parent=0 // pred_check
    _
  $region19: #{mel_clcnn_forward.26} parent=0 // pred_check_branch
    %146 = sbr.rel (0) target = $region21
  $region20: #{mel_clcnn_forward.26} parent=0 // pred_region
    _
  $region21: #{mel_clcnn_forward.26} parent=0 // pred_fallthru
    _

// kernel: mel_clcnn_forward.28
$region0: #{mel_clcnn_forward.28}
  #allocation0 [shape = 'u32[]', space=smem, size = 0x4, offset = 0x4, fixed_abs, tag = 'smem constant byte address 0x4 - core index']
  #allocation1 [shape = 'u32[144,128]{1,0:T(1,128)}', space=vmem, size = 0x12000, scoped, tag = 'internal scratch']
  %s0 = inlined_call_operand.vmem [shape: bf16[16,96], index: 0, kind: input, shape index: {}]
  %s1 = inlined_call_operand.vmem [shape: bf16[96,128], index: 1, kind: input, shape index: {}]
  %s2 = inlined_call_operand.vmem [shape: f32[16,1], index: 2, kind: input, shape index: {}]
  %s3 = inlined_call_operand.vmem [shape: bf16[16,128], index: 3, kind: output, shape index: {}]
  %s4 = sld [smem:[#allocation0]]
  $region22: #{mel_clcnn_forward.28} parent=0
    _
  %s6 = ssub.s32 1, %s4
  %s7 = scalar_select 0, %s6, %s4
  // Predicated region
  $region2: #{mel_clcnn_forward.28} parent=0 // pred_check
    _
  $region3: #{mel_clcnn_forward.28} parent=0 // pred_check_branch
    %9 = sbr.rel (0) target = $region5
  $region4: #{mel_clcnn_forward.28} parent=0 // pred_region
    _
  $region5: #{mel_clcnn_forward.28} parent=0 // pred_fallthru
    _
  // Predicated region
  $region6: #{mel_clcnn_forward.28} parent=0 // pred_check
    _
  $region7: #{mel_clcnn_forward.28} parent=0 // pred_check_branch
    %11 = sbr.rel (0) target = $region9
  $region8: #{mel_clcnn_forward.28} parent=0 // pred_region
    _
  $region9: #{mel_clcnn_forward.28} parent=0 // pred_fallthru
    _
  // Predicated region
  $region10: #{mel_clcnn_forward.28} parent=0 // pred_check
    _
  $region11: #{mel_clcnn_forward.28} parent=0 // pred_check_branch
    %13 = sbr.rel (0) target = $region13
  $region12: #{mel_clcnn_forward.28} parent=0 // pred_region
    _
  $region13: #{mel_clcnn_forward.28} parent=0 // pred_fallthru
    _
  %v15 = vld [vmem:[%s0] sm:$0xf]
  %v16 = vld [vmem:[%s0 + $0x4] sm:$0xf]
  %v17 = vld [vmem:[%s1] sm:$0xf]
  %v18 = vld [vmem:[%s1 + $0x4] sm:$0xf]
  %v19 = vld [vmem:[%s1 + $0x8] sm:$0xf]
  %v20 = vld [vmem:[%s1 + $0xc] sm:$0xf]
  %v21 = vld [vmem:[%s1 + $0x10] sm:$0xf]
  %v22 = vld [vmem:[%s1 + $0x14] sm:$0xf]
  %v23 = vld [vmem:[%s1 + $0x18] sm:$0xf]
  %v24 = vld [vmem:[%s1 + $0x1c] sm:$0xf]
  %v25 = vld [vmem:[%s1 + $0x20] sm:$0xf]
  %v26 = vld [vmem:[%s1 + $0x24] sm:$0xf]
  %v27 = vld [vmem:[%s1 + $0x28] sm:$0xf]
  %v28 = vld [vmem:[%s1 + $0x2c] sm:$0xf]
  %v29 = vld [vmem:[%s2] sm:$0xff]
  %v30 = vld [vmem:[%s2 + $0x8] sm:$0xff]
  %32 = vset.pattern.permute.xlu0 0
  %33 = vperm.xlu0 %32, %v29
  %v34 = vpop.permute.xlu0 %33
  %37 = vset.pattern.permute.xlu0 0
  %38 = vperm.xlu0 %37, %v30
  %v39 = vpop.permute.xlu0 %38
  %v43 = vunpack.c.l.b16 %v15
  %v44 = vunpack.c.l.b16 %v16
  %v45 = vpack.c.b16 %v44, %v43
  %v58 = vunpack.c.l.b16 %v17
  %v59 = vunpack.c.l.b16 %v18
  %v60 = vunpack.c.l.b16 %v19
  %v61 = vunpack.c.l.b16 %v20
  %v62 = vunpack.c.l.b16 %v21
  %v63 = vunpack.c.l.b16 %v22
  %v64 = vunpack.c.l.b16 %v23
  %v65 = vunpack.c.l.b16 %v24
  %v66 = vunpack.c.l.b16 %v25
  %v67 = vunpack.c.l.b16 %v26
  %v68 = vunpack.c.l.b16 %v27
  %v69 = vunpack.c.l.b16 %v28
  %v70 = vpack.c.b16 %v59, %v58
  %v71 = vpack.c.b16 %v61, %v60
  %v72 = vpack.c.b16 %v63, %v62
  %v73 = vpack.c.b16 %v65, %v64
  %v74 = vpack.c.b16 %v67, %v66
  %v75 = vpack.c.b16 %v69, %v68
  %vm82 = vcmask 785408
  %v84 = vsel %vm82, %v45, 0
  %86 = vmatprep.subr.bf16.mxu0 0
  %87 = vmatpush1.bf16.msra.mxu0 0
  %88 = vmatprep.subr.bf16.mxu0 0
  %89 = vmatpush1.bf16.msra.mxu0 0
  %90 = vmatprep.subr.bf16.mxu0 0
  %91 = vmatpush1.bf16.msra.mxu0 %v75
  %92 = vmatprep.subr.bf16.mxu0 0
  %93 = vmatpush1.bf16.msra.mxu0 %v74
  %94 = vmatprep.subr.bf16.mxu0 0
  %95 = vmatpush1.bf16.msra.mxu0 %v73
  %96 = vmatprep.subr.bf16.mxu0 0
  %97 = vmatpush1.bf16.msra.mxu0 %v72
  %98 = vmatprep.subr.bf16.mxu0 0
  %99 = vmatpush1.bf16.msra.mxu0 %v71
  %100 = vmatprep.subr.bf16.mxu0 0
  %101 = vmatpush1.bf16.msra.mxu0 %v70
  %102 = vmatprep.subr.bf16.mxu0 0
  %103 = vmatpush2.bf16.msra.mxu0 0
  %104 = vmatprep.subr.bf16.mxu0 0
  %105 = vmatpush2.bf16.msra.mxu0 0
  %106 = vmatprep.subr.bf16.mxu0 0
  %107 = vmatpush2.bf16.msra.mxu0 0
  %108 = vmatprep.subr.bf16.mxu0 0
  %109 = vmatpush2.bf16.msra.mxu0 0
  %110 = vmatprep.subr.bf16.mxu0 0
  %111 = vmatpush2.bf16.msra.mxu0 0
  %112 = vmatprep.subr.bf16.mxu0 0
  %113 = vmatpush2.bf16.msra.mxu0 0
  %114 = vmatprep.subr.bf16.mxu0 0
  %115 = vmatpush2.bf16.msra.mxu0 0
  %116 = vmatprep.subr.bf16.mxu0 0
  %117 = vmatpush2.bf16.msra.mxu0 0
  %118 = vmatprep.mubr.bf16.mxu0 0
  %119 = vmatmul.mubr.bf16.gmra.mxu0 %v84
  %v120 = vpop.f32.mrf.mxu0
  %v121 = vadd.f32 %v34, %v120
  %v122 = vpop.f32.mrf.mxu0
  %v123 = vpop.f32.mrf.mxu0
  %v124 = vadd.f32 %v39, %v123
  %v125 = vpop.f32.mrf.mxu0
  %126 = vdwg.mxu0
  %vm127 = vcmp.ge.f32.partialorder %v121, 0.0
  %vm128 = vcmp.ge.f32.partialorder %v124, 0.0
  %v129 = vmul.f32 %v121, 0.2
  %v130 = vmul.f32 %v124, 0.2
  %v131 = vsel %vm127, %v121, %v129
  %v132 = vsel %vm128, %v124, %v130
  %v133 = vpack.c.bf16 %v132, %v131
  %v135 = vunpack.c.l.b16 %v133
  %v136 = vunpack.c.h.b16 %v133
  %v137 = vpack.c.b16 %v135, %v135
  %v138 = vpack.c.b16 %v136, %v136
  %141 = vst [vmem:[%s3] sm:$0xf] %v137
  %142 = vst [vmem:[%s3 + $0x4] sm:$0xf] %v138
  // Predicated region
  $region14: #{mel_clcnn_forward.28} parent=0 // pred_check
    _
  $region15: #{mel_clcnn_forward.28} parent=0 // pred_check_branch
    %144 = sbr.rel (0) target = $region17
  $region16: #{mel_clcnn_forward.28} parent=0 // pred_region
    _
  $region17: #{mel_clcnn_forward.28} parent=0 // pred_fallthru
    _
  // Predicated region
  $region18: #{mel_clcnn_forward.28} parent=0 // pred_check
    _
  $region19: #{mel_clcnn_forward.28} parent=0 // pred_check_branch
    %146 = sbr.rel (0) target = $region21
  $region20: #{mel_clcnn_forward.28} parent=0 // pred_region
    _
  $region21: #{mel_clcnn_forward.28} parent=0 // pred_fallthru
    _

// kernel: mel_clcnn_forward.29
$region0: #{mel_clcnn_forward.29}
  #allocation0 [shape = 'u32[]', space=smem, size = 0x4, offset = 0x4, fixed_abs, tag = 'smem constant byte address 0x4 - core index']
  #allocation1 [shape = 'u32[144,128]{1,0:T(1,128)}', space=vmem, size = 0x12000, scoped, tag = 'internal scratch']
  %s0 = inlined_call_operand.vmem [shape: bf16[16,144], index: 0, kind: input, shape index: {}]
  %s1 = inlined_call_operand.vmem [shape: bf16[144,128], index: 1, kind: input, shape index: {}]
  %s2 = inlined_call_operand.vmem [shape: f32[16,1], index: 2, kind: input, shape index: {}]
  %s3 = inlined_call_operand.vmem [shape: bf16[16,128], index: 3, kind: output, shape index: {}]
  %s4 = sld [smem:[#allocation0]]
  $region22: #{mel_clcnn_forward.29} parent=0
    _
  %s6 = ssub.s32 1, %s4
  %s7 = scalar_select 0, %s6, %s4
  // Predicated region
  $region2: #{mel_clcnn_forward.29} parent=0 // pred_check
    _
  $region3: #{mel_clcnn_forward.29} parent=0 // pred_check_branch
    %9 = sbr.rel (0) target = $region5
  $region4: #{mel_clcnn_forward.29} parent=0 // pred_region
    _
  $region5: #{mel_clcnn_forward.29} parent=0 // pred_fallthru
    _
  // Predicated region
  $region6: #{mel_clcnn_forward.29} parent=0 // pred_check
    _
  $region7: #{mel_clcnn_forward.29} parent=0 // pred_check_branch
    %11 = sbr.rel (0) target = $region9
  $region8: #{mel_clcnn_forward.29} parent=0 // pred_region
    _
  $region9: #{mel_clcnn_forward.29} parent=0 // pred_fallthru
    _
  // Predicated region
  $region10: #{mel_clcnn_forward.29} parent=0 // pred_check
    _
  $region11: #{mel_clcnn_forward.29} parent=0 // pred_check_branch
    %13 = sbr.rel (0) target = $region13
  $region12: #{mel_clcnn_forward.29} parent=0 // pred_region
    _
  $region13: #{mel_clcnn_forward.29} parent=0 // pred_fallthru
    _
  %v15 = vld [vmem:[%s0] sm:$0xff]
  %v16 = vld [vmem:[%s0 + $0x8] sm:$0xff]
  %v17 = vld [vmem:[%s1] sm:$0xf]
  %v18 = vld [vmem:[%s1 + $0x4] sm:$0xf]
  %v19 = vld [vmem:[%s1 + $0x8] sm:$0xf]
  %v20 = vld [vmem:[%s1 + $0xc] sm:$0xf]
  %v21 = vld [vmem:[%s1 + $0x10] sm:$0xf]
  %v22 = vld [vmem:[%s1 + $0x14] sm:$0xf]
  %v23 = vld [vmem:[%s1 + $0x18] sm:$0xf]
  %v24 = vld [vmem:[%s1 + $0x1c] sm:$0xf]
  %v25 = vld [vmem:[%s1 + $0x20] sm:$0xf]
  %v26 = vld [vmem:[%s1 + $0x24] sm:$0xf]
  %v27 = vld [vmem:[%s1 + $0x28] sm:$0xf]
  %v28 = vld [vmem:[%s1 + $0x2c] sm:$0xf]
  %v29 = vld [vmem:[%s1 + $0x30] sm:$0xf]
  %v30 = vld [vmem:[%s1 + $0x34] sm:$0xf]
  %v31 = vld [vmem:[%s1 + $0x38] sm:$0xf]
  %v32 = vld [vmem:[%s1 + $0x3c] sm:$0xf]
  %v33 = vld [vmem:[%s1 + $0x40] sm:$0xf]
  %v34 = vld [vmem:[%s1 + $0x44] sm:$0xf]
  %v35 = vld [vmem:[%s2] sm:$0xff]
  %v36 = vld [vmem:[%s2 + $0x8] sm:$0xff]
  %38 = vset.pattern.permute.xlu0 0
  %39 = vperm.xlu0 %38, %v35
  %v40 = vpop.permute.xlu0 %39
  %43 = vset.pattern.permute.xlu0 0
  %44 = vperm.xlu0 %43, %v36
  %v45 = vpop.permute.xlu0 %44
  %v49 = vunpack.c.l.b16 %v15
  %v50 = vunpack.c.h.b16 %v15
  %v51 = vunpack.c.l.b16 %v16
  %v52 = vunpack.c.h.b16 %v16
  %v53 = vpack.c.b16 %v51, %v49
  %v54 = vpack.c.b16 %v52, %v50
  %v74 = vunpack.c.l.b16 %v17
  %v75 = vunpack.c.l.b16 %v18
  %v76 = vunpack.c.l.b16 %v19
  %v77 = vunpack.c.l.b16 %v20
  %v78 = vunpack.c.l.b16 %v21
  %v79 = vunpack.c.l.b16 %v22
  %v80 = vunpack.c.l.b16 %v23
  %v81 = vunpack.c.l.b16 %v24
  %v82 = vunpack.c.l.b16 %v25
  %v83 = vunpack.c.l.b16 %v26
  %v84 = vunpack.c.l.b16 %v27
  %v85 = vunpack.c.l.b16 %v28
  %v86 = vunpack.c.l.b16 %v29
  %v87 = vunpack.c.l.b16 %v30
  %v88 = vunpack.c.l.b16 %v31
  %v89 = vunpack.c.l.b16 %v32
  %v90 = vunpack.c.l.b16 %v33
  %v91 = vunpack.c.l.b16 %v34
  %v92 = vpack.c.b16 %v75, %v74
  %v93 = vpack.c.b16 %v77, %v76
  %v94 = vpack.c.b16 %v79, %v78
  %v95 = vpack.c.b16 %v81, %v80
  %v96 = vpack.c.b16 %v83, %v82
  %v97 = vpack.c.b16 %v85, %v84
  %v98 = vpack.c.b16 %v87, %v86
  %v99 = vpack.c.b16 %v89, %v88
  %v100 = vpack.c.b16 %v91, %v90
  %vm110 = vcmask 130048
  %v112 = vsel %vm110, %v54, 0
  %114 = vmatprep.subr.bf16.mxu0 0
  %115 = vmatpush1.bf16.msra.mxu0 %v99
  %116 = vmatprep.subr.bf16.mxu0 0
  %117 = vmatpush1.bf16.msra.mxu0 %v98
  %118 = vmatprep.subr.bf16.mxu0 0
  %119 = vmatpush1.bf16.msra.mxu0 %v97
  %120 = vmatprep.subr.bf16.mxu0 0
  %121 = vmatpush1.bf16.msra.mxu0 %v96
  %122 = vmatprep.subr.bf16.mxu0 0
  %123 = vmatpush1.bf16.msra.mxu0 %v95
  %124 = vmatprep.subr.bf16.mxu0 0
  %125 = vmatpush1.bf16.msra.mxu0 %v94
  %126 = vmatprep.subr.bf16.mxu0 0
  %127 = vmatpush1.bf16.msra.mxu0 %v93
  %128 = vmatprep.subr.bf16.mxu0 0
  %129 = vmatpush1.bf16.msra.mxu0 %v92
  %130 = vmatprep.subr.bf16.mxu0 0
  %131 = vmatpush2.bf16.msra.mxu0 0
  %132 = vmatprep.subr.bf16.mxu0 0
  %133 = vmatpush2.bf16.msra.mxu0 0
  %134 = vmatprep.subr.bf16.mxu0 0
  %135 = vmatpush2.bf16.msra.mxu0 0
  %136 = vmatprep.subr.bf16.mxu0 0
  %137 = vmatpush2.bf16.msra.mxu0 0
  %138 = vmatprep.subr.bf16.mxu0 0
  %139 = vmatpush2.bf16.msra.mxu0 0
  %140 = vmatprep.subr.bf16.mxu0 0
  %141 = vmatpush2.bf16.msra.mxu0 0
  %142 = vmatprep.subr.bf16.mxu0 0
  %143 = vmatpush2.bf16.msra.mxu0 0
  %144 = vmatprep.subr.bf16.mxu0 0
  %145 = vmatpush2.bf16.msra.mxu0 %v100
  %146 = vmatprep.mubr.bf16.mxu0 %v112
  %147 = vmatmul.mubr.bf16.gmra.mxu0 %v53
  %v148 = vpop.f32.mrf.mxu0
  %v149 = vadd.f32 %v40, %v148
  %v150 = vpop.f32.mrf.mxu0
  %v151 = vpop.f32.mrf.mxu0
  %v152 = vadd.f32 %v45, %v151
  %v153 = vpop.f32.mrf.mxu0
  %154 = vdwg.mxu0
  %vm155 = vcmp.ge.f32.partialorder %v149, 0.0
  %vm156 = vcmp.ge.f32.partialorder %v152, 0.0
  %v157 = vmul.f32 %v149, 0.2
  %v158 = vmul.f32 %v152, 0.2
  %v159 = vsel %vm155, %v149, %v157
  %v160 = vsel %vm156, %v152, %v158
  %v161 = vpack.c.bf16 %v160, %v159
  %v163 = vunpack.c.l.b16 %v161
  %v164 = vunpack.c.h.b16 %v161
  %v165 = vpack.c.b16 %v163, %v163
  %v166 = vpack.c.b16 %v164, %v164
  %169 = vst [vmem:[%s3] sm:$0xf] %v165
  %170 = vst [vmem:[%s3 + $0x4] sm:$0xf] %v166
  // Predicated region
  $region14: #{mel_clcnn_forward.29} parent=0 // pred_check
    _
  $region15: #{mel_clcnn_forward.29} parent=0 // pred_check_branch
    %172 = sbr.rel (0) target = $region17
  $region16: #{mel_clcnn_forward.29} parent=0 // pred_region
    _
  $region17: #{mel_clcnn_forward.29} parent=0 // pred_fallthru
    _
  // Predicated region
  $region18: #{mel_clcnn_forward.29} parent=0 // pred_check
    _
  $region19: #{mel_clcnn_forward.29} parent=0 // pred_check_branch
    %174 = sbr.rel (0) target = $region21
  $region20: #{mel_clcnn_forward.29} parent=0 // pred_region
    _
  $region21: #{mel_clcnn_forward.29} parent=0 // pred_fallthru
    _

// kernel: mel_clcnn_forward.30
$region0: #{mel_clcnn_forward.30}
  #allocation0 [shape = 'u32[]', space=smem, size = 0x4, offset = 0x4, fixed_abs, tag = 'smem constant byte address 0x4 - core index']
  #allocation1 [shape = 'u32[144,128]{1,0:T(1,128)}', space=vmem, size = 0x12000, scoped, tag = 'internal scratch']
  %s0 = inlined_call_operand.vmem [shape: bf16[16,80], index: 0, kind: input, shape index: {}]
  %s1 = inlined_call_operand.vmem [shape: bf16[80,512], index: 1, kind: input, shape index: {}]
  %s2 = inlined_call_operand.vmem [shape: f32[1,512], index: 2, kind: input, shape index: {}]
  %s3 = inlined_call_operand.vmem [shape: f32[16,512], index: 3, kind: output, shape index: {}]
  %s4 = sld [smem:[#allocation0]]
  $region22: #{mel_clcnn_forward.30} parent=0
    _
  %s6 = ssub.s32 1, %s4
  %s7 = scalar_select 0, %s6, %s4
  // Predicated region
  $region2: #{mel_clcnn_forward.30} parent=0 // pred_check
    _
  $region3: #{mel_clcnn_forward.30} parent=0 // pred_check_branch
    %9 = sbr.rel (0) target = $region5
  $region4: #{mel_clcnn_forward.30} parent=0 // pred_region
    _
  $region5: #{mel_clcnn_forward.30} parent=0 // pred_fallthru
    _
  // Predicated region
  $region6: #{mel_clcnn_forward.30} parent=0 // pred_check
    _
  $region7: #{mel_clcnn_forward.30} parent=0 // pred_check_branch
    %11 = sbr.rel (0) target = $region9
  $region8: #{mel_clcnn_forward.30} parent=0 // pred_region
    _
  $region9: #{mel_clcnn_forward.30} parent=0 // pred_fallthru
    _
  // Predicated region
  $region10: #{mel_clcnn_forward.30} parent=0 // pred_check
    _
  $region11: #{mel_clcnn_forward.30} parent=0 // pred_check_branch
    %13 = sbr.rel (0) target = $region13
  $region12: #{mel_clcnn_forward.30} parent=0 // pred_region
    _
  $region13: #{mel_clcnn_forward.30} parent=0 // pred_fallthru
    _
  %v15 = vld [vmem:[%s0] sm:$0xf]
  %v16 = vld [vmem:[%s0 + $0x4] sm:$0xf]
  %v17 = vld [vmem:[%s1] sm:$0xff]
  %v18 = vld [vmem:[%s1 + $0x8] sm:$0xff]
  %v19 = vld [vmem:[%s1 + $0x10] sm:$0xff]
  %v20 = vld [vmem:[%s1 + $0x18] sm:$0xff]
  %v21 = vld [vmem:[%s1 + $0x20] sm:$0xff]
  %v22 = vld [vmem:[%s1 + $0x28] sm:$0xff]
  %v23 = vld [vmem:[%s1 + $0x30] sm:$0xff]
  %v24 = vld [vmem:[%s1 + $0x38] sm:$0xff]
  %v25 = vld [vmem:[%s1 + $0x40] sm:$0xff]
  %v26 = vld [vmem:[%s1 + $0x48] sm:$0xff]
  %v27 = vld [vmem:[%s1 + $0x50] sm:$0xff]
  %v28 = vld [vmem:[%s1 + $0x58] sm:$0xff]
  %v29 = vld [vmem:[%s1 + $0x60] sm:$0xff]
  %v30 = vld [vmem:[%s1 + $0x68] sm:$0xff]
  %v31 = vld [vmem:[%s1 + $0x70] sm:$0xff]
  %v32 = vld [vmem:[%s1 + $0x78] sm:$0xff]
  %v33 = vld [vmem:[%s1 + $0x80] sm:$0xff]
  %v34 = vld [vmem:[%s1 + $0x88] sm:$0xff]
  %v35 = vld [vmem:[%s1 + $0x90] sm:$0xff]
  %v36 = vld [vmem:[%s1 + $0x98] sm:$0xff]
  %v37 = vld [vmem:[%s2] sm:$0xf]
  %v39 = vlaneseq
  %v40 = vshrl.u32 %v39, 7
  %v41 = vsub.s32 0, %v40
  %v42 = vrot.slane %v37, %v41
  %v43 = vlaneseq
  %v44 = vshrl.u32 %v43, 7
  %v45 = vsub.s32 1, %v44
  %v46 = vrot.slane %v37, %v45
  %v47 = vlaneseq
  %v48 = vshrl.u32 %v47, 7
  %v49 = vsub.s32 2, %v48
  %v50 = vrot.slane %v37, %v49
  %v51 = vlaneseq
  %v52 = vshrl.u32 %v51, 7
  %v53 = vsub.s32 3, %v52
  %v54 = vrot.slane %v37, %v53
  %v61 = vunpack.c.l.b16 %v15
  %v62 = vunpack.c.l.b16 %v16
  %v63 = vpack.c.b16 %v62, %v61
  %v84 = vunpack.c.l.b16 %v17
  %v85 = vunpack.c.h.b16 %v17
  %v86 = vunpack.c.l.b16 %v18
  %v87 = vunpack.c.h.b16 %v18
  %v88 = vunpack.c.l.b16 %v19
  %v89 = vunpack.c.h.b16 %v19
  %v90 = vunpack.c.l.b16 %v20
  %v91 = vunpack.c.h.b16 %v20
  %v92 = vunpack.c.l.b16 %v21
  %v93 = vunpack.c.h.b16 %v21
  %v94 = vunpack.c.l.b16 %v22
  %v95 = vunpack.c.h.b16 %v22
  %v96 = vunpack.c.l.b16 %v23
  %v97 = vunpack.c.h.b16 %v23
  %v98 = vunpack.c.l.b16 %v24
  %v99 = vunpack.c.h.b16 %v24
  %v100 = vunpack.c.l.b16 %v25
  %v101 = vunpack.c.h.b16 %v25
  %v102 = vunpack.c.l.b16 %v26
  %v103 = vunpack.c.h.b16 %v26
  %v104 = vunpack.c.l.b16 %v27
  %v105 = vunpack.c.h.b16 %v27
  %v106 = vunpack.c.l.b16 %v28
  %v107 = vunpack.c.h.b16 %v28
  %v108 = vunpack.c.l.b16 %v29
  %v109 = vunpack.c.h.b16 %v29
  %v110 = vunpack.c.l.b16 %v30
  %v111 = vunpack.c.h.b16 %v30
  %v112 = vunpack.c.l.b16 %v31
  %v113 = vunpack.c.h.b16 %v31
  %v114 = vunpack.c.l.b16 %v32
  %v115 = vunpack.c.h.b16 %v32
  %v116 = vunpack.c.l.b16 %v33
  %v117 = vunpack.c.h.b16 %v33
  %v118 = vunpack.c.l.b16 %v34
  %v119 = vunpack.c.h.b16 %v34
  %v120 = vunpack.c.l.b16 %v35
  %v121 = vunpack.c.h.b16 %v35
  %v122 = vunpack.c.l.b16 %v36
  %v123 = vunpack.c.h.b16 %v36
  %v124 = vpack.c.b16 %v88, %v84
  %v125 = vpack.c.b16 %v89, %v85
  %v126 = vpack.c.b16 %v90, %v86
  %v127 = vpack.c.b16 %v91, %v87
  %v128 = vpack.c.b16 %v96, %v92
  %v129 = vpack.c.b16 %v97, %v93
  %v130 = vpack.c.b16 %v98, %v94
  %v131 = vpack.c.b16 %v99, %v95
  %v132 = vpack.c.b16 %v104, %v100
  %v133 = vpack.c.b16 %v105, %v101
  %v134 = vpack.c.b16 %v106, %v102
  %v135 = vpack.c.b16 %v107, %v103
  %v136 = vpack.c.b16 %v112, %v108
  %v137 = vpack.c.b16 %v113, %v109
  %v138 = vpack.c.b16 %v114, %v110
  %v139 = vpack.c.b16 %v115, %v111
  %v140 = vpack.c.b16 %v120, %v116
  %v141 = vpack.c.b16 %v121, %v117
  %v142 = vpack.c.b16 %v122, %v118
  %v143 = vpack.c.b16 %v123, %v119
  %vm164 = vcmask 654336
  %v166 = vsel %vm164, %v63, 0
  %168 = vmatprep.subr.bf16.mxu0 0
  %169 = vmatpush1.bf16.msra.mxu0 0
  %170 = vmatprep.subr.bf16.mxu0 0
  %171 = vmatpush1.bf16.msra.mxu0 0
  %172 = vmatprep.subr.bf16.mxu0 0
  %173 = vmatpush1.bf16.msra.mxu0 0
  %174 = vmatprep.subr.bf16.mxu0 %v141
  %175 = vmatpush1.bf16.msra.mxu0 %v140
  %176 = vmatprep.subr.bf16.mxu0 %v137
  %177 = vmatpush1.bf16.msra.mxu0 %v136
  %178 = vmatprep.subr.bf16.mxu0 %v133
  %179 = vmatpush1.bf16.msra.mxu0 %v132
  %180 = vmatprep.subr.bf16.mxu0 %v129
  %181 = vmatpush1.bf16.msra.mxu0 %v128
  %182 = vmatprep.subr.bf16.mxu0 %v125
  %183 = vmatpush1.bf16.msra.mxu0 %v124
  %184 = vmatprep.subr.bf16.mxu0 0
  %185 = vmatpush2.bf16.msra.mxu0 0
  %186 = vmatprep.subr.bf16.mxu0 0
  %187 = vmatpush2.bf16.msra.mxu0 0
  %188 = vmatprep.subr.bf16.mxu0 0
  %189 = vmatpush2.bf16.msra.mxu0 0
  %190 = vmatprep.subr.bf16.mxu0 0
  %191 = vmatpush2.bf16.msra.mxu0 0
  %192 = vmatprep.subr.bf16.mxu0 0
  %193 = vmatpush2.bf16.msra.mxu0 0
  %194 = vmatprep.subr.bf16.mxu0 0
  %195 = vmatpush2.bf16.msra.mxu0 0
  %196 = vmatprep.subr.bf16.mxu0 0
  %197 = vmatpush2.bf16.msra.mxu0 0
  %198 = vmatprep.subr.bf16.mxu0 0
  %199 = vmatpush2.bf16.msra.mxu0 0
  %200 = vmatprep.mubr.bf16.mxu0 0
  %201 = vmatmul.mubr.bf16.gmra.mxu0 %v166
  %v202 = vpop.f32.mrf.mxu0
  %v203 = vadd.f32 %v42, %v202
  %v204 = vpop.f32.mrf.mxu0
  %v205 = vadd.f32 %v46, %v204
  %v206 = vpop.f32.mrf.mxu0
  %v207 = vadd.f32 %v42, %v206
  %v208 = vpop.f32.mrf.mxu0
  %v209 = vadd.f32 %v46, %v208
  %210 = vdwg.mxu0
  %211 = vmatprep.subr.bf16.mxu0 0
  %212 = vmatpush1.bf16.msra.mxu0 0
  %213 = vmatprep.subr.bf16.mxu0 0
  %214 = vmatpush1.bf16.msra.mxu0 0
  %215 = vmatprep.subr.bf16.mxu0 0
  %216 = vmatpush1.bf16.msra.mxu0 0
  %217 = vmatprep.subr.bf16.mxu0 %v143
  %218 = vmatpush1.bf16.msra.mxu0 %v142
  %219 = vmatprep.subr.bf16.mxu0 %v139
  %220 = vmatpush1.bf16.msra.mxu0 %v138
  %221 = vmatprep.subr.bf16.mxu0 %v135
  %222 = vmatpush1.bf16.msra.mxu0 %v134
  %223 = vmatprep.subr.bf16.mxu0 %v131
  %224 = vmatpush1.bf16.msra.mxu0 %v130
  %225 = vmatprep.subr.bf16.mxu0 %v127
  %226 = vmatpush1.bf16.msra.mxu0 %v126
  %227 = vmatprep.subr.bf16.mxu0 0
  %228 = vmatpush2.bf16.msra.mxu0 0
  %229 = vmatprep.subr.bf16.mxu0 0
  %230 = vmatpush2.bf16.msra.mxu0 0
  %231 = vmatprep.subr.bf16.mxu0 0
  %232 = vmatpush2.bf16.msra.mxu0 0
  %233 = vmatprep.subr.bf16.mxu0 0
  %234 = vmatpush2.bf16.msra.mxu0 0
  %235 = vmatprep.subr.bf16.mxu0 0
  %236 = vmatpush2.bf16.msra.mxu0 0
  %237 = vmatprep.subr.bf16.mxu0 0
  %238 = vmatpush2.bf16.msra.mxu0 0
  %239 = vmatprep.subr.bf16.mxu0 0
  %240 = vmatpush2.bf16.msra.mxu0 0
  %241 = vmatprep.subr.bf16.mxu0 0
  %242 = vmatpush2.bf16.msra.mxu0 0
  %243 = vmatprep.mubr.bf16.mxu0 0
  %244 = vmatmul.mubr.bf16.gmra.mxu0 %v166
  %v245 = vpop.f32.mrf.mxu0
  %v246 = vadd.f32 %v50, %v245
  %v247 = vpop.f32.mrf.mxu0
  %v248 = vadd.f32 %v54, %v247
  %v249 = vpop.f32.mrf.mxu0
  %v250 = vadd.f32 %v50, %v249
  %v251 = vpop.f32.mrf.mxu0
  %v252 = vadd.f32 %v54, %v251
  %253 = vdwg.mxu0
  %254 = vst [vmem:[%s3] sm:$0xff] %v203
  %255 = vst [vmem:[%s3 + $0x8] sm:$0xff] %v205
  %256 = vst [vmem:[%s3 + $0x10] sm:$0xff] %v246
  %257 = vst [vmem:[%s3 + $0x18] sm:$0xff] %v248
  %258 = vst [vmem:[%s3 + $0x20] sm:$0xff] %v207
  %259 = vst [vmem:[%s3 + $0x28] sm:$0xff] %v209
  %260 = vst [vmem:[%s3 + $0x30] sm:$0xff] %v250
  %261 = vst [vmem:[%s3 + $0x38] sm:$0xff] %v252
  // Predicated region
  $region14: #{mel_clcnn_forward.30} parent=0 // pred_check
    _
  $region15: #{mel_clcnn_forward.30} parent=0 // pred_check_branch
    %263 = sbr.rel (0) target = $region17
  $region16: #{mel_clcnn_forward.30} parent=0 // pred_region
    _
  $region17: #{mel_clcnn_forward.30} parent=0 // pred_fallthru
    _
  // Predicated region
  $region18: #{mel_clcnn_forward.30} parent=0 // pred_check
    _
  $region19: #{mel_clcnn_forward.30} parent=0 // pred_check_branch
    %265 = sbr.rel (0) target = $region21
  $region20: #{mel_clcnn_forward.30} parent=0 // pred_region
    _
  $region21: #{mel_clcnn_forward.30} parent=0 // pred_fallthru
    _

// kernel: mel_clcnn_forward.31
$region0: #{mel_clcnn_forward.31}
  #allocation0 [shape = 'u32[]', space=smem, size = 0x4, offset = 0x4, fixed_abs, tag = 'smem constant byte address 0x4 - core index']
  #allocation1 [shape = 'u32[144,128]{1,0:T(1,128)}', space=vmem, size = 0x12000, scoped, tag = 'internal scratch']
  #allocation2 [shape = 'f32[2,128]{1,0:T(2,128)}', space=vmem, size = 0x400, scoped, tag = 'scratch operand']
  #allocation3 [shape = 'f32[2,128]{1,0:T(2,128)}', space=vmem, size = 0x400, scoped, tag = 'scratch operand']
  %s0 = inlined_call_operand.vmem [shape: f32[8,2,512], index: 0, kind: input, shape index: {}]
  %s1 = inlined_call_operand.vmem [shape: bf16[128,512], index: 1, kind: input, shape index: {}]
  %s2 = inlined_call_operand.vmem [shape: bf16[8,2,128], index: 2, kind: output, shape index: {}]
  %s3 = sld [smem:[#allocation0]]
  $region25: #{mel_clcnn_forward.31} parent=0
    _
  %s5 = ssub.s32 1, %s3
  %s6 = scalar_select 0, %s5, %s3
  // Predicated region
  $region2: #{mel_clcnn_forward.31} parent=0 // pred_check
    _
  $region3: #{mel_clcnn_forward.31} parent=0 // pred_check_branch
    %8 = sbr.rel (0) target = $region5
  $region4: #{mel_clcnn_forward.31} parent=0 // pred_region
    _
  $region5: #{mel_clcnn_forward.31} parent=0 // pred_fallthru
    _
  // Predicated region
  $region6: #{mel_clcnn_forward.31} parent=0 // pred_check
    _
  $region7: #{mel_clcnn_forward.31} parent=0 // pred_check_branch
    %10 = sbr.rel (0) target = $region9
  $region8: #{mel_clcnn_forward.31} parent=0 // pred_region
    _
  $region9: #{mel_clcnn_forward.31} parent=0 // pred_fallthru
    _
  %12 = vst [vmem:[#allocation2] sm:$0x3] 0.0
  %13 = vst [vmem:[#allocation3] sm:$0x3] 0.0
  loop: start=0, step=1, limit=8
  $region10: #{mel_clcnn_forward.31} parent=0 // loop_pre_header
    _
  $region11: #{mel_clcnn_forward.31} parent=0 // loop_header
    %s15 = sphi 0, %s19
    %p16 = scmp.ge.s32.totalorder %s15, 8
  $region12: #{mel_clcnn_forward.31} parent=0 // loop_header_branch
    %18 = sbr.rel (%p16) target = $region16
  $region13: #{mel_clcnn_forward.31} parent=0 // loop_body
    %s20 = smul.u32 %s15, 4
    %s21 = smul.addr %s20, 2
    %s22 = scalar_lea.vmem %s0, %s21
    %v23 = vld [vmem:[%s22] sm:$0xff]
    %v24 = vld [vmem:[#allocation2] sm:$0x3]
    %v25 = vpack.c.bf16 %v24, %v24
    %v26 = vld [vmem:[%s1] sm:$0xff]
    %v27 = vld [vmem:[%s1 + $0x8] sm:$0xff]
    %v28 = vld [vmem:[%s1 + $0x10] sm:$0xff]
    %v29 = vld [vmem:[%s1 + $0x18] sm:$0xff]
    %v30 = vld [vmem:[%s1 + $0x20] sm:$0xff]
    %v31 = vld [vmem:[%s1 + $0x28] sm:$0xff]
    %v32 = vld [vmem:[%s1 + $0x30] sm:$0xff]
    %v33 = vld [vmem:[%s1 + $0x38] sm:$0xff]
    %v34 = vld [vmem:[%s1 + $0x40] sm:$0xff]
    %v35 = vld [vmem:[%s1 + $0x48] sm:$0xff]
    %v36 = vld [vmem:[%s1 + $0x50] sm:$0xff]
    %v37 = vld [vmem:[%s1 + $0x58] sm:$0xff]
    %v38 = vld [vmem:[%s1 + $0x60] sm:$0xff]
    %v39 = vld [vmem:[%s1 + $0x68] sm:$0xff]
    %v40 = vld [vmem:[%s1 + $0x70] sm:$0xff]
    %v41 = vld [vmem:[%s1 + $0x78] sm:$0xff]
    %v42 = vld [vmem:[%s1 + $0x80] sm:$0xff]
    %v43 = vld [vmem:[%s1 + $0x88] sm:$0xff]
    %v44 = vld [vmem:[%s1 + $0x90] sm:$0xff]
    %v45 = vld [vmem:[%s1 + $0x98] sm:$0xff]
    %v46 = vld [vmem:[%s1 + $0xa0] sm:$0xff]
    %v47 = vld [vmem:[%s1 + $0xa8] sm:$0xff]
    %v48 = vld [vmem:[%s1 + $0xb0] sm:$0xff]
    %v49 = vld [vmem:[%s1 + $0xb8] sm:$0xff]
    %v50 = vld [vmem:[%s1 + $0xc0] sm:$0xff]
    %v51 = vld [vmem:[%s1 + $0xc8] sm:$0xff]
    %v52 = vld [vmem:[%s1 + $0xd0] sm:$0xff]
    %v53 = vld [vmem:[%s1 + $0xd8] sm:$0xff]
    %v54 = vld [vmem:[%s1 + $0xe0] sm:$0xff]
    %v55 = vld [vmem:[%s1 + $0xe8] sm:$0xff]
    %v56 = vld [vmem:[%s1 + $0xf0] sm:$0xff]
    %v57 = vld [vmem:[%s1 + $0xf8] sm:$0xff]
    %v90 = vunpack.c.l.b16 %v26
    %v91 = vunpack.c.h.b16 %v26
    %v92 = vunpack.c.l.b16 %v27
    %v93 = vunpack.c.h.b16 %v27
    %v94 = vunpack.c.l.b16 %v28
    %v95 = vunpack.c.h.b16 %v28
    %v96 = vunpack.c.l.b16 %v29
    %v97 = vunpack.c.h.b16 %v29
    %v98 = vunpack.c.l.b16 %v30
    %v99 = vunpack.c.h.b16 %v30
    %v100 = vunpack.c.l.b16 %v31
    %v101 = vunpack.c.h.b16 %v31
    %v102 = vunpack.c.l.b16 %v32
    %v103 = vunpack.c.h.b16 %v32
    %v104 = vunpack.c.l.b16 %v33
    %v105 = vunpack.c.h.b16 %v33
    %v106 = vunpack.c.l.b16 %v34
    %v107 = vunpack.c.h.b16 %v34
    %v108 = vunpack.c.l.b16 %v35
    %v109 = vunpack.c.h.b16 %v35
    %v110 = vunpack.c.l.b16 %v36
    %v111 = vunpack.c.h.b16 %v36
    %v112 = vunpack.c.l.b16 %v37
    %v113 = vunpack.c.h.b16 %v37
    %v114 = vunpack.c.l.b16 %v38
    %v115 = vunpack.c.h.b16 %v38
    %v116 = vunpack.c.l.b16 %v39
    %v117 = vunpack.c.h.b16 %v39
    %v118 = vunpack.c.l.b16 %v40
    %v119 = vunpack.c.h.b16 %v40
    %v120 = vunpack.c.l.b16 %v41
    %v121 = vunpack.c.h.b16 %v41
    %v122 = vunpack.c.l.b16 %v42
    %v123 = vunpack.c.h.b16 %v42
    %v124 = vunpack.c.l.b16 %v43
    %v125 = vunpack.c.h.b16 %v43
    %v126 = vunpack.c.l.b16 %v44
    %v127 = vunpack.c.h.b16 %v44
    %v128 = vunpack.c.l.b16 %v45
    %v129 = vunpack.c.h.b16 %v45
    %v130 = vunpack.c.l.b16 %v46
    %v131 = vunpack.c.h.b16 %v46
    %v132 = vunpack.c.l.b16 %v47
    %v133 = vunpack.c.h.b16 %v47
    %v134 = vunpack.c.l.b16 %v48
    %v135 = vunpack.c.h.b16 %v48
    %v136 = vunpack.c.l.b16 %v49
    %v137 = vunpack.c.h.b16 %v49
    %v138 = vunpack.c.l.b16 %v50
    %v139 = vunpack.c.h.b16 %v50
    %v140 = vunpack.c.l.b16 %v51
    %v141 = vunpack.c.h.b16 %v51
    %v142 = vunpack.c.l.b16 %v52
    %v143 = vunpack.c.h.b16 %v52
    %v144 = vunpack.c.l.b16 %v53
    %v145 = vunpack.c.h.b16 %v53
    %v146 = vunpack.c.l.b16 %v54
    %v147 = vunpack.c.h.b16 %v54
    %v148 = vunpack.c.l.b16 %v55
    %v149 = vunpack.c.h.b16 %v55
    %v150 = vunpack.c.l.b16 %v56
    %v151 = vunpack.c.h.b16 %v56
    %v152 = vunpack.c.l.b16 %v57
    %v153 = vunpack.c.h.b16 %v57
    %v154 = vpack.c.b16 %v94, %v90
    %v155 = vpack.c.b16 %v95, %v91
    %v156 = vpack.c.b16 %v96, %v92
    %v157 = vpack.c.b16 %v97, %v93
    %v158 = vpack.c.b16 %v102, %v98
    %v159 = vpack.c.b16 %v103, %v99
    %v160 = vpack.c.b16 %v104, %v100
    %v161 = vpack.c.b16 %v105, %v101
    %v162 = vpack.c.b16 %v110, %v106
    %v163 = vpack.c.b16 %v111, %v107
    %v164 = vpack.c.b16 %v112, %v108
    %v165 = vpack.c.b16 %v113, %v109
    %v166 = vpack.c.b16 %v118, %v114
    %v167 = vpack.c.b16 %v119, %v115
    %v168 = vpack.c.b16 %v120, %v116
    %v169 = vpack.c.b16 %v121, %v117
    %v170 = vpack.c.b16 %v126, %v122
    %v171 = vpack.c.b16 %v127, %v123
    %v172 = vpack.c.b16 %v128, %v124
    %v173 = vpack.c.b16 %v129, %v125
    %v174 = vpack.c.b16 %v134, %v130
    %v175 = vpack.c.b16 %v135, %v131
    %v176 = vpack.c.b16 %v136, %v132
    %v177 = vpack.c.b16 %v137, %v133
    %v178 = vpack.c.b16 %v142, %v138
    %v179 = vpack.c.b16 %v143, %v139
    %v180 = vpack.c.b16 %v144, %v140
    %v181 = vpack.c.b16 %v145, %v141
    %v182 = vpack.c.b16 %v150, %v146
    %v183 = vpack.c.b16 %v151, %v147
    %v184 = vpack.c.b16 %v152, %v148
    %v185 = vpack.c.b16 %v153, %v149
    %218 = vmatprep.subr.bf16.mxu0 %v183
    %219 = vmatpush1.bf16.msra.mxu0 %v182
    %220 = vmatprep.subr.bf16.mxu0 %v179
    %221 = vmatpush1.bf16.msra.mxu0 %v178
    %222 = vmatprep.subr.bf16.mxu0 %v175
    %223 = vmatpush1.bf16.msra.mxu0 %v174
    %224 = vmatprep.subr.bf16.mxu0 %v171
    %225 = vmatpush1.bf16.msra.mxu0 %v170
    %226 = vmatprep.subr.bf16.mxu0 %v167
    %227 = vmatpush1.bf16.msra.mxu0 %v166
    %228 = vmatprep.subr.bf16.mxu0 %v163
    %229 = vmatpush1.bf16.msra.mxu0 %v162
    %230 = vmatprep.subr.bf16.mxu0 %v159
    %231 = vmatpush1.bf16.msra.mxu0 %v158
    %232 = vmatprep.subr.bf16.mxu0 %v155
    %233 = vmatpush1.bf16.msra.mxu0 %v154
    %234 = vmatprep.subr.bf16.mxu0 0
    %235 = vmatpush2.bf16.msra.mxu0 0
    %236 = vmatprep.subr.bf16.mxu0 0
    %237 = vmatpush2.bf16.msra.mxu0 0
    %238 = vmatprep.subr.bf16.mxu0 0
    %239 = vmatpush2.bf16.msra.mxu0 0
    %240 = vmatprep.subr.bf16.mxu0 0
    %241 = vmatpush2.bf16.msra.mxu0 0
    %242 = vmatprep.subr.bf16.mxu0 0
    %243 = vmatpush2.bf16.msra.mxu0 0
    %244 = vmatprep.subr.bf16.mxu0 0
    %245 = vmatpush2.bf16.msra.mxu0 0
    %246 = vmatprep.subr.bf16.mxu0 0
    %247 = vmatpush2.bf16.msra.mxu0 0
    %248 = vmatprep.subr.bf16.mxu0 0
    %249 = vmatpush2.bf16.msra.mxu0 0
    %250 = vmatprep.mubr.bf16.mxu0 0
    %251 = vmatmul.mubr.bf16.gmra.mxu0 %v25
    %v252 = vpop.f32.mrf.mxu0
    %v253 = vadd.f32 0.0, %v252
    %v254 = vpop.f32.mrf.mxu0
    %v255 = vadd.f32 0.0, %v254
    %v256 = vpop.f32.mrf.mxu0
    %v257 = vpop.f32.mrf.mxu0
    %258 = vdwg.mxu0
    %259 = vmatprep.subr.bf16.mxu0 %v185
    %260 = vmatpush1.bf16.msra.mxu0 %v184
    %261 = vmatprep.subr.bf16.mxu0 %v181
    %262 = vmatpush1.bf16.msra.mxu0 %v180
    %263 = vmatprep.subr.bf16.mxu0 %v177
    %264 = vmatpush1.bf16.msra.mxu0 %v176
    %265 = vmatprep.subr.bf16.mxu0 %v173
    %266 = vmatpush1.bf16.msra.mxu0 %v172
    %267 = vmatprep.subr.bf16.mxu0 %v169
    %268 = vmatpush1.bf16.msra.mxu0 %v168
    %269 = vmatprep.subr.bf16.mxu0 %v165
    %270 = vmatpush1.bf16.msra.mxu0 %v164
    %271 = vmatprep.subr.bf16.mxu0 %v161
    %272 = vmatpush1.bf16.msra.mxu0 %v160
    %273 = vmatprep.subr.bf16.mxu0 %v157
    %274 = vmatpush1.bf16.msra.mxu0 %v156
    %275 = vmatprep.subr.bf16.mxu0 0
    %276 = vmatpush2.bf16.msra.mxu0 0
    %277 = vmatprep.subr.bf16.mxu0 0
    %278 = vmatpush2.bf16.msra.mxu0 0
    %279 = vmatprep.subr.bf16.mxu0 0
    %280 = vmatpush2.bf16.msra.mxu0 0
    %281 = vmatprep.subr.bf16.mxu0 0
    %282 = vmatpush2.bf16.msra.mxu0 0
    %283 = vmatprep.subr.bf16.mxu0 0
    %284 = vmatpush2.bf16.msra.mxu0 0
    %285 = vmatprep.subr.bf16.mxu0 0
    %286 = vmatpush2.bf16.msra.mxu0 0
    %287 = vmatprep.subr.bf16.mxu0 0
    %288 = vmatpush2.bf16.msra.mxu0 0
    %289 = vmatprep.subr.bf16.mxu0 0
    %290 = vmatpush2.bf16.msra.mxu0 0
    %291 = vmatprep.mubr.bf16.mxu0 0
    %292 = vmatmul.mubr.bf16.gmra.mxu0 %v25
    %v293 = vpop.f32.mrf.mxu0
    %v294 = vadd.f32 0.0, %v293
    %v295 = vpop.f32.mrf.mxu0
    %v296 = vadd.f32 0.0, %v295
    %v297 = vpop.f32.mrf.mxu0
    %v298 = vpop.f32.mrf.mxu0
    %299 = vdwg.mxu0
    %v304 = vcombine.low %v253, %v255
    %v305 = vcombine.low %v294, %v296
    %v307 = vunpack.c.l.s4 1983009808
    %v308 = vunpack.c.0.s8 %v307
    %v309 = vlaneseq
    %v310 = vshrl.u32 %v309, 7
    %v311 = vsub.s32 %v308, %v310
    %v312 = vrot.slane %v304, %v311
    %v314 = vunpack.c.l.s4 1983009808
    %v315 = vunpack.c.0.s8 %v314
    %v316 = vlaneseq
    %v317 = vshrl.u32 %v316, 7
    %v318 = vsub.s32 %v315, %v317
    %v319 = vrot.slane %v305, %v318
    %v320 = vcombine.low %v312, %v319
    %v322 = vadd.f32 %v23, %v320
    %v323 = vxor.u32 %v322, 2147483648
    %v324 = vmul.f32 %v323, 1.442695
    %v325 = vpow.pop %v324
    %v326 = vadd.f32 %v325, 1.0
    %v327 = vrcp.pop %v326
    %v328 = vmul.f32 1.0, %v327
    %v330 = vrot.slane %v322, 2
    %v332 = vxor.u32 %v330, 2147483648
    %v333 = vmul.f32 %v332, 1.442695
    %v334 = vpow.pop %v333
    %v335 = vadd.f32 %v334, 1.0
    %v336 = vrcp.pop %v335
    %v337 = vmul.f32 1.0, %v336
    %v338 = vrot.slane %v322, 4
    %v340 = vtanh.pop %v338
    %v341 = vrot.slane %v322, 6
    %v343 = vxor.u32 %v341, 2147483648
    %v344 = vmul.f32 %v343, 1.442695
    %v345 = vpow.pop %v344
    %v346 = vadd.f32 %v345, 1.0
    %v347 = vrcp.pop %v346
    %v348 = vmul.f32 1.0, %v347
    %v349 = vld [vmem:[#allocation3] sm:$0x3]
    %v350 = vmul.f32 %v337, %v349
    %v351 = vmul.f32 %v328, %v340
    %v352 = vadd.f32 %v350, %v351
    %v353 = vtanh.pop %v352
    %v354 = vmul.f32 %v348, %v353
    %355 = vst [vmem:[#allocation3] sm:$0x3] %v352
    %356 = vst [vmem:[#allocation2] sm:$0x3] %v354
    %v357 = vpack.c.bf16 %v354, %v354
    %s358 = scalar_lea.vmem %s2, %s15
    %359 = vst [vmem:[%s358] sm:$0x1] %v357
  $region14: #{mel_clcnn_forward.31} parent=0 // loop_footer
    %s19 = sadd.s32 1, %s15
  $region15: #{mel_clcnn_forward.31} parent=0 // loop_footer_branch
    %14 = sbr.rel target = $region11
  $region16: #{mel_clcnn_forward.31} parent=0 // loop_exit
    _
  // Predicated region
  $region17: #{mel_clcnn_forward.31} parent=0 // pred_check
    _
  $region18: #{mel_clcnn_forward.31} parent=0 // pred_check_branch
    %361 = sbr.rel (0) target = $region20
  $region19: #{mel_clcnn_forward.31} parent=0 // pred_region
    _
  $region20: #{mel_clcnn_forward.31} parent=0 // pred_fallthru
    _
  // Predicated region
  $region21: #{mel_clcnn_forward.31} parent=0 // pred_check
    _
  $region22: #{mel_clcnn_forward.31} parent=0 // pred_check_branch
    %363 = sbr.rel (0) target = $region24
  $region23: #{mel_clcnn_forward.31} parent=0 // pred_region
    _
  $region24: #{mel_clcnn_forward.31} parent=0 // pred_fallthru
    _

// kernel: mel_clcnn_forward.32
$region0: #{mel_clcnn_forward.32}
  #allocation0 [shape = 'u32[]', space=smem, size = 0x4, offset = 0x4, fixed_abs, tag = 'smem constant byte address 0x4 - core index']
  #allocation1 [shape = 'u32[144,128]{1,0:T(1,128)}', space=vmem, size = 0x12000, scoped, tag = 'internal scratch']
  %s0 = inlined_call_operand.vmem [shape: bf16[16,128], index: 0, kind: input, shape index: {}]
  %s1 = inlined_call_operand.vmem [shape: bf16[128,128], index: 1, kind: input, shape index: {}]
  %s2 = inlined_call_operand.vmem [shape: f32[1,128], index: 2, kind: input, shape index: {}]
  %s3 = inlined_call_operand.vmem [shape: bf16[16,128], index: 3, kind: output, shape index: {}]
  %s4 = sld [smem:[#allocation0]]
  $region22: #{mel_clcnn_forward.32} parent=0
    _
  %s6 = ssub.s32 1, %s4
  %s7 = scalar_select 0, %s6, %s4
  // Predicated region
  $region2: #{mel_clcnn_forward.32} parent=0 // pred_check
    _
  $region3: #{mel_clcnn_forward.32} parent=0 // pred_check_branch
    %9 = sbr.rel (0) target = $region5
  $region4: #{mel_clcnn_forward.32} parent=0 // pred_region
    _
  $region5: #{mel_clcnn_forward.32} parent=0 // pred_fallthru
    _
  // Predicated region
  $region6: #{mel_clcnn_forward.32} parent=0 // pred_check
    _
  $region7: #{mel_clcnn_forward.32} parent=0 // pred_check_branch
    %11 = sbr.rel (0) target = $region9
  $region8: #{mel_clcnn_forward.32} parent=0 // pred_region
    _
  $region9: #{mel_clcnn_forward.32} parent=0 // pred_fallthru
    _
  // Predicated region
  $region10: #{mel_clcnn_forward.32} parent=0 // pred_check
    _
  $region11: #{mel_clcnn_forward.32} parent=0 // pred_check_branch
    %13 = sbr.rel (0) target = $region13
  $region12: #{mel_clcnn_forward.32} parent=0 // pred_region
    _
  $region13: #{mel_clcnn_forward.32} parent=0 // pred_fallthru
    _
  %v15 = vld [vmem:[%s0] sm:$0xf]
  %v16 = vld [vmem:[%s0 + $0x4] sm:$0xf]
  %v17 = vld [vmem:[%s1] sm:$0xf]
  %v18 = vld [vmem:[%s1 + $0x4] sm:$0xf]
  %v19 = vld [vmem:[%s1 + $0x8] sm:$0xf]
  %v20 = vld [vmem:[%s1 + $0xc] sm:$0xf]
  %v21 = vld [vmem:[%s1 + $0x10] sm:$0xf]
  %v22 = vld [vmem:[%s1 + $0x14] sm:$0xf]
  %v23 = vld [vmem:[%s1 + $0x18] sm:$0xf]
  %v24 = vld [vmem:[%s1 + $0x1c] sm:$0xf]
  %v25 = vld [vmem:[%s1 + $0x20] sm:$0xf]
  %v26 = vld [vmem:[%s1 + $0x24] sm:$0xf]
  %v27 = vld [vmem:[%s1 + $0x28] sm:$0xf]
  %v28 = vld [vmem:[%s1 + $0x2c] sm:$0xf]
  %v29 = vld [vmem:[%s1 + $0x30] sm:$0xf]
  %v30 = vld [vmem:[%s1 + $0x34] sm:$0xf]
  %v31 = vld [vmem:[%s1 + $0x38] sm:$0xf]
  %v32 = vld [vmem:[%s1 + $0x3c] sm:$0xf]
  %v33 = vld [vmem:[%s2] sm:$0x1]
  %v35 = vlaneseq
  %v36 = vshrl.u32 %v35, 7
  %v37 = vsub.s32 0, %v36
  %v38 = vrot.slane %v33, %v37
  %v42 = vunpack.c.l.b16 %v15
  %v43 = vunpack.c.l.b16 %v16
  %v44 = vpack.c.b16 %v43, %v42
  %v62 = vunpack.c.l.b16 %v17
  %v63 = vunpack.c.l.b16 %v18
  %v64 = vunpack.c.l.b16 %v19
  %v65 = vunpack.c.l.b16 %v20
  %v66 = vunpack.c.l.b16 %v21
  %v67 = vunpack.c.l.b16 %v22
  %v68 = vunpack.c.l.b16 %v23
  %v69 = vunpack.c.l.b16 %v24
  %v70 = vunpack.c.l.b16 %v25
  %v71 = vunpack.c.l.b16 %v26
  %v72 = vunpack.c.l.b16 %v27
  %v73 = vunpack.c.l.b16 %v28
  %v74 = vunpack.c.l.b16 %v29
  %v75 = vunpack.c.l.b16 %v30
  %v76 = vunpack.c.l.b16 %v31
  %v77 = vunpack.c.l.b16 %v32
  %v78 = vpack.c.b16 %v63, %v62
  %v79 = vpack.c.b16 %v65, %v64
  %v80 = vpack.c.b16 %v67, %v66
  %v81 = vpack.c.b16 %v69, %v68
  %v82 = vpack.c.b16 %v71, %v70
  %v83 = vpack.c.b16 %v73, %v72
  %v84 = vpack.c.b16 %v75, %v74
  %v85 = vpack.c.b16 %v77, %v76
  %94 = vmatprep.subr.bf16.mxu0 0
  %95 = vmatpush1.bf16.msra.mxu0 %v85
  %96 = vmatprep.subr.bf16.mxu0 0
  %97 = vmatpush1.bf16.msra.mxu0 %v84
  %98 = vmatprep.subr.bf16.mxu0 0
  %99 = vmatpush1.bf16.msra.mxu0 %v83
  %100 = vmatprep.subr.bf16.mxu0 0
  %101 = vmatpush1.bf16.msra.mxu0 %v82
  %102 = vmatprep.subr.bf16.mxu0 0
  %103 = vmatpush1.bf16.msra.mxu0 %v81
  %104 = vmatprep.subr.bf16.mxu0 0
  %105 = vmatpush1.bf16.msra.mxu0 %v80
  %106 = vmatprep.subr.bf16.mxu0 0
  %107 = vmatpush1.bf16.msra.mxu0 %v79
  %108 = vmatprep.subr.bf16.mxu0 0
  %109 = vmatpush1.bf16.msra.mxu0 %v78
  %110 = vmatprep.subr.bf16.mxu0 0
  %111 = vmatpush2.bf16.msra.mxu0 0
  %112 = vmatprep.subr.bf16.mxu0 0
  %113 = vmatpush2.bf16.msra.mxu0 0
  %114 = vmatprep.subr.bf16.mxu0 0
  %115 = vmatpush2.bf16.msra.mxu0 0
  %116 = vmatprep.subr.bf16.mxu0 0
  %117 = vmatpush2.bf16.msra.mxu0 0
  %118 = vmatprep.subr.bf16.mxu0 0
  %119 = vmatpush2.bf16.msra.mxu0 0
  %120 = vmatprep.subr.bf16.mxu0 0
  %121 = vmatpush2.bf16.msra.mxu0 0
  %122 = vmatprep.subr.bf16.mxu0 0
  %123 = vmatpush2.bf16.msra.mxu0 0
  %124 = vmatprep.subr.bf16.mxu0 0
  %125 = vmatpush2.bf16.msra.mxu0 0
  %126 = vmatprep.mubr.bf16.mxu0 0
  %127 = vmatmul.mubr.bf16.gmra.mxu0 %v44
  %v128 = vpop.f32.mrf.mxu0
  %v129 = vadd.f32 %v38, %v128
  %v130 = vpop.f32.mrf.mxu0
  %v131 = vpop.f32.mrf.mxu0
  %v132 = vadd.f32 %v38, %v131
  %v133 = vpop.f32.mrf.mxu0
  %134 = vdwg.mxu0
  %vm135 = vcmp.ge.f32.partialorder %v129, 0.0
  %vm136 = vcmp.ge.f32.partialorder %v132, 0.0
  %v137 = vmul.f32 %v129, 0.2
  %v138 = vmul.f32 %v132, 0.2
  %v139 = vsel %vm135, %v129, %v137
  %v140 = vsel %vm136, %v132, %v138
  %v141 = vpack.c.bf16 %v140, %v139
  %v143 = vunpack.c.l.b16 %v141
  %v144 = vunpack.c.h.b16 %v141
  %v145 = vpack.c.b16 %v143, %v143
  %v146 = vpack.c.b16 %v144, %v144
  %149 = vst [vmem:[%s3] sm:$0xf] %v145
  %150 = vst [vmem:[%s3 + $0x4] sm:$0xf] %v146
  // Predicated region
  $region14: #{mel_clcnn_forward.32} parent=0 // pred_check
    _
  $region15: #{mel_clcnn_forward.32} parent=0 // pred_check_branch
    %152 = sbr.rel (0) target = $region17
  $region16: #{mel_clcnn_forward.32} parent=0 // pred_region
    _
  $region17: #{mel_clcnn_forward.32} parent=0 // pred_fallthru
    _
  // Predicated region
  $region18: #{mel_clcnn_forward.32} parent=0 // pred_check
    _
  $region19: #{mel_clcnn_forward.32} parent=0 // pred_check_branch
    %154 = sbr.rel (0) target = $region21
  $region20: #{mel_clcnn_forward.32} parent=0 // pred_region
    _
  $region21: #{mel_clcnn_forward.32} parent=0 // pred_fallthru
    _

// kernel: mel_clcnn_forward.33
$region0: #{mel_clcnn_forward.33}
  #allocation0 [shape = 'u32[]', space=smem, size = 0x4, offset = 0x4, fixed_abs, tag = 'smem constant byte address 0x4 - core index']
  #allocation1 [shape = 'u32[144,128]{1,0:T(1,128)}', space=vmem, size = 0x12000, scoped, tag = 'internal scratch']
  %s0 = inlined_call_operand.vmem [shape: bf16[16,288], index: 0, kind: input, shape index: {}]
  %s1 = inlined_call_operand.vmem [shape: bf16[288,128], index: 1, kind: input, shape index: {}]
  %s2 = inlined_call_operand.vmem [shape: f32[16,1], index: 2, kind: input, shape index: {}]
  %s3 = inlined_call_operand.vmem [shape: bf16[16,128], index: 3, kind: output, shape index: {}]
  %s4 = sld [smem:[#allocation0]]
  $region22: #{mel_clcnn_forward.33} parent=0
    _
  %s6 = ssub.s32 1, %s4
  %s7 = scalar_select 0, %s6, %s4
  // Predicated region
  $region2: #{mel_clcnn_forward.33} parent=0 // pred_check
    _
  $region3: #{mel_clcnn_forward.33} parent=0 // pred_check_branch
    %9 = sbr.rel (0) target = $region5
  $region4: #{mel_clcnn_forward.33} parent=0 // pred_region
    _
  $region5: #{mel_clcnn_forward.33} parent=0 // pred_fallthru
    _
  // Predicated region
  $region6: #{mel_clcnn_forward.33} parent=0 // pred_check
    _
  $region7: #{mel_clcnn_forward.33} parent=0 // pred_check_branch
    %11 = sbr.rel (0) target = $region9
  $region8: #{mel_clcnn_forward.33} parent=0 // pred_region
    _
  $region9: #{mel_clcnn_forward.33} parent=0 // pred_fallthru
    _
  // Predicated region
  $region10: #{mel_clcnn_forward.33} parent=0 // pred_check
    _
  $region11: #{mel_clcnn_forward.33} parent=0 // pred_check_branch
    %13 = sbr.rel (0) target = $region13
  $region12: #{mel_clcnn_forward.33} parent=0 // pred_region
    _
  $region13: #{mel_clcnn_forward.33} parent=0 // pred_fallthru
    _
  %v15 = vld [vmem:[%s0] sm:$0xff]
  %v16 = vld [vmem:[%s0 + $0x8] sm:$0xf]
  %v17 = vld [vmem:[%s0 + $0xc] sm:$0xff]
  %v18 = vld [vmem:[%s0 + $0x14] sm:$0xf]
  %v19 = vld [vmem:[%s1] sm:$0xf]
  %v20 = vld [vmem:[%s1 + $0x4] sm:$0xf]
  %v21 = vld [vmem:[%s1 + $0x8] sm:$0xf]
  %v22 = vld [vmem:[%s1 + $0xc] sm:$0xf]
  %v23 = vld [vmem:[%s1 + $0x10] sm:$0xf]
  %v24 = vld [vmem:[%s1 + $0x14] sm:$0xf]
  %v25 = vld [vmem:[%s1 + $0x18] sm:$0xf]
  %v26 = vld [vmem:[%s1 + $0x1c] sm:$0xf]
  %v27 = vld [vmem:[%s1 + $0x20] sm:$0xf]
  %v28 = vld [vmem:[%s1 + $0x24] sm:$0xf]
  %v29 = vld [vmem:[%s1 + $0x28] sm:$0xf]
  %v30 = vld [vmem:[%s1 + $0x2c] sm:$0xf]
  %v31 = vld [vmem:[%s1 + $0x30] sm:$0xf]
  %v32 = vld [vmem:[%s1 + $0x34] sm:$0xf]
  %v33 = vld [vmem:[%s1 + $0x38] sm:$0xf]
  %v34 = vld [vmem:[%s1 + $0x3c] sm:$0xf]
  %v35 = vld [vmem:[%s1 + $0x40] sm:$0xf]
  %v36 = vld [vmem:[%s1 + $0x44] sm:$0xf]
  %v37 = vld [vmem:[%s1 + $0x48] sm:$0xf]
  %v38 = vld [vmem:[%s1 + $0x4c] sm:$0xf]
  %v39 = vld [vmem:[%s1 + $0x50] sm:$0xf]
  %v40 = vld [vmem:[%s1 + $0x54] sm:$0xf]
  %v41 = vld [vmem:[%s1 + $0x58] sm:$0xf]
  %v42 = vld [vmem:[%s1 + $0x5c] sm:$0xf]
  %v43 = vld [vmem:[%s1 + $0x60] sm:$0xf]
  %v44 = vld [vmem:[%s1 + $0x64] sm:$0xf]
  %v45 = vld [vmem:[%s1 + $0x68] sm:$0xf]
  %v46 = vld [vmem:[%s1 + $0x6c] sm:$0xf]
  %v47 = vld [vmem:[%s1 + $0x70] sm:$0xf]
  %v48 = vld [vmem:[%s1 + $0x74] sm:$0xf]
  %v49 = vld [vmem:[%s1 + $0x78] sm:$0xf]
  %v50 = vld [vmem:[%s1 + $0x7c] sm:$0xf]
  %v51 = vld [vmem:[%s1 + $0x80] sm:$0xf]
  %v52 = vld [vmem:[%s1 + $0x84] sm:$0xf]
  %v53 = vld [vmem:[%s1 + $0x88] sm:$0xf]
  %v54 = vld [vmem:[%s1 + $0x8c] sm:$0xf]
  %v55 = vld [vmem:[%s2] sm:$0xff]
  %v56 = vld [vmem:[%s2 + $0x8] sm:$0xff]
  %58 = vset.pattern.permute.xlu0 0
  %59 = vperm.xlu0 %58, %v55
  %v60 = vpop.permute.xlu0 %59
  %63 = vset.pattern.permute.xlu0 0
  %64 = vperm.xlu0 %63, %v56
  %v65 = vpop.permute.xlu0 %64
  %v71 = vunpack.c.l.b16 %v15
  %v72 = vunpack.c.h.b16 %v15
  %v73 = vunpack.c.l.b16 %v16
  %v74 = vunpack.c.l.b16 %v17
  %v75 = vunpack.c.h.b16 %v17
  %v76 = vunpack.c.l.b16 %v18
  %v77 = vpack.c.b16 %v74, %v71
  %v78 = vpack.c.b16 %v75, %v72
  %v79 = vpack.c.b16 %v76, %v73
  %v118 = vunpack.c.l.b16 %v19
  %v119 = vunpack.c.l.b16 %v20
  %v120 = vunpack.c.l.b16 %v21
  %v121 = vunpack.c.l.b16 %v22
  %v122 = vunpack.c.l.b16 %v23
  %v123 = vunpack.c.l.b16 %v24
  %v124 = vunpack.c.l.b16 %v25
  %v125 = vunpack.c.l.b16 %v26
  %v126 = vunpack.c.l.b16 %v27
  %v127 = vunpack.c.l.b16 %v28
  %v128 = vunpack.c.l.b16 %v29
  %v129 = vunpack.c.l.b16 %v30
  %v130 = vunpack.c.l.b16 %v31
  %v131 = vunpack.c.l.b16 %v32
  %v132 = vunpack.c.l.b16 %v33
  %v133 = vunpack.c.l.b16 %v34
  %v134 = vunpack.c.l.b16 %v35
  %v135 = vunpack.c.l.b16 %v36
  %v136 = vunpack.c.l.b16 %v37
  %v137 = vunpack.c.l.b16 %v38
  %v138 = vunpack.c.l.b16 %v39
  %v139 = vunpack.c.l.b16 %v40
  %v140 = vunpack.c.l.b16 %v41
  %v141 = vunpack.c.l.b16 %v42
  %v142 = vunpack.c.l.b16 %v43
  %v143 = vunpack.c.l.b16 %v44
  %v144 = vunpack.c.l.b16 %v45
  %v145 = vunpack.c.l.b16 %v46
  %v146 = vunpack.c.l.b16 %v47
  %v147 = vunpack.c.l.b16 %v48
  %v148 = vunpack.c.l.b16 %v49
  %v149 = vunpack.c.l.b16 %v50
  %v150 = vunpack.c.l.b16 %v51
  %v151 = vunpack.c.l.b16 %v52
  %v152 = vunpack.c.l.b16 %v53
  %v153 = vunpack.c.l.b16 %v54
  %v154 = vpack.c.b16 %v119, %v118
  %v155 = vpack.c.b16 %v121, %v120
  %v156 = vpack.c.b16 %v123, %v122
  %v157 = vpack.c.b16 %v125, %v124
  %v158 = vpack.c.b16 %v127, %v126
  %v159 = vpack.c.b16 %v129, %v128
  %v160 = vpack.c.b16 %v131, %v130
  %v161 = vpack.c.b16 %v133, %v132
  %v162 = vpack.c.b16 %v135, %v134
  %v163 = vpack.c.b16 %v137, %v136
  %v164 = vpack.c.b16 %v139, %v138
  %v165 = vpack.c.b16 %v141, %v140
  %v166 = vpack.c.b16 %v143, %v142
  %v167 = vpack.c.b16 %v145, %v144
  %v168 = vpack.c.b16 %v147, %v146
  %v169 = vpack.c.b16 %v149, %v148
  %v170 = vpack.c.b16 %v151, %v150
  %v171 = vpack.c.b16 %v153, %v152
  %vm190 = vcmask 261120
  %v192 = vsel %vm190, %v79, 0
  %194 = vmatprep.subr.bf16.mxu0 0
  %195 = vmatpush1.bf16.msra.mxu0 %v161
  %196 = vmatprep.subr.bf16.mxu0 0
  %197 = vmatpush1.bf16.msra.mxu0 %v160
  %198 = vmatprep.subr.bf16.mxu0 0
  %199 = vmatpush1.bf16.msra.mxu0 %v159
  %200 = vmatprep.subr.bf16.mxu0 0
  %201 = vmatpush1.bf16.msra.mxu0 %v158
  %202 = vmatprep.subr.bf16.mxu0 0
  %203 = vmatpush1.bf16.msra.mxu0 %v157
  %204 = vmatprep.subr.bf16.mxu0 0
  %205 = vmatpush1.bf16.msra.mxu0 %v156
  %206 = vmatprep.subr.bf16.mxu0 0
  %207 = vmatpush1.bf16.msra.mxu0 %v155
  %208 = vmatprep.subr.bf16.mxu0 0
  %209 = vmatpush1.bf16.msra.mxu0 %v154
  %210 = vmatprep.subr.bf16.mxu0 0
  %211 = vmatpush2.bf16.msra.mxu0 %v169
  %212 = vmatprep.subr.bf16.mxu0 0
  %213 = vmatpush2.bf16.msra.mxu0 %v168
  %214 = vmatprep.subr.bf16.mxu0 0
  %215 = vmatpush2.bf16.msra.mxu0 %v167
  %216 = vmatprep.subr.bf16.mxu0 0
  %217 = vmatpush2.bf16.msra.mxu0 %v166
  %218 = vmatprep.subr.bf16.mxu0 0
  %219 = vmatpush2.bf16.msra.mxu0 %v165
  %220 = vmatprep.subr.bf16.mxu0 0
  %221 = vmatpush2.bf16.msra.mxu0 %v164
  %222 = vmatprep.subr.bf16.mxu0 0
  %223 = vmatpush2.bf16.msra.mxu0 %v163
  %224 = vmatprep.subr.bf16.mxu0 0
  %225 = vmatpush2.bf16.msra.mxu0 %v162
  %226 = vmatprep.mubr.bf16.mxu0 %v78
  %227 = vmatmul.mubr.bf16.gmra.mxu0 %v77
  %v228 = vpop.f32.mrf.mxu0
  %v229 = vadd.f32 %v60, %v228
  %v230 = vpop.f32.mrf.mxu0
  %v231 = vpop.f32.mrf.mxu0
  %v232 = vadd.f32 %v65, %v231
  %v233 = vpop.f32.mrf.mxu0
  %234 = vdwg.mxu0
  %235 = vmatprep.subr.bf16.mxu0 0
  %236 = vmatpush1.bf16.msra.mxu0 0
  %237 = vmatprep.subr.bf16.mxu0 0
  %238 = vmatpush1.bf16.msra.mxu0 0
  %239 = vmatprep.subr.bf16.mxu0 0
  %240 = vmatpush1.bf16.msra.mxu0 0
  %241 = vmatprep.subr.bf16.mxu0 0
  %242 = vmatpush1.bf16.msra.mxu0 0
  %243 = vmatprep.subr.bf16.mxu0 0
  %244 = vmatpush1.bf16.msra.mxu0 0
  %245 = vmatprep.subr.bf16.mxu0 0
  %246 = vmatpush1.bf16.msra.mxu0 0
  %247 = vmatprep.subr.bf16.mxu0 0
  %248 = vmatpush1.bf16.msra.mxu0 %v171
  %249 = vmatprep.subr.bf16.mxu0 0
  %250 = vmatpush1.bf16.msra.mxu0 %v170
  %251 = vmatprep.subr.bf16.mxu0 0
  %252 = vmatpush2.bf16.msra.mxu0 0
  %253 = vmatprep.subr.bf16.mxu0 0
  %254 = vmatpush2.bf16.msra.mxu0 0
  %255 = vmatprep.subr.bf16.mxu0 0
  %256 = vmatpush2.bf16.msra.mxu0 0
  %257 = vmatprep.subr.bf16.mxu0 0
  %258 = vmatpush2.bf16.msra.mxu0 0
  %259 = vmatprep.subr.bf16.mxu0 0
  %260 = vmatpush2.bf16.msra.mxu0 0
  %261 = vmatprep.subr.bf16.mxu0 0
  %262 = vmatpush2.bf16.msra.mxu0 0
  %263 = vmatprep.subr.bf16.mxu0 0
  %264 = vmatpush2.bf16.msra.mxu0 0
  %265 = vmatprep.subr.bf16.mxu0 0
  %266 = vmatpush2.bf16.msra.mxu0 0
  %267 = vmatprep.mubr.bf16.mxu0 0
  %268 = vmatmul.mubr.bf16.gmra.mxu0 %v192
  %v269 = vpop.f32.mrf.mxu0
  %v270 = vadd.f32 %v229, %v269
  %v271 = vpop.f32.mrf.mxu0
  %v272 = vpop.f32.mrf.mxu0
  %v273 = vadd.f32 %v232, %v272
  %v274 = vpop.f32.mrf.mxu0
  %275 = vdwg.mxu0
  %vm276 = vcmp.ge.f32.partialorder %v270, 0.0
  %vm277 = vcmp.ge.f32.partialorder %v273, 0.0
  %v278 = vmul.f32 %v270, 0.2
  %v279 = vmul.f32 %v273, 0.2
  %v280 = vsel %vm276, %v270, %v278
  %v281 = vsel %vm277, %v273, %v279
  %v282 = vpack.c.bf16 %v281, %v280
  %v284 = vunpack.c.l.b16 %v282
  %v285 = vunpack.c.h.b16 %v282
  %v286 = vpack.c.b16 %v284, %v284
  %v287 = vpack.c.b16 %v285, %v285
  %290 = vst [vmem:[%s3] sm:$0xf] %v286
  %291 = vst [vmem:[%s3 + $0x4] sm:$0xf] %v287
  // Predicated region
  $region14: #{mel_clcnn_forward.33} parent=0 // pred_check
    _
  $region15: #{mel_clcnn_forward.33} parent=0 // pred_check_branch
    %293 = sbr.rel (0) target = $region17
  $region16: #{mel_clcnn_forward.33} parent=0 // pred_region
    _
  $region17: #{mel_clcnn_forward.33} parent=0 // pred_fallthru
    _
  // Predicated region
  $region18: #{mel_clcnn_forward.33} parent=0 // pred_check
    _
  $region19: #{mel_clcnn_forward.33} parent=0 // pred_check_branch
    %295 = sbr.rel (0) target = $region21
  $region20: #{mel_clcnn_forward.33} parent=0 // pred_region
    _
  $region21: #{mel_clcnn_forward.33} parent=0 // pred_fallthru
    _

// kernel: mel_clcnn_forward.35
$region0: #{mel_clcnn_forward.35}
  #allocation0 [shape = 'u32[]', space=smem, size = 0x4, offset = 0x4, fixed_abs, tag = 'smem constant byte address 0x4 - core index']
  #allocation1 [shape = 'u32[144,128]{1,0:T(1,128)}', space=vmem, size = 0x12000, scoped, tag = 'internal scratch']
  %s0 = inlined_call_operand.vmem [shape: bf16[8,96], index: 0, kind: input, shape index: {}]
  %s1 = inlined_call_operand.vmem [shape: bf16[96,128], index: 1, kind: input, shape index: {}]
  %s2 = inlined_call_operand.vmem [shape: f32[8,1], index: 2, kind: input, shape index: {}]
  %s3 = inlined_call_operand.vmem [shape: bf16[8,128], index: 3, kind: output, shape index: {}]
  %s4 = sld [smem:[#allocation0]]
  $region22: #{mel_clcnn_forward.35} parent=0
    _
  %s6 = ssub.s32 1, %s4
  %s7 = scalar_select 0, %s6, %s4
  // Predicated region
  $region2: #{mel_clcnn_forward.35} parent=0 // pred_check
    _
  $region3: #{mel_clcnn_forward.35} parent=0 // pred_check_branch
    %9 = sbr.rel (0) target = $region5
  $region4: #{mel_clcnn_forward.35} parent=0 // pred_region
    _
  $region5: #{mel_clcnn_forward.35} parent=0 // pred_fallthru
    _
  // Predicated region
  $region6: #{mel_clcnn_forward.35} parent=0 // pred_check
    _
  $region7: #{mel_clcnn_forward.35} parent=0 // pred_check_branch
    %11 = sbr.rel (0) target = $region9
  $region8: #{mel_clcnn_forward.35} parent=0 // pred_region
    _
  $region9: #{mel_clcnn_forward.35} parent=0 // pred_fallthru
    _
  // Predicated region
  $region10: #{mel_clcnn_forward.35} parent=0 // pred_check
    _
  $region11: #{mel_clcnn_forward.35} parent=0 // pred_check_branch
    %13 = sbr.rel (0) target = $region13
  $region12: #{mel_clcnn_forward.35} parent=0 // pred_region
    _
  $region13: #{mel_clcnn_forward.35} parent=0 // pred_fallthru
    _
  %v15 = vld [vmem:[%s0] sm:$0xf]
  %v16 = vld [vmem:[%s1] sm:$0xf]
  %v17 = vld [vmem:[%s1 + $0x4] sm:$0xf]
  %v18 = vld [vmem:[%s1 + $0x8] sm:$0xf]
  %v19 = vld [vmem:[%s1 + $0xc] sm:$0xf]
  %v20 = vld [vmem:[%s1 + $0x10] sm:$0xf]
  %v21 = vld [vmem:[%s1 + $0x14] sm:$0xf]
  %v22 = vld [vmem:[%s1 + $0x18] sm:$0xf]
  %v23 = vld [vmem:[%s1 + $0x1c] sm:$0xf]
  %v24 = vld [vmem:[%s1 + $0x20] sm:$0xf]
  %v25 = vld [vmem:[%s1 + $0x24] sm:$0xf]
  %v26 = vld [vmem:[%s1 + $0x28] sm:$0xf]
  %v27 = vld [vmem:[%s1 + $0x2c] sm:$0xf]
  %v28 = vld [vmem:[%s2] sm:$0xff]
  %30 = vset.pattern.permute.xlu0 0
  %31 = vperm.xlu0 %30, %v28
  %v32 = vpop.permute.xlu0 %31
  %v46 = vunpack.c.l.b16 %v16
  %v47 = vunpack.c.l.b16 %v17
  %v48 = vunpack.c.l.b16 %v18
  %v49 = vunpack.c.l.b16 %v19
  %v50 = vunpack.c.l.b16 %v20
  %v51 = vunpack.c.l.b16 %v21
  %v52 = vunpack.c.l.b16 %v22
  %v53 = vunpack.c.l.b16 %v23
  %v54 = vunpack.c.l.b16 %v24
  %v55 = vunpack.c.l.b16 %v25
  %v56 = vunpack.c.l.b16 %v26
  %v57 = vunpack.c.l.b16 %v27
  %v58 = vpack.c.b16 %v47, %v46
  %v59 = vpack.c.b16 %v49, %v48
  %v60 = vpack.c.b16 %v51, %v50
  %v61 = vpack.c.b16 %v53, %v52
  %v62 = vpack.c.b16 %v55, %v54
  %v63 = vpack.c.b16 %v57, %v56
  %vm70 = vcmask 785408
  %v72 = vsel %vm70, %v15, 0
  %74 = vmatprep.subr.bf16.mxu0 0
  %75 = vmatpush1.bf16.msra.mxu0 0
  %76 = vmatprep.subr.bf16.mxu0 0
  %77 = vmatpush1.bf16.msra.mxu0 0
  %78 = vmatprep.subr.bf16.mxu0 0
  %79 = vmatpush1.bf16.msra.mxu0 %v63
  %80 = vmatprep.subr.bf16.mxu0 0
  %81 = vmatpush1.bf16.msra.mxu0 %v62
  %82 = vmatprep.subr.bf16.mxu0 0
  %83 = vmatpush1.bf16.msra.mxu0 %v61
  %84 = vmatprep.subr.bf16.mxu0 0
  %85 = vmatpush1.bf16.msra.mxu0 %v60
  %86 = vmatprep.subr.bf16.mxu0 0
  %87 = vmatpush1.bf16.msra.mxu0 %v59
  %88 = vmatprep.subr.bf16.mxu0 0
  %89 = vmatpush1.bf16.msra.mxu0 %v58
  %90 = vmatprep.subr.bf16.mxu0 0
  %91 = vmatpush2.bf16.msra.mxu0 0
  %92 = vmatprep.subr.bf16.mxu0 0
  %93 = vmatpush2.bf16.msra.mxu0 0
  %94 = vmatprep.subr.bf16.mxu0 0
  %95 = vmatpush2.bf16.msra.mxu0 0
  %96 = vmatprep.subr.bf16.mxu0 0
  %97 = vmatpush2.bf16.msra.mxu0 0
  %98 = vmatprep.subr.bf16.mxu0 0
  %99 = vmatpush2.bf16.msra.mxu0 0
  %100 = vmatprep.subr.bf16.mxu0 0
  %101 = vmatpush2.bf16.msra.mxu0 0
  %102 = vmatprep.subr.bf16.mxu0 0
  %103 = vmatpush2.bf16.msra.mxu0 0
  %104 = vmatprep.subr.bf16.mxu0 0
  %105 = vmatpush2.bf16.msra.mxu0 0
  %106 = vmatprep.mubr.bf16.mxu0 0
  %107 = vmatmul.mubr.bf16.gmra.mxu0 %v72
  %v108 = vpop.f32.mrf.mxu0
  %v109 = vadd.f32 %v32, %v108
  %v110 = vpop.f32.mrf.mxu0
  %v111 = vpop.f32.mrf.mxu0
  %v112 = vpop.f32.mrf.mxu0
  %113 = vdwg.mxu0
  %vm114 = vcmp.ge.f32.partialorder %v109, 0.0
  %v115 = vmul.f32 %v109, 0.2
  %v116 = vsel %vm114, %v109, %v115
  %v117 = vpack.c.bf16 %v116, %v116
  %118 = vst [vmem:[%s3] sm:$0xf] %v117
  // Predicated region
  $region14: #{mel_clcnn_forward.35} parent=0 // pred_check
    _
  $region15: #{mel_clcnn_forward.35} parent=0 // pred_check_branch
    %120 = sbr.rel (0) target = $region17
  $region16: #{mel_clcnn_forward.35} parent=0 // pred_region
    _
  $region17: #{mel_clcnn_forward.35} parent=0 // pred_fallthru
    _
  // Predicated region
  $region18: #{mel_clcnn_forward.35} parent=0 // pred_check
    _
  $region19: #{mel_clcnn_forward.35} parent=0 // pred_check_branch
    %122 = sbr.rel (0) target = $region21
  $region20: #{mel_clcnn_forward.35} parent=0 // pred_region
    _
  $region21: #{mel_clcnn_forward.35} parent=0 // pred_fallthru
    _

// kernel: mel_clcnn_forward.36
$region0: #{mel_clcnn_forward.36}
  #allocation0 [shape = 'u32[]', space=smem, size = 0x4, offset = 0x4, fixed_abs, tag = 'smem constant byte address 0x4 - core index']
  #allocation1 [shape = 'u32[144,128]{1,0:T(1,128)}', space=vmem, size = 0x12000, scoped, tag = 'internal scratch']
  %s0 = inlined_call_operand.vmem [shape: bf16[8,144], index: 0, kind: input, shape index: {}]
  %s1 = inlined_call_operand.vmem [shape: bf16[144,256], index: 1, kind: input, shape index: {}]
  %s2 = inlined_call_operand.vmem [shape: f32[8,1], index: 2, kind: input, shape index: {}]
  %s3 = inlined_call_operand.vmem [shape: bf16[8,256], index: 3, kind: output, shape index: {}]
  %s4 = sld [smem:[#allocation0]]
  $region22: #{mel_clcnn_forward.36} parent=0
    _
  %s6 = ssub.s32 1, %s4
  %s7 = scalar_select 0, %s6, %s4
  // Predicated region
  $region2: #{mel_clcnn_forward.36} parent=0 // pred_check
    _
  $region3: #{mel_clcnn_forward.36} parent=0 // pred_check_branch
    %9 = sbr.rel (0) target = $region5
  $region4: #{mel_clcnn_forward.36} parent=0 // pred_region
    _
  $region5: #{mel_clcnn_forward.36} parent=0 // pred_fallthru
    _
  // Predicated region
  $region6: #{mel_clcnn_forward.36} parent=0 // pred_check
    _
  $region7: #{mel_clcnn_forward.36} parent=0 // pred_check_branch
    %11 = sbr.rel (0) target = $region9
  $region8: #{mel_clcnn_forward.36} parent=0 // pred_region
    _
  $region9: #{mel_clcnn_forward.36} parent=0 // pred_fallthru
    _
  // Predicated region
  $region10: #{mel_clcnn_forward.36} parent=0 // pred_check
    _
  $region11: #{mel_clcnn_forward.36} parent=0 // pred_check_branch
    %13 = sbr.rel (0) target = $region13
  $region12: #{mel_clcnn_forward.36} parent=0 // pred_region
    _
  $region13: #{mel_clcnn_forward.36} parent=0 // pred_fallthru
    _
  %v15 = vld [vmem:[%s0] sm:$0xff]
  %v16 = vld [vmem:[%s1] sm:$0xff]
  %v17 = vld [vmem:[%s1 + $0x8] sm:$0xff]
  %v18 = vld [vmem:[%s1 + $0x10] sm:$0xff]
  %v19 = vld [vmem:[%s1 + $0x18] sm:$0xff]
  %v20 = vld [vmem:[%s1 + $0x20] sm:$0xff]
  %v21 = vld [vmem:[%s1 + $0x28] sm:$0xff]
  %v22 = vld [vmem:[%s1 + $0x30] sm:$0xff]
  %v23 = vld [vmem:[%s1 + $0x38] sm:$0xff]
  %v24 = vld [vmem:[%s1 + $0x40] sm:$0xff]
  %v25 = vld [vmem:[%s1 + $0x48] sm:$0xff]
  %v26 = vld [vmem:[%s1 + $0x50] sm:$0xff]
  %v27 = vld [vmem:[%s1 + $0x58] sm:$0xff]
  %v28 = vld [vmem:[%s1 + $0x60] sm:$0xff]
  %v29 = vld [vmem:[%s1 + $0x68] sm:$0xff]
  %v30 = vld [vmem:[%s1 + $0x70] sm:$0xff]
  %v31 = vld [vmem:[%s1 + $0x78] sm:$0xff]
  %v32 = vld [vmem:[%s1 + $0x80] sm:$0xff]
  %v33 = vld [vmem:[%s1 + $0x88] sm:$0xff]
  %v34 = vld [vmem:[%s2] sm:$0xff]
  %36 = vset.pattern.permute.xlu0 0
  %37 = vperm.xlu0 %36, %v34
  %v38 = vpop.permute.xlu0 %37
  %v41 = vunpack.c.l.b16 %v15
  %v42 = vunpack.c.h.b16 %v15
  %v43 = vpack.c.b16 %v41, %v41
  %v44 = vpack.c.b16 %v42, %v42
  %v64 = vunpack.c.l.b16 %v16
  %v65 = vunpack.c.h.b16 %v16
  %v66 = vunpack.c.l.b16 %v17
  %v67 = vunpack.c.h.b16 %v17
  %v68 = vunpack.c.l.b16 %v18
  %v69 = vunpack.c.h.b16 %v18
  %v70 = vunpack.c.l.b16 %v19
  %v71 = vunpack.c.h.b16 %v19
  %v72 = vunpack.c.l.b16 %v20
  %v73 = vunpack.c.h.b16 %v20
  %v74 = vunpack.c.l.b16 %v21
  %v75 = vunpack.c.h.b16 %v21
  %v76 = vunpack.c.l.b16 %v22
  %v77 = vunpack.c.h.b16 %v22
  %v78 = vunpack.c.l.b16 %v23
  %v79 = vunpack.c.h.b16 %v23
  %v80 = vunpack.c.l.b16 %v24
  %v81 = vunpack.c.h.b16 %v24
  %v82 = vunpack.c.l.b16 %v25
  %v83 = vunpack.c.h.b16 %v25
  %v84 = vunpack.c.l.b16 %v26
  %v85 = vunpack.c.h.b16 %v26
  %v86 = vunpack.c.l.b16 %v27
  %v87 = vunpack.c.h.b16 %v27
  %v88 = vunpack.c.l.b16 %v28
  %v89 = vunpack.c.h.b16 %v28
  %v90 = vunpack.c.l.b16 %v29
  %v91 = vunpack.c.h.b16 %v29
  %v92 = vunpack.c.l.b16 %v30
  %v93 = vunpack.c.h.b16 %v30
  %v94 = vunpack.c.l.b16 %v31
  %v95 = vunpack.c.h.b16 %v31
  %v96 = vunpack.c.l.b16 %v32
  %v97 = vunpack.c.h.b16 %v32
  %v98 = vunpack.c.l.b16 %v33
  %v99 = vunpack.c.h.b16 %v33
  %v100 = vpack.c.b16 %v66, %v64
  %v101 = vpack.c.b16 %v67, %v65
  %v102 = vpack.c.b16 %v70, %v68
  %v103 = vpack.c.b16 %v71, %v69
  %v104 = vpack.c.b16 %v74, %v72
  %v105 = vpack.c.b16 %v75, %v73
  %v106 = vpack.c.b16 %v78, %v76
  %v107 = vpack.c.b16 %v79, %v77
  %v108 = vpack.c.b16 %v82, %v80
  %v109 = vpack.c.b16 %v83, %v81
  %v110 = vpack.c.b16 %v86, %v84
  %v111 = vpack.c.b16 %v87, %v85
  %v112 = vpack.c.b16 %v90, %v88
  %v113 = vpack.c.b16 %v91, %v89
  %v114 = vpack.c.b16 %v94, %v92
  %v115 = vpack.c.b16 %v95, %v93
  %v116 = vpack.c.b16 %v98, %v96
  %v117 = vpack.c.b16 %v99, %v97
  %vm136 = vcmask 130048
  %v138 = vsel %vm136, %v44, 0
  %140 = vmatprep.subr.bf16.mxu0 %v115
  %141 = vmatpush1.bf16.msra.mxu0 %v114
  %142 = vmatprep.subr.bf16.mxu0 %v113
  %143 = vmatpush1.bf16.msra.mxu0 %v112
  %144 = vmatprep.subr.bf16.mxu0 %v111
  %145 = vmatpush1.bf16.msra.mxu0 %v110
  %146 = vmatprep.subr.bf16.mxu0 %v109
  %147 = vmatpush1.bf16.msra.mxu0 %v108
  %148 = vmatprep.subr.bf16.mxu0 %v107
  %149 = vmatpush1.bf16.msra.mxu0 %v106
  %150 = vmatprep.subr.bf16.mxu0 %v105
  %151 = vmatpush1.bf16.msra.mxu0 %v104
  %152 = vmatprep.subr.bf16.mxu0 %v103
  %153 = vmatpush1.bf16.msra.mxu0 %v102
  %154 = vmatprep.subr.bf16.mxu0 %v101
  %155 = vmatpush1.bf16.msra.mxu0 %v100
  %156 = vmatprep.subr.bf16.mxu0 0
  %157 = vmatpush2.bf16.msra.mxu0 0
  %158 = vmatprep.subr.bf16.mxu0 0
  %159 = vmatpush2.bf16.msra.mxu0 0
  %160 = vmatprep.subr.bf16.mxu0 0
  %161 = vmatpush2.bf16.msra.mxu0 0
  %162 = vmatprep.subr.bf16.mxu0 0
  %163 = vmatpush2.bf16.msra.mxu0 0
  %164 = vmatprep.subr.bf16.mxu0 0
  %165 = vmatpush2.bf16.msra.mxu0 0
  %166 = vmatprep.subr.bf16.mxu0 0
  %167 = vmatpush2.bf16.msra.mxu0 0
  %168 = vmatprep.subr.bf16.mxu0 0
  %169 = vmatpush2.bf16.msra.mxu0 0
  %170 = vmatprep.subr.bf16.mxu0 %v117
  %171 = vmatpush2.bf16.msra.mxu0 %v116
  %172 = vmatprep.mubr.bf16.mxu0 %v138
  %173 = vmatmul.mubr.bf16.gmra.mxu0 %v43
  %v174 = vpop.f32.mrf.mxu0
  %v175 = vadd.f32 %v38, %v174
  %v176 = vpop.f32.mrf.mxu0
  %v177 = vadd.f32 %v38, %v176
  %v178 = vpop.f32.mrf.mxu0
  %v179 = vpop.f32.mrf.mxu0
  %180 = vdwg.mxu0
  %vm181 = vcmp.ge.f32.partialorder %v175, 0.0
  %vm182 = vcmp.ge.f32.partialorder %v177, 0.0
  %v183 = vmul.f32 %v175, 0.2
  %v184 = vmul.f32 %v177, 0.2
  %v185 = vsel %vm181, %v175, %v183
  %v186 = vsel %vm182, %v177, %v184
  %v187 = vpack.c.bf16 %v185, %v185
  %v188 = vpack.c.bf16 %v186, %v186
  %v191 = vunpack.c.l.b16 %v187
  %v192 = vunpack.c.l.b16 %v188
  %v193 = vpack.c.b16 %v192, %v191
  %195 = vst [vmem:[%s3] sm:$0xff] %v193
  // Predicated region
  $region14: #{mel_clcnn_forward.36} parent=0 // pred_check
    _
  $region15: #{mel_clcnn_forward.36} parent=0 // pred_check_branch
    %197 = sbr.rel (0) target = $region17
  $region16: #{mel_clcnn_forward.36} parent=0 // pred_region
    _
  $region17: #{mel_clcnn_forward.36} parent=0 // pred_fallthru
    _
  // Predicated region
  $region18: #{mel_clcnn_forward.36} parent=0 // pred_check
    _
  $region19: #{mel_clcnn_forward.36} parent=0 // pred_check_branch
    %199 = sbr.rel (0) target = $region21
  $region20: #{mel_clcnn_forward.36} parent=0 // pred_region
    _
  $region21: #{mel_clcnn_forward.36} parent=0 // pred_fallthru
    _

// kernel: mel_clcnn_forward.40
$region0: #{mel_clcnn_forward.40}
  #allocation0 [shape = 'u32[]', space=smem, size = 0x4, offset = 0x4, fixed_abs, tag = 'smem constant byte address 0x4 - core index']
  #allocation1 [shape = 'u32[144,128]{1,0:T(1,128)}', space=vmem, size = 0x12000, scoped, tag = 'internal scratch']
  %s0 = inlined_call_operand.vmem [shape: bf16[8,72], index: 0, kind: input, shape index: {}]
  %s1 = inlined_call_operand.vmem [shape: bf16[72,384], index: 1, kind: input, shape index: {}]
  %s2 = inlined_call_operand.vmem [shape: f32[8,1], index: 2, kind: input, shape index: {}]
  %s3 = inlined_call_operand.vmem [shape: bf16[8,384], index: 3, kind: output, shape index: {}]
  %s4 = sld [smem:[#allocation0]]
  $region22: #{mel_clcnn_forward.40} parent=0
    _
  %s6 = ssub.s32 1, %s4
  %s7 = scalar_select 0, %s6, %s4
  // Predicated region
  $region2: #{mel_clcnn_forward.40} parent=0 // pred_check
    _
  $region3: #{mel_clcnn_forward.40} parent=0 // pred_check_branch
    %9 = sbr.rel (0) target = $region5
  $region4: #{mel_clcnn_forward.40} parent=0 // pred_region
    _
  $region5: #{mel_clcnn_forward.40} parent=0 // pred_fallthru
    _
  // Predicated region
  $region6: #{mel_clcnn_forward.40} parent=0 // pred_check
    _
  $region7: #{mel_clcnn_forward.40} parent=0 // pred_check_branch
    %11 = sbr.rel (0) target = $region9
  $region8: #{mel_clcnn_forward.40} parent=0 // pred_region
    _
  $region9: #{mel_clcnn_forward.40} parent=0 // pred_fallthru
    _
  // Predicated region
  $region10: #{mel_clcnn_forward.40} parent=0 // pred_check
    _
  $region11: #{mel_clcnn_forward.40} parent=0 // pred_check_branch
    %13 = sbr.rel (0) target = $region13
  $region12: #{mel_clcnn_forward.40} parent=0 // pred_region
    _
  $region13: #{mel_clcnn_forward.40} parent=0 // pred_fallthru
    _
  %v15 = vld [vmem:[%s0] sm:$0xf]
  %v16 = vld [vmem:[%s1] sm:$0xff]
  %v17 = vld [vmem:[%s1 + $0x8] sm:$0xf]
  %v18 = vld [vmem:[%s1 + $0xc] sm:$0xff]
  %v19 = vld [vmem:[%s1 + $0x14] sm:$0xf]
  %v20 = vld [vmem:[%s1 + $0x18] sm:$0xff]
  %v21 = vld [vmem:[%s1 + $0x20] sm:$0xf]
  %v22 = vld [vmem:[%s1 + $0x24] sm:$0xff]
  %v23 = vld [vmem:[%s1 + $0x2c] sm:$0xf]
  %v24 = vld [vmem:[%s1 + $0x30] sm:$0xff]
  %v25 = vld [vmem:[%s1 + $0x38] sm:$0xf]
  %v26 = vld [vmem:[%s1 + $0x3c] sm:$0xff]
  %v27 = vld [vmem:[%s1 + $0x44] sm:$0xf]
  %v28 = vld [vmem:[%s1 + $0x48] sm:$0xff]
  %v29 = vld [vmem:[%s1 + $0x50] sm:$0xf]
  %v30 = vld [vmem:[%s1 + $0x54] sm:$0xff]
  %v31 = vld [vmem:[%s1 + $0x5c] sm:$0xf]
  %v32 = vld [vmem:[%s1 + $0x60] sm:$0xff]
  %v33 = vld [vmem:[%s1 + $0x68] sm:$0xf]
  %v34 = vld [vmem:[%s2] sm:$0xff]
  %36 = vset.pattern.permute.xlu0 0
  %37 = vperm.xlu0 %36, %v34
  %v38 = vpop.permute.xlu0 %37
  %v58 = vunpack.c.l.b16 %v16
  %v59 = vunpack.c.h.b16 %v16
  %v60 = vunpack.c.l.b16 %v17
  %v61 = vunpack.c.l.b16 %v18
  %v62 = vunpack.c.h.b16 %v18
  %v63 = vunpack.c.l.b16 %v19
  %v64 = vunpack.c.l.b16 %v20
  %v65 = vunpack.c.h.b16 %v20
  %v66 = vunpack.c.l.b16 %v21
  %v67 = vunpack.c.l.b16 %v22
  %v68 = vunpack.c.h.b16 %v22
  %v69 = vunpack.c.l.b16 %v23
  %v70 = vunpack.c.l.b16 %v24
  %v71 = vunpack.c.h.b16 %v24
  %v72 = vunpack.c.l.b16 %v25
  %v73 = vunpack.c.l.b16 %v26
  %v74 = vunpack.c.h.b16 %v26
  %v75 = vunpack.c.l.b16 %v27
  %v76 = vunpack.c.l.b16 %v28
  %v77 = vunpack.c.h.b16 %v28
  %v78 = vunpack.c.l.b16 %v29
  %v79 = vunpack.c.l.b16 %v30
  %v80 = vunpack.c.h.b16 %v30
  %v81 = vunpack.c.l.b16 %v31
  %v82 = vunpack.c.l.b16 %v32
  %v83 = vunpack.c.h.b16 %v32
  %v84 = vunpack.c.l.b16 %v33
  %v85 = vpack.c.b16 %v61, %v58
  %v86 = vpack.c.b16 %v62, %v59
  %v87 = vpack.c.b16 %v63, %v60
  %v88 = vpack.c.b16 %v67, %v64
  %v89 = vpack.c.b16 %v68, %v65
  %v90 = vpack.c.b16 %v69, %v66
  %v91 = vpack.c.b16 %v73, %v70
  %v92 = vpack.c.b16 %v74, %v71
  %v93 = vpack.c.b16 %v75, %v72
  %v94 = vpack.c.b16 %v79, %v76
  %v95 = vpack.c.b16 %v80, %v77
  %v96 = vpack.c.b16 %v81, %v78
  %v97 = vpack.c.b16 %v82, %v82
  %v98 = vpack.c.b16 %v83, %v83
  %v99 = vpack.c.b16 %v84, %v84
  %vm112 = vcmask 588800
  %v114 = vsel %vm112, %v15, 0
  %vm116 = vcmask 1043456
  %v118 = vsel %vm116, %v97, 0
  %v121 = vsel %vm116, %v98, 0
  %v124 = vsel %vm116, %v99, 0
  %126 = vmatprep.subr.bf16.mxu0 0
  %127 = vmatpush1.bf16.msra.mxu0 0
  %128 = vmatprep.subr.bf16.mxu0 0
  %129 = vmatpush1.bf16.msra.mxu0 0
  %130 = vmatprep.subr.bf16.mxu0 0
  %131 = vmatpush1.bf16.msra.mxu0 0
  %132 = vmatprep.subr.bf16.mxu0 %v121
  %133 = vmatpush1.bf16.msra.mxu0 %v118
  %134 = vmatprep.subr.bf16.mxu0 %v95
  %135 = vmatpush1.bf16.msra.mxu0 %v94
  %136 = vmatprep.subr.bf16.mxu0 %v92
  %137 = vmatpush1.bf16.msra.mxu0 %v91
  %138 = vmatprep.subr.bf16.mxu0 %v89
  %139 = vmatpush1.bf16.msra.mxu0 %v88
  %140 = vmatprep.subr.bf16.mxu0 %v86
  %141 = vmatpush1.bf16.msra.mxu0 %v85
  %142 = vmatprep.subr.bf16.mxu0 0
  %143 = vmatpush2.bf16.msra.mxu0 0
  %144 = vmatprep.subr.bf16.mxu0 0
  %145 = vmatpush2.bf16.msra.mxu0 0
  %146 = vmatprep.subr.bf16.mxu0 0
  %147 = vmatpush2.bf16.msra.mxu0 0
  %148 = vmatprep.subr.bf16.mxu0 0
  %149 = vmatpush2.bf16.msra.mxu0 0
  %150 = vmatprep.subr.bf16.mxu0 0
  %151 = vmatpush2.bf16.msra.mxu0 0
  %152 = vmatprep.subr.bf16.mxu0 0
  %153 = vmatpush2.bf16.msra.mxu0 0
  %154 = vmatprep.subr.bf16.mxu0 0
  %155 = vmatpush2.bf16.msra.mxu0 0
  %156 = vmatprep.subr.bf16.mxu0 0
  %157 = vmatpush2.bf16.msra.mxu0 0
  %158 = vmatprep.mubr.bf16.mxu0 0
  %159 = vmatmul.mubr.bf16.gmra.mxu0 %v114
  %v160 = vpop.f32.mrf.mxu0
  %v161 = vadd.f32 %v38, %v160
  %v162 = vpop.f32.mrf.mxu0
  %v163 = vadd.f32 %v38, %v162
  %v164 = vpop.f32.mrf.mxu0
  %v165 = vpop.f32.mrf.mxu0
  %166 = vdwg.mxu0
  %167 = vmatprep.subr.bf16.mxu0 0
  %168 = vmatpush1.bf16.msra.mxu0 0
  %169 = vmatprep.subr.bf16.mxu0 0
  %170 = vmatpush1.bf16.msra.mxu0 0
  %171 = vmatprep.subr.bf16.mxu0 0
  %172 = vmatpush1.bf16.msra.mxu0 0
  %173 = vmatprep.subr.bf16.mxu0 0
  %174 = vmatpush1.bf16.msra.mxu0 %v124
  %175 = vmatprep.subr.bf16.mxu0 0
  %176 = vmatpush1.bf16.msra.mxu0 %v96
  %177 = vmatprep.subr.bf16.mxu0 0
  %178 = vmatpush1.bf16.msra.mxu0 %v93
  %179 = vmatprep.subr.bf16.mxu0 0
  %180 = vmatpush1.bf16.msra.mxu0 %v90
  %181 = vmatprep.subr.bf16.mxu0 0
  %182 = vmatpush1.bf16.msra.mxu0 %v87
  %183 = vmatprep.subr.bf16.mxu0 0
  %184 = vmatpush2.bf16.msra.mxu0 0
  %185 = vmatprep.subr.bf16.mxu0 0
  %186 = vmatpush2.bf16.msra.mxu0 0
  %187 = vmatprep.subr.bf16.mxu0 0
  %188 = vmatpush2.bf16.msra.mxu0 0
  %189 = vmatprep.subr.bf16.mxu0 0
  %190 = vmatpush2.bf16.msra.mxu0 0
  %191 = vmatprep.subr.bf16.mxu0 0
  %192 = vmatpush2.bf16.msra.mxu0 0
  %193 = vmatprep.subr.bf16.mxu0 0
  %194 = vmatpush2.bf16.msra.mxu0 0
  %195 = vmatprep.subr.bf16.mxu0 0
  %196 = vmatpush2.bf16.msra.mxu0 0
  %197 = vmatprep.subr.bf16.mxu0 0
  %198 = vmatpush2.bf16.msra.mxu0 0
  %199 = vmatprep.mubr.bf16.mxu0 0
  %200 = vmatmul.mubr.bf16.gmra.mxu0 %v114
  %v201 = vpop.f32.mrf.mxu0
  %v202 = vadd.f32 %v38, %v201
  %v203 = vpop.f32.mrf.mxu0
  %v204 = vpop.f32.mrf.mxu0
  %v205 = vpop.f32.mrf.mxu0
  %206 = vdwg.mxu0
  %vm207 = vcmp.ge.f32.partialorder %v161, 0.0
  %vm208 = vcmp.ge.f32.partialorder %v163, 0.0
  %vm209 = vcmp.ge.f32.partialorder %v202, 0.0
  %v210 = vmul.f32 %v161, 0.2
  %v211 = vmul.f32 %v163, 0.2
  %v212 = vmul.f32 %v202, 0.2
  %v213 = vsel %vm207, %v161, %v210
  %v214 = vsel %vm208, %v163, %v211
  %v215 = vsel %vm209, %v202, %v212
  %v216 = vpack.c.bf16 %v213, %v213
  %v217 = vpack.c.bf16 %v214, %v214
  %v218 = vpack.c.bf16 %v215, %v215
  %v222 = vunpack.c.l.b16 %v216
  %v223 = vunpack.c.l.b16 %v217
  %v224 = vunpack.c.l.b16 %v218
  %v225 = vpack.c.b16 %v223, %v222
  %v226 = vpack.c.b16 %v224, %v224
  %229 = vst [vmem:[%s3] sm:$0xff] %v225
  %230 = vst [vmem:[%s3 + $0x8] sm:$0xf] %v226
  // Predicated region
  $region14: #{mel_clcnn_forward.40} parent=0 // pred_check
    _
  $region15: #{mel_clcnn_forward.40} parent=0 // pred_check_branch
    %232 = sbr.rel (0) target = $region17
  $region16: #{mel_clcnn_forward.40} parent=0 // pred_region
    _
  $region17: #{mel_clcnn_forward.40} parent=0 // pred_fallthru
    _
  // Predicated region
  $region18: #{mel_clcnn_forward.40} parent=0 // pred_check
    _
  $region19: #{mel_clcnn_forward.40} parent=0 // pred_check_branch
    %234 = sbr.rel (0) target = $region21
  $region20: #{mel_clcnn_forward.40} parent=0 // pred_region
    _
  $region21: #{mel_clcnn_forward.40} parent=0 // pred_fallthru
    _

// kernel: mel_clcnn_forward.42
$region0: #{mel_clcnn_forward.42}
  #allocation0 [shape = 'u32[]', space=smem, size = 0x4, offset = 0x4, fixed_abs, tag = 'smem constant byte address 0x4 - core index']
  #allocation1 [shape = 'u32[144,128]{1,0:T(1,128)}', space=vmem, size = 0x12000, scoped, tag = 'internal scratch']
  %s0 = inlined_call_operand.vmem [shape: bf16[8,24], index: 0, kind: input, shape index: {}]
  %s1 = inlined_call_operand.vmem [shape: bf16[24,384], index: 1, kind: input, shape index: {}]
  %s2 = inlined_call_operand.vmem [shape: f32[8,1], index: 2, kind: input, shape index: {}]
  %s3 = inlined_call_operand.vmem [shape: f32[8,384], index: 3, kind: output, shape index: {}]
  %s4 = sld [smem:[#allocation0]]
  $region22: #{mel_clcnn_forward.42} parent=0
    _
  %s6 = ssub.s32 1, %s4
  %s7 = scalar_select 0, %s6, %s4
  // Predicated region
  $region2: #{mel_clcnn_forward.42} parent=0 // pred_check
    _
  $region3: #{mel_clcnn_forward.42} parent=0 // pred_check_branch
    %9 = sbr.rel (0) target = $region5
  $region4: #{mel_clcnn_forward.42} parent=0 // pred_region
    _
  $region5: #{mel_clcnn_forward.42} parent=0 // pred_fallthru
    _
  // Predicated region
  $region6: #{mel_clcnn_forward.42} parent=0 // pred_check
    _
  $region7: #{mel_clcnn_forward.42} parent=0 // pred_check_branch
    %11 = sbr.rel (0) target = $region9
  $region8: #{mel_clcnn_forward.42} parent=0 // pred_region
    _
  $region9: #{mel_clcnn_forward.42} parent=0 // pred_fallthru
    _
  // Predicated region
  $region10: #{mel_clcnn_forward.42} parent=0 // pred_check
    _
  $region11: #{mel_clcnn_forward.42} parent=0 // pred_check_branch
    %13 = sbr.rel (0) target = $region13
  $region12: #{mel_clcnn_forward.42} parent=0 // pred_region
    _
  $region13: #{mel_clcnn_forward.42} parent=0 // pred_fallthru
    _
  %v15 = vld [vmem:[%s0] sm:$0xf]
  %v16 = vld [vmem:[%s1] sm:$0xff]
  %v17 = vld [vmem:[%s1 + $0x8] sm:$0xf]
  %v18 = vld [vmem:[%s1 + $0xc] sm:$0xff]
  %v19 = vld [vmem:[%s1 + $0x14] sm:$0xf]
  %v20 = vld [vmem:[%s1 + $0x18] sm:$0xff]
  %v21 = vld [vmem:[%s1 + $0x20] sm:$0xf]
  %v22 = vld [vmem:[%s2] sm:$0xff]
  %24 = vset.pattern.permute.xlu0 0
  %25 = vperm.xlu0 %24, %v22
  %v26 = vpop.permute.xlu0 %25
  %v34 = vunpack.c.l.b16 %v16
  %v35 = vunpack.c.h.b16 %v16
  %v36 = vunpack.c.l.b16 %v17
  %v37 = vunpack.c.l.b16 %v18
  %v38 = vunpack.c.h.b16 %v18
  %v39 = vunpack.c.l.b16 %v19
  %v40 = vunpack.c.l.b16 %v20
  %v41 = vunpack.c.h.b16 %v20
  %v42 = vunpack.c.l.b16 %v21
  %v43 = vpack.c.b16 %v37, %v34
  %v44 = vpack.c.b16 %v38, %v35
  %v45 = vpack.c.b16 %v39, %v36
  %v46 = vpack.c.b16 %v40, %v40
  %v47 = vpack.c.b16 %v41, %v41
  %v48 = vpack.c.b16 %v42, %v42
  %vm52 = vcmask 195584
  %v54 = vsel %vm52, %v15, 0
  %vm56 = vcmask 1043456
  %v58 = vsel %vm56, %v46, 0
  %v61 = vsel %vm56, %v47, 0
  %v64 = vsel %vm56, %v48, 0
  %66 = vmatprep.subr.bf16.mxu0 0
  %67 = vmatpush1.bf16.msra.mxu0 0
  %68 = vmatprep.subr.bf16.mxu0 0
  %69 = vmatpush1.bf16.msra.mxu0 0
  %70 = vmatprep.subr.bf16.mxu0 0
  %71 = vmatpush1.bf16.msra.mxu0 0
  %72 = vmatprep.subr.bf16.mxu0 0
  %73 = vmatpush1.bf16.msra.mxu0 0
  %74 = vmatprep.subr.bf16.mxu0 0
  %75 = vmatpush1.bf16.msra.mxu0 0
  %76 = vmatprep.subr.bf16.mxu0 0
  %77 = vmatpush1.bf16.msra.mxu0 0
  %78 = vmatprep.subr.bf16.mxu0 %v61
  %79 = vmatpush1.bf16.msra.mxu0 %v58
  %80 = vmatprep.subr.bf16.mxu0 %v44
  %81 = vmatpush1.bf16.msra.mxu0 %v43
  %82 = vmatprep.subr.bf16.mxu0 0
  %83 = vmatpush2.bf16.msra.mxu0 0
  %84 = vmatprep.subr.bf16.mxu0 0
  %85 = vmatpush2.bf16.msra.mxu0 0
  %86 = vmatprep.subr.bf16.mxu0 0
  %87 = vmatpush2.bf16.msra.mxu0 0
  %88 = vmatprep.subr.bf16.mxu0 0
  %89 = vmatpush2.bf16.msra.mxu0 0
  %90 = vmatprep.subr.bf16.mxu0 0
  %91 = vmatpush2.bf16.msra.mxu0 0
  %92 = vmatprep.subr.bf16.mxu0 0
  %93 = vmatpush2.bf16.msra.mxu0 0
  %94 = vmatprep.subr.bf16.mxu0 0
  %95 = vmatpush2.bf16.msra.mxu0 0
  %96 = vmatprep.subr.bf16.mxu0 0
  %97 = vmatpush2.bf16.msra.mxu0 0
  %98 = vmatprep.mubr.bf16.mxu0 0
  %99 = vmatmul.mubr.bf16.gmra.mxu0 %v54
  %v100 = vpop.f32.mrf.mxu0
  %v101 = vadd.f32 %v26, %v100
  %v102 = vpop.f32.mrf.mxu0
  %v103 = vadd.f32 %v26, %v102
  %v104 = vpop.f32.mrf.mxu0
  %v105 = vpop.f32.mrf.mxu0
  %106 = vdwg.mxu0
  %107 = vmatprep.subr.bf16.mxu0 0
  %108 = vmatpush1.bf16.msra.mxu0 0
  %109 = vmatprep.subr.bf16.mxu0 0
  %110 = vmatpush1.bf16.msra.mxu0 0
  %111 = vmatprep.subr.bf16.mxu0 0
  %112 = vmatpush1.bf16.msra.mxu0 0
  %113 = vmatprep.subr.bf16.mxu0 0
  %114 = vmatpush1.bf16.msra.mxu0 0
  %115 = vmatprep.subr.bf16.mxu0 0
  %116 = vmatpush1.bf16.msra.mxu0 0
  %117 = vmatprep.subr.bf16.mxu0 0
  %118 = vmatpush1.bf16.msra.mxu0 0
  %119 = vmatprep.subr.bf16.mxu0 0
  %120 = vmatpush1.bf16.msra.mxu0 %v64
  %121 = vmatprep.subr.bf16.mxu0 0
  %122 = vmatpush1.bf16.msra.mxu0 %v45
  %123 = vmatprep.subr.bf16.mxu0 0
  %124 = vmatpush2.bf16.msra.mxu0 0
  %125 = vmatprep.subr.bf16.mxu0 0
  %126 = vmatpush2.bf16.msra.mxu0 0
  %127 = vmatprep.subr.bf16.mxu0 0
  %128 = vmatpush2.bf16.msra.mxu0 0
  %129 = vmatprep.subr.bf16.mxu0 0
  %130 = vmatpush2.bf16.msra.mxu0 0
  %131 = vmatprep.subr.bf16.mxu0 0
  %132 = vmatpush2.bf16.msra.mxu0 0
  %133 = vmatprep.subr.bf16.mxu0 0
  %134 = vmatpush2.bf16.msra.mxu0 0
  %135 = vmatprep.subr.bf16.mxu0 0
  %136 = vmatpush2.bf16.msra.mxu0 0
  %137 = vmatprep.subr.bf16.mxu0 0
  %138 = vmatpush2.bf16.msra.mxu0 0
  %139 = vmatprep.mubr.bf16.mxu0 0
  %140 = vmatmul.mubr.bf16.gmra.mxu0 %v54
  %v141 = vpop.f32.mrf.mxu0
  %v142 = vadd.f32 %v26, %v141
  %v143 = vpop.f32.mrf.mxu0
  %v144 = vpop.f32.mrf.mxu0
  %v145 = vpop.f32.mrf.mxu0
  %146 = vdwg.mxu0
  %147 = vst [vmem:[%s3] sm:$0xff] %v101
  %148 = vst [vmem:[%s3 + $0x8] sm:$0xff] %v103
  %149 = vst [vmem:[%s3 + $0x10] sm:$0xff] %v142
  // Predicated region
  $region14: #{mel_clcnn_forward.42} parent=0 // pred_check
    _
  $region15: #{mel_clcnn_forward.42} parent=0 // pred_check_branch
    %151 = sbr.rel (0) target = $region17
  $region16: #{mel_clcnn_forward.42} parent=0 // pred_region
    _
  $region17: #{mel_clcnn_forward.42} parent=0 // pred_fallthru
    _
  // Predicated region
  $region18: #{mel_clcnn_forward.42} parent=0 // pred_check
    _
  $region19: #{mel_clcnn_forward.42} parent=0 // pred_check_branch
    %153 = sbr.rel (0) target = $region21
  $region20: #{mel_clcnn_forward.42} parent=0 // pred_region
    _
  $region21: #{mel_clcnn_forward.42} parent=0 // pred_fallthru
    _

</llo_original>
